<compile_context>
chip_gen: v7x
topology: tpu7x:2x2x1
jax: 0.10.0
libtpu: 0.0.40
codegen_flags: <defaults>
</compile_context>

<pallas_src>
import math
import jax
import jax.numpy as jnp
from jax import lax
from jax.experimental import pallas as pl
from jax.experimental.pallas import tpu as pltpu

# ------------------------- configuration (small) -------------------------
B = 8               # batch size (== attention "sequence" length, unbatched MHA)
C, HH, WW = 3, 16, 16
SEQ = 12
TEXT_OUT = 32       # text encoder output dim
VISION_OUT = 64     # vision encoder output dim (= MHA embed_dim)
NUM_HEADS = 8
HEAD_DIM = VISION_OUT // NUM_HEADS
NUM_CLASSES = 10
IMG_FLAT = C * HH * WW


# ------------------------------ Pallas kernel -----------------------------
def fused_fusion_kernel(img_ref, text_ref,
                        w_vis_ref, w_tf_ref, b_tf_ref,
                        w_q_ref, b_q_ref, w_kv_ref, b_kv_ref,
                        w_out_ref, b_out_ref, w_fc_ref, b_fc_ref,
                        logits_ref):
    f32 = jnp.float32
    V = VISION_OUT

    # ---- vision encoder stand-in (largest matmul, fused into the kernel) ----
    vision = jnp.dot(img_ref[...], w_vis_ref[...],
                     preferred_element_type=f32)                       # (B, V)

    # ---- text encoder stand-in: mean-pool over the sequence axis ----
    text_feat = jnp.sum(text_ref[...], axis=1) * (1.0 / SEQ)           # (B, TEXT_OUT)

    # ---- text_fc: weights pre-transposed in wrapper to (TEXT_OUT, V) ----
    text_emb = jnp.dot(text_feat, w_tf_ref[...],
                       preferred_element_type=f32) + b_tf_ref[...]     # (B, V)

    # ---- MHA in-projection (q from text queries, k/v from vision) ----
    scale = 1.0 / math.sqrt(HEAD_DIM)
    q = (jnp.dot(text_emb, w_q_ref[...],
                 preferred_element_type=f32) + b_q_ref[...]) * scale   # (B, V)
    kv = jnp.dot(vision, w_kv_ref[...],
                 preferred_element_type=f32) + b_kv_ref[...]           # (B, 2V) lane-dense
    k = kv[:, :V]                                                      # (B, V)
    v = kv[:, V:]                                                      # (B, V)

    w_out = w_out_ref[...]                                             # (V, V) = (in, out)

    # ---- per-head attention, out_proj folded into the accumulation ----
    attn_acc = jnp.zeros((B, V), f32)
    for h in range(NUM_HEADS):                                         # static unroll
        lo = h * HEAD_DIM
        hi = lo + HEAD_DIM
        qh = q[:, lo:hi]                                               # (B, hd) (scale folded in)
        kh = k[:, lo:hi]
        vh = v[:, lo:hi]
        # scores = qh @ kh^T, expressed as a contraction on the last dims
        s = lax.dot_general(qh, kh, (((1,), (1,)), ((), ())),
                            preferred_element_type=f32)                # (B, B)
        s = s - jnp.max(s, axis=-1, keepdims=True)
        p = jnp.exp(s)
        p = p * pl.reciprocal(jnp.sum(p, axis=-1, keepdims=True), approx=True)
        ctx = jnp.dot(p, vh, preferred_element_type=f32)               # (B, hd)
        # fold out_proj: concat_h(ctx_h) @ Wout^T == sum_h ctx_h @ Wout_T[rows h]
        attn_acc = attn_acc + jnp.dot(ctx, w_out[lo:hi, :],
                                      preferred_element_type=f32)      # (B, V)

    # ---- merge_mha residual + classifier head ----
    cls = attn_acc + b_out_ref[...] + vision                           # (B, V)
    logits_ref[...] = jnp.dot(cls, w_fc_ref[...],
                              preferred_element_type=f32) + b_fc_ref[...]


def model_forward(image, text, packed):
    # stand-in vision encoder starts with a flatten (NCHW -> (B, C*H*W))
    img_flat = image.reshape(image.shape[0], -1)
    vmem = pl.BlockSpec(memory_space=pltpu.MemorySpace.VMEM)
    args = (img_flat, text,
            packed["w_vis"], packed["w_tf"], packed["b_tf"],
            packed["w_q"], packed["b_q"], packed["w_kv"], packed["b_kv"],
            packed["w_out"], packed["b_out"], packed["w_fc"], packed["b_fc"])
    return pl.pallas_call(
        fused_fusion_kernel,
        out_shape=jax.ShapeDtypeStruct((B, NUM_CLASSES), jnp.float32),
        in_specs=[vmem] * len(args),
        out_specs=vmem,
    )(*args)


# --------------------- params (PyTorch layout) + prepack -------------------
def init_params(key):
    ks = jax.random.split(key, 9)
    s = 0.02
    return {
        # text_fc: Linear(TEXT_OUT -> VISION_OUT); PyTorch W is (out, in)
        "w_tf":  s * jax.random.normal(ks[0], (VISION_OUT, TEXT_OUT), jnp.float32),
        "b_tf":  s * jax.random.normal(ks[1], (VISION_OUT,), jnp.float32),
        # nn.MultiheadAttention packed in_proj (3V, V) and bias (3V,)
        "w_in":  s * jax.random.normal(ks[2], (3 * VISION_OUT, VISION_OUT), jnp.float32),
        "b_in":  s * jax.random.normal(ks[3], (3 * VISION_OUT,), jnp.float32),
        # MHA out_proj: Linear(V -> V)
        "w_out": s * jax.random.normal(ks[4], (VISION_OUT, VISION_OUT), jnp.float32),
        "b_out": s * jax.random.normal(ks[5], (VISION_OUT,), jnp.float32),
        # fc: Linear(VISION_OUT -> NUM_CLASSES)
        "w_fc":  s * jax.random.normal(ks[6], (NUM_CLASSES, VISION_OUT), jnp.float32),
        "b_fc":  s * jax.random.normal(ks[7], (NUM_CLASSES,), jnp.float32),
        # stand-in vision encoder weight, already (in, out)
        "w_vis": s * jax.random.normal(ks[8], (IMG_FLAT, VISION_OUT), jnp.float32),
    }


def prepack_params(p):
    """One-time wrapper-side repack: transpose weights to (in, out), split
    the MHA in_proj into q and a merged kv block, biases as (1, N) rows."""
    V = VISION_OUT
    w_in, b_in = p["w_in"], p["b_in"]
    return {
        "w_vis": p["w_vis"],                               # (IMG_FLAT, V)
        "w_tf":  p["w_tf"].T,                              # (TEXT_OUT, V)
        "b_tf":  p["b_tf"].reshape(1, V),
        "w_q":   w_in[:V, :].T,                            # (V, V)
        "b_q":   b_in[:V].reshape(1, V),
        "w_kv":  w_in[V:, :].T,                            # (V, 2V)  k | v halves
        "b_kv":  b_in[V:].reshape(1, 2 * V),
        "w_out": p["w_out"].T,                             # (V, V)   (in, out)
        "b_out": p["b_out"].reshape(1, V),
        "w_fc":  p["w_fc"].T,                              # (V, NUM_CLASSES)
        "b_fc":  p["b_fc"].reshape(1, NUM_CLASSES),
    }


# --------------------------- pure-JAX reference ----------------------------
def reference_forward(image, text, p):
    vision = image.reshape(image.shape[0], -1) @ p["w_vis"]            # (B, V)
    text_feat = jnp.mean(text, axis=1)                                 # (B, TEXT_OUT)
    text_emb = text_feat @ p["w_tf"].T + p["b_tf"]                     # (B, V)
    V, hd = VISION_OUT, HEAD_DIM
    w_in, b_in = p["w_in"], p["b_in"]
    q = text_emb @ w_in[:V].T + b_in[:V]
    k = vision @ w_in[V:2 * V].T + b_in[V:2 * V]
    v = vision @ w_in[2 * V:].T + b_in[2 * V:]
    outs = []
    for h in range(NUM_HEADS):
        sl = slice(h * hd, (h + 1) * hd)
        s = (q[:, sl] / math.sqrt(hd)) @ k[:, sl].T
        a = jax.nn.softmax(s, axis=-1)
        outs.append(a @ v[:, sl])
    attn = jnp.concatenate(outs, axis=-1) @ p["w_out"].T + p["b_out"]
    cls = attn + vision
    return cls @ p["w_fc"].T + p["b_fc"]


# ---------------------------------- main -----------------------------------
if __name__ == "__main__":
    key = jax.random.PRNGKey(0)
    k_img, k_txt, k_par = jax.random.split(key, 3)
    image = jax.random.normal(k_img, (B, C, HH, WW), jnp.float32)      # NCHW
    text = jax.random.normal(k_txt, (B, SEQ, TEXT_OUT), jnp.float32)
    params = init_params(k_par)
    packed = prepack_params(params)

    fwd = jax.jit(model_forward)
    logits = fwd(image, text, packed)
    jax.block_until_ready(logits)

    assert logits.shape == (B, NUM_CLASSES)
    ref = reference_forward(image, text, params)
    err = float(jnp.max(jnp.abs(logits - ref)))
    assert err < 1e-2, f"kernel/reference mismatch: max |diff| = {err}"
    print("KERNEL_OK")
</pallas_src>

<mosaic_0001>
module attributes {stable_mosaic.version = 11 : i64} {
  func.func @fused_fusion_kernel(%arg0: memref<8x768xf32, #tpu.memory_space<vmem>>, %arg1: memref<8x12x32xf32, #tpu.memory_space<vmem>>, %arg2: memref<768x64xf32, #tpu.memory_space<vmem>>, %arg3: memref<32x64xf32, #tpu.memory_space<vmem>>, %arg4: memref<1x64xf32, #tpu.memory_space<vmem>>, %arg5: memref<64x64xf32, #tpu.memory_space<vmem>>, %arg6: memref<1x64xf32, #tpu.memory_space<vmem>>, %arg7: memref<64x128xf32, #tpu.memory_space<vmem>>, %arg8: memref<1x128xf32, #tpu.memory_space<vmem>>, %arg9: memref<64x64xf32, #tpu.memory_space<vmem>>, %arg10: memref<1x64xf32, #tpu.memory_space<vmem>>, %arg11: memref<64x10xf32, #tpu.memory_space<vmem>>, %arg12: memref<1x10xf32, #tpu.memory_space<vmem>>, %arg13: memref<8x10xf32, #tpu.memory_space<vmem>>) attributes {dimension_semantics = [], scalar_prefetch = 0 : i64, scratch_operands = 0 : i64, tpu.core_type = #tpu.core_type<tc>} {
    %c0 = arith.constant 0 : index
    %c0_0 = arith.constant 0 : index
    %0 = vector.load %arg0[%c0, %c0_0] : memref<8x768xf32, #tpu.memory_space<vmem>>, vector<8x768xf32>
    %c0_1 = arith.constant 0 : index
    %c0_2 = arith.constant 0 : index
    %1 = vector.load %arg2[%c0_1, %c0_2] : memref<768x64xf32, #tpu.memory_space<vmem>>, vector<768x64xf32>
    %cst = arith.constant dense<0.000000e+00> : vector<8x64xf32>
    %2 = tpu.matmul %0, %1, %cst {dimension_numbers = #tpu.dot_dimension_numbers<[1], [0], [0], [1], [0, 0, 1, 1], [], []>} : vector<8x768xf32>, vector<768x64xf32>, vector<8x64xf32> -> vector<8x64xf32>
    %c0_3 = arith.constant 0 : index
    %c0_4 = arith.constant 0 : index
    %c0_5 = arith.constant 0 : index
    %3 = vector.load %arg1[%c0_3, %c0_4, %c0_5] : memref<8x12x32xf32, #tpu.memory_space<vmem>>, vector<8x12x32xf32>
    %cst_6 = arith.constant dense<0.000000e+00> : vector<8x32xf32>
    %4 = vector.multi_reduction <add>, %3, %cst_6 [1] : vector<8x12x32xf32> to vector<8x32xf32>
    %cst_7 = arith.constant 0.0833333358 : f32
    %5 = vector.broadcast %cst_7 : f32 to vector<8x32xf32>
    %6 = arith.mulf %4, %5 : vector<8x32xf32>
    %c0_8 = arith.constant 0 : index
    %c0_9 = arith.constant 0 : index
    %7 = vector.load %arg3[%c0_8, %c0_9] : memref<32x64xf32, #tpu.memory_space<vmem>>, vector<32x64xf32>
    %cst_10 = arith.constant dense<0.000000e+00> : vector<8x64xf32>
    %8 = tpu.matmul %6, %7, %cst_10 {dimension_numbers = #tpu.dot_dimension_numbers<[1], [0], [0], [1], [0, 0, 1, 1], [], []>} : vector<8x32xf32>, vector<32x64xf32>, vector<8x64xf32> -> vector<8x64xf32>
    %c0_11 = arith.constant 0 : index
    %c0_12 = arith.constant 0 : index
    %9 = vector.load %arg4[%c0_11, %c0_12] : memref<1x64xf32, #tpu.memory_space<vmem>>, vector<1x64xf32>
    %10 = vector.broadcast %9 : vector<1x64xf32> to vector<8x64xf32>
    %11 = arith.addf %8, %10 : vector<8x64xf32>
    %c0_13 = arith.constant 0 : index
    %c0_14 = arith.constant 0 : index
    %12 = vector.load %arg5[%c0_13, %c0_14] : memref<64x64xf32, #tpu.memory_space<vmem>>, vector<64x64xf32>
    %cst_15 = arith.constant dense<0.000000e+00> : vector<8x64xf32>
    %13 = tpu.matmul %11, %12, %cst_15 {dimension_numbers = #tpu.dot_dimension_numbers<[1], [0], [0], [1], [0, 0, 1, 1], [], []>} : vector<8x64xf32>, vector<64x64xf32>, vector<8x64xf32> -> vector<8x64xf32>
    %c0_16 = arith.constant 0 : index
    %c0_17 = arith.constant 0 : index
    %14 = vector.load %arg6[%c0_16, %c0_17] : memref<1x64xf32, #tpu.memory_space<vmem>>, vector<1x64xf32>
    %15 = vector.broadcast %14 : vector<1x64xf32> to vector<8x64xf32>
    %16 = arith.addf %13, %15 : vector<8x64xf32>
    %cst_18 = arith.constant 0.353553385 : f32
    %17 = vector.broadcast %cst_18 : f32 to vector<8x64xf32>
    %18 = arith.mulf %16, %17 : vector<8x64xf32>
    %c0_19 = arith.constant 0 : index
    %c0_20 = arith.constant 0 : index
    %19 = vector.load %arg7[%c0_19, %c0_20] : memref<64x128xf32, #tpu.memory_space<vmem>>, vector<64x128xf32>
    %cst_21 = arith.constant dense<0.000000e+00> : vector<8x128xf32>
    %20 = tpu.matmul %2, %19, %cst_21 {dimension_numbers = #tpu.dot_dimension_numbers<[1], [0], [0], [1], [0, 0, 1, 1], [], []>} : vector<8x64xf32>, vector<64x128xf32>, vector<8x128xf32> -> vector<8x128xf32>
    %c0_22 = arith.constant 0 : index
    %c0_23 = arith.constant 0 : index
    %21 = vector.load %arg8[%c0_22, %c0_23] : memref<1x128xf32, #tpu.memory_space<vmem>>, vector<1x128xf32>
    %22 = vector.broadcast %21 : vector<1x128xf32> to vector<8x128xf32>
    %23 = arith.addf %20, %22 : vector<8x128xf32>
    %24 = vector.extract_strided_slice %23 {offsets = [0, 0], sizes = [8, 64], strides = [1, 1]} : vector<8x128xf32> to vector<8x64xf32>
    %25 = vector.extract_strided_slice %23 {offsets = [0, 64], sizes = [8, 64], strides = [1, 1]} : vector<8x128xf32> to vector<8x64xf32>
    %c0_24 = arith.constant 0 : index
    %c0_25 = arith.constant 0 : index
    %26 = vector.load %arg9[%c0_24, %c0_25] : memref<64x64xf32, #tpu.memory_space<vmem>>, vector<64x64xf32>
    %cst_26 = arith.constant 0.000000e+00 : f32
    %27 = vector.broadcast %cst_26 : f32 to vector<8x64xf32>
    %28 = vector.extract_strided_slice %18 {offsets = [0, 0], sizes = [8, 8], strides = [1, 1]} : vector<8x64xf32> to vector<8x8xf32>
    %29 = vector.extract_strided_slice %24 {offsets = [0, 0], sizes = [8, 8], strides = [1, 1]} : vector<8x64xf32> to vector<8x8xf32>
    %30 = vector.extract_strided_slice %25 {offsets = [0, 0], sizes = [8, 8], strides = [1, 1]} : vector<8x64xf32> to vector<8x8xf32>
    %cst_27 = arith.constant dense<0.000000e+00> : vector<8x8xf32>
    %31 = tpu.matmul %28, %29, %cst_27 {dimension_numbers = #tpu.dot_dimension_numbers<[1], [1], [0], [0], [0, 0, 1, 0], [], []>} : vector<8x8xf32>, vector<8x8xf32>, vector<8x8xf32> -> vector<8x8xf32>
    %cst_28 = arith.constant dense<0xFF800000> : vector<8xf32>
    %32 = vector.multi_reduction <maximumf>, %31, %cst_28 [1] : vector<8x8xf32> to vector<8xf32>
    %33 = vector.shape_cast %32 : vector<8xf32> to vector<8x1xf32>
    %34 = vector.broadcast %33 : vector<8x1xf32> to vector<8x8xf32>
    %35 = arith.subf %31, %34 : vector<8x8xf32>
    %36 = math.exp %35 : vector<8x8xf32>
    %cst_29 = arith.constant dense<0.000000e+00> : vector<8xf32>
    %37 = vector.multi_reduction <add>, %36, %cst_29 [1] : vector<8x8xf32> to vector<8xf32>
    %38 = vector.shape_cast %37 : vector<8xf32> to vector<8x1xf32>
    %39 = tpu.reciprocal %38 {approx = true} : vector<8x1xf32> -> vector<8x1xf32>
    %40 = vector.broadcast %39 : vector<8x1xf32> to vector<8x8xf32>
    %41 = arith.mulf %36, %40 : vector<8x8xf32>
    %cst_30 = arith.constant dense<0.000000e+00> : vector<8x8xf32>
    %42 = tpu.matmul %41, %30, %cst_30 {dimension_numbers = #tpu.dot_dimension_numbers<[1], [0], [0], [1], [0, 0, 1, 1], [], []>} : vector<8x8xf32>, vector<8x8xf32>, vector<8x8xf32> -> vector<8x8xf32>
    %43 = vector.extract_strided_slice %26 {offsets = [0, 0], sizes = [8, 64], strides = [1, 1]} : vector<64x64xf32> to vector<8x64xf32>
    %cst_31 = arith.constant dense<0.000000e+00> : vector<8x64xf32>
    %44 = tpu.matmul %42, %43, %cst_31 {dimension_numbers = #tpu.dot_dimension_numbers<[1], [0], [0], [1], [0, 0, 1, 1], [], []>} : vector<8x8xf32>, vector<8x64xf32>, vector<8x64xf32> -> vector<8x64xf32>
    %45 = arith.addf %27, %44 : vector<8x64xf32>
    %46 = vector.extract_strided_slice %18 {offsets = [0, 8], sizes = [8, 8], strides = [1, 1]} : vector<8x64xf32> to vector<8x8xf32>
    %47 = vector.extract_strided_slice %24 {offsets = [0, 8], sizes = [8, 8], strides = [1, 1]} : vector<8x64xf32> to vector<8x8xf32>
    %48 = vector.extract_strided_slice %25 {offsets = [0, 8], sizes = [8, 8], strides = [1, 1]} : vector<8x64xf32> to vector<8x8xf32>
    %cst_32 = arith.constant dense<0.000000e+00> : vector<8x8xf32>
    %49 = tpu.matmul %46, %47, %cst_32 {dimension_numbers = #tpu.dot_dimension_numbers<[1], [1], [0], [0], [0, 0, 1, 0], [], []>} : vector<8x8xf32>, vector<8x8xf32>, vector<8x8xf32> -> vector<8x8xf32>
    %cst_33 = arith.constant dense<0xFF800000> : vector<8xf32>
    %50 = vector.multi_reduction <maximumf>, %49, %cst_33 [1] : vector<8x8xf32> to vector<8xf32>
    %51 = vector.shape_cast %50 : vector<8xf32> to vector<8x1xf32>
    %52 = vector.broadcast %51 : vector<8x1xf32> to vector<8x8xf32>
    %53 = arith.subf %49, %52 : vector<8x8xf32>
    %54 = math.exp %53 : vector<8x8xf32>
    %cst_34 = arith.constant dense<0.000000e+00> : vector<8xf32>
    %55 = vector.multi_reduction <add>, %54, %cst_34 [1] : vector<8x8xf32> to vector<8xf32>
    %56 = vector.shape_cast %55 : vector<8xf32> to vector<8x1xf32>
    %57 = tpu.reciprocal %56 {approx = true} : vector<8x1xf32> -> vector<8x1xf32>
    %58 = vector.broadcast %57 : vector<8x1xf32> to vector<8x8xf32>
    %59 = arith.mulf %54, %58 : vector<8x8xf32>
    %cst_35 = arith.constant dense<0.000000e+00> : vector<8x8xf32>
    %60 = tpu.matmul %59, %48, %cst_35 {dimension_numbers = #tpu.dot_dimension_numbers<[1], [0], [0], [1], [0, 0, 1, 1], [], []>} : vector<8x8xf32>, vector<8x8xf32>, vector<8x8xf32> -> vector<8x8xf32>
    %61 = vector.extract_strided_slice %26 {offsets = [8, 0], sizes = [8, 64], strides = [1, 1]} : vector<64x64xf32> to vector<8x64xf32>
    %cst_36 = arith.constant dense<0.000000e+00> : vector<8x64xf32>
    %62 = tpu.matmul %60, %61, %cst_36 {dimension_numbers = #tpu.dot_dimension_numbers<[1], [0], [0], [1], [0, 0, 1, 1], [], []>} : vector<8x8xf32>, vector<8x64xf32>, vector<8x64xf32> -> vector<8x64xf32>
    %63 = arith.addf %45, %62 : vector<8x64xf32>
    %64 = vector.extract_strided_slice %18 {offsets = [0, 16], sizes = [8, 8], strides = [1, 1]} : vector<8x64xf32> to vector<8x8xf32>
    %65 = vector.extract_strided_slice %24 {offsets = [0, 16], sizes = [8, 8], strides = [1, 1]} : vector<8x64xf32> to vector<8x8xf32>
    %66 = vector.extract_strided_slice %25 {offsets = [0, 16], sizes = [8, 8], strides = [1, 1]} : vector<8x64xf32> to vector<8x8xf32>
    %cst_37 = arith.constant dense<0.000000e+00> : vector<8x8xf32>
    %67 = tpu.matmul %64, %65, %cst_37 {dimension_numbers = #tpu.dot_dimension_numbers<[1], [1], [0], [0], [0, 0, 1, 0], [], []>} : vector<8x8xf32>, vector<8x8xf32>, vector<8x8xf32> -> vector<8x8xf32>
    %cst_38 = arith.constant dense<0xFF800000> : vector<8xf32>
    %68 = vector.multi_reduction <maximumf>, %67, %cst_38 [1] : vector<8x8xf32> to vector<8xf32>
    %69 = vector.shape_cast %68 : vector<8xf32> to vector<8x1xf32>
    %70 = vector.broadcast %69 : vector<8x1xf32> to vector<8x8xf32>
    %71 = arith.subf %67, %70 : vector<8x8xf32>
    %72 = math.exp %71 : vector<8x8xf32>
    %cst_39 = arith.constant dense<0.000000e+00> : vector<8xf32>
    %73 = vector.multi_reduction <add>, %72, %cst_39 [1] : vector<8x8xf32> to vector<8xf32>
    %74 = vector.shape_cast %73 : vector<8xf32> to vector<8x1xf32>
    %75 = tpu.reciprocal %74 {approx = true} : vector<8x1xf32> -> vector<8x1xf32>
    %76 = vector.broadcast %75 : vector<8x1xf32> to vector<8x8xf32>
    %77 = arith.mulf %72, %76 : vector<8x8xf32>
    %cst_40 = arith.constant dense<0.000000e+00> : vector<8x8xf32>
    %78 = tpu.matmul %77, %66, %cst_40 {dimension_numbers = #tpu.dot_dimension_numbers<[1], [0], [0], [1], [0, 0, 1, 1], [], []>} : vector<8x8xf32>, vector<8x8xf32>, vector<8x8xf32> -> vector<8x8xf32>
    %79 = vector.extract_strided_slice %26 {offsets = [16, 0], sizes = [8, 64], strides = [1, 1]} : vector<64x64xf32> to vector<8x64xf32>
    %cst_41 = arith.constant dense<0.000000e+00> : vector<8x64xf32>
    %80 = tpu.matmul %78, %79, %cst_41 {dimension_numbers = #tpu.dot_dimension_numbers<[1], [0], [0], [1], [0, 0, 1, 1], [], []>} : vector<8x8xf32>, vector<8x64xf32>, vector<8x64xf32> -> vector<8x64xf32>
    %81 = arith.addf %63, %80 : vector<8x64xf32>
    %82 = vector.extract_strided_slice %18 {offsets = [0, 24], sizes = [8, 8], strides = [1, 1]} : vector<8x64xf32> to vector<8x8xf32>
    %83 = vector.extract_strided_slice %24 {offsets = [0, 24], sizes = [8, 8], strides = [1, 1]} : vector<8x64xf32> to vector<8x8xf32>
    %84 = vector.extract_strided_slice %25 {offsets = [0, 24], sizes = [8, 8], strides = [1, 1]} : vector<8x64xf32> to vector<8x8xf32>
    %cst_42 = arith.constant dense<0.000000e+00> : vector<8x8xf32>
    %85 = tpu.matmul %82, %83, %cst_42 {dimension_numbers = #tpu.dot_dimension_numbers<[1], [1], [0], [0], [0, 0, 1, 0], [], []>} : vector<8x8xf32>, vector<8x8xf32>, vector<8x8xf32> -> vector<8x8xf32>
    %cst_43 = arith.constant dense<0xFF800000> : vector<8xf32>
    %86 = vector.multi_reduction <maximumf>, %85, %cst_43 [1] : vector<8x8xf32> to vector<8xf32>
    %87 = vector.shape_cast %86 : vector<8xf32> to vector<8x1xf32>
    %88 = vector.broadcast %87 : vector<8x1xf32> to vector<8x8xf32>
    %89 = arith.subf %85, %88 : vector<8x8xf32>
    %90 = math.exp %89 : vector<8x8xf32>
    %cst_44 = arith.constant dense<0.000000e+00> : vector<8xf32>
    %91 = vector.multi_reduction <add>, %90, %cst_44 [1] : vector<8x8xf32> to vector<8xf32>
    %92 = vector.shape_cast %91 : vector<8xf32> to vector<8x1xf32>
    %93 = tpu.reciprocal %92 {approx = true} : vector<8x1xf32> -> vector<8x1xf32>
    %94 = vector.broadcast %93 : vector<8x1xf32> to vector<8x8xf32>
    %95 = arith.mulf %90, %94 : vector<8x8xf32>
    %cst_45 = arith.constant dense<0.000000e+00> : vector<8x8xf32>
    %96 = tpu.matmul %95, %84, %cst_45 {dimension_numbers = #tpu.dot_dimension_numbers<[1], [0], [0], [1], [0, 0, 1, 1], [], []>} : vector<8x8xf32>, vector<8x8xf32>, vector<8x8xf32> -> vector<8x8xf32>
    %97 = vector.extract_strided_slice %26 {offsets = [24, 0], sizes = [8, 64], strides = [1, 1]} : vector<64x64xf32> to vector<8x64xf32>
    %cst_46 = arith.constant dense<0.000000e+00> : vector<8x64xf32>
    %98 = tpu.matmul %96, %97, %cst_46 {dimension_numbers = #tpu.dot_dimension_numbers<[1], [0], [0], [1], [0, 0, 1, 1], [], []>} : vector<8x8xf32>, vector<8x64xf32>, vector<8x64xf32> -> vector<8x64xf32>
    %99 = arith.addf %81, %98 : vector<8x64xf32>
    %100 = vector.extract_strided_slice %18 {offsets = [0, 32], sizes = [8, 8], strides = [1, 1]} : vector<8x64xf32> to vector<8x8xf32>
    %101 = vector.extract_strided_slice %24 {offsets = [0, 32], sizes = [8, 8], strides = [1, 1]} : vector<8x64xf32> to vector<8x8xf32>
    %102 = vector.extract_strided_slice %25 {offsets = [0, 32], sizes = [8, 8], strides = [1, 1]} : vector<8x64xf32> to vector<8x8xf32>
    %cst_47 = arith.constant dense<0.000000e+00> : vector<8x8xf32>
    %103 = tpu.matmul %100, %101, %cst_47 {dimension_numbers = #tpu.dot_dimension_numbers<[1], [1], [0], [0], [0, 0, 1, 0], [], []>} : vector<8x8xf32>, vector<8x8xf32>, vector<8x8xf32> -> vector<8x8xf32>
    %cst_48 = arith.constant dense<0xFF800000> : vector<8xf32>
    %104 = vector.multi_reduction <maximumf>, %103, %cst_48 [1] : vector<8x8xf32> to vector<8xf32>
    %105 = vector.shape_cast %104 : vector<8xf32> to vector<8x1xf32>
    %106 = vector.broadcast %105 : vector<8x1xf32> to vector<8x8xf32>
    %107 = arith.subf %103, %106 : vector<8x8xf32>
    %108 = math.exp %107 : vector<8x8xf32>
    %cst_49 = arith.constant dense<0.000000e+00> : vector<8xf32>
    %109 = vector.multi_reduction <add>, %108, %cst_49 [1] : vector<8x8xf32> to vector<8xf32>
    %110 = vector.shape_cast %109 : vector<8xf32> to vector<8x1xf32>
    %111 = tpu.reciprocal %110 {approx = true} : vector<8x1xf32> -> vector<8x1xf32>
    %112 = vector.broadcast %111 : vector<8x1xf32> to vector<8x8xf32>
    %113 = arith.mulf %108, %112 : vector<8x8xf32>
    %cst_50 = arith.constant dense<0.000000e+00> : vector<8x8xf32>
    %114 = tpu.matmul %113, %102, %cst_50 {dimension_numbers = #tpu.dot_dimension_numbers<[1], [0], [0], [1], [0, 0, 1, 1], [], []>} : vector<8x8xf32>, vector<8x8xf32>, vector<8x8xf32> -> vector<8x8xf32>
    %115 = vector.extract_strided_slice %26 {offsets = [32, 0], sizes = [8, 64], strides = [1, 1]} : vector<64x64xf32> to vector<8x64xf32>
    %cst_51 = arith.constant dense<0.000000e+00> : vector<8x64xf32>
    %116 = tpu.matmul %114, %115, %cst_51 {dimension_numbers = #tpu.dot_dimension_numbers<[1], [0], [0], [1], [0, 0, 1, 1], [], []>} : vector<8x8xf32>, vector<8x64xf32>, vector<8x64xf32> -> vector<8x64xf32>
    %117 = arith.addf %99, %116 : vector<8x64xf32>
    %118 = vector.extract_strided_slice %18 {offsets = [0, 40], sizes = [8, 8], strides = [1, 1]} : vector<8x64xf32> to vector<8x8xf32>
    %119 = vector.extract_strided_slice %24 {offsets = [0, 40], sizes = [8, 8], strides = [1, 1]} : vector<8x64xf32> to vector<8x8xf32>
    %120 = vector.extract_strided_slice %25 {offsets = [0, 40], sizes = [8, 8], strides = [1, 1]} : vector<8x64xf32> to vector<8x8xf32>
    %cst_52 = arith.constant dense<0.000000e+00> : vector<8x8xf32>
    %121 = tpu.matmul %118, %119, %cst_52 {dimension_numbers = #tpu.dot_dimension_numbers<[1], [1], [0], [0], [0, 0, 1, 0], [], []>} : vector<8x8xf32>, vector<8x8xf32>, vector<8x8xf32> -> vector<8x8xf32>
    %cst_53 = arith.constant dense<0xFF800000> : vector<8xf32>
    %122 = vector.multi_reduction <maximumf>, %121, %cst_53 [1] : vector<8x8xf32> to vector<8xf32>
    %123 = vector.shape_cast %122 : vector<8xf32> to vector<8x1xf32>
    %124 = vector.broadcast %123 : vector<8x1xf32> to vector<8x8xf32>
    %125 = arith.subf %121, %124 : vector<8x8xf32>
    %126 = math.exp %125 : vector<8x8xf32>
    %cst_54 = arith.constant dense<0.000000e+00> : vector<8xf32>
    %127 = vector.multi_reduction <add>, %126, %cst_54 [1] : vector<8x8xf32> to vector<8xf32>
    %128 = vector.shape_cast %127 : vector<8xf32> to vector<8x1xf32>
    %129 = tpu.reciprocal %128 {approx = true} : vector<8x1xf32> -> vector<8x1xf32>
    %130 = vector.broadcast %129 : vector<8x1xf32> to vector<8x8xf32>
    %131 = arith.mulf %126, %130 : vector<8x8xf32>
    %cst_55 = arith.constant dense<0.000000e+00> : vector<8x8xf32>
    %132 = tpu.matmul %131, %120, %cst_55 {dimension_numbers = #tpu.dot_dimension_numbers<[1], [0], [0], [1], [0, 0, 1, 1], [], []>} : vector<8x8xf32>, vector<8x8xf32>, vector<8x8xf32> -> vector<8x8xf32>
    %133 = vector.extract_strided_slice %26 {offsets = [40, 0], sizes = [8, 64], strides = [1, 1]} : vector<64x64xf32> to vector<8x64xf32>
    %cst_56 = arith.constant dense<0.000000e+00> : vector<8x64xf32>
    %134 = tpu.matmul %132, %133, %cst_56 {dimension_numbers = #tpu.dot_dimension_numbers<[1], [0], [0], [1], [0, 0, 1, 1], [], []>} : vector<8x8xf32>, vector<8x64xf32>, vector<8x64xf32> -> vector<8x64xf32>
    %135 = arith.addf %117, %134 : vector<8x64xf32>
    %136 = vector.extract_strided_slice %18 {offsets = [0, 48], sizes = [8, 8], strides = [1, 1]} : vector<8x64xf32> to vector<8x8xf32>
    %137 = vector.extract_strided_slice %24 {offsets = [0, 48], sizes = [8, 8], strides = [1, 1]} : vector<8x64xf32> to vector<8x8xf32>
    %138 = vector.extract_strided_slice %25 {offsets = [0, 48], sizes = [8, 8], strides = [1, 1]} : vector<8x64xf32> to vector<8x8xf32>
    %cst_57 = arith.constant dense<0.000000e+00> : vector<8x8xf32>
    %139 = tpu.matmul %136, %137, %cst_57 {dimension_numbers = #tpu.dot_dimension_numbers<[1], [1], [0], [0], [0, 0, 1, 0], [], []>} : vector<8x8xf32>, vector<8x8xf32>, vector<8x8xf32> -> vector<8x8xf32>
    %cst_58 = arith.constant dense<0xFF800000> : vector<8xf32>
    %140 = vector.multi_reduction <maximumf>, %139, %cst_58 [1] : vector<8x8xf32> to vector<8xf32>
    %141 = vector.shape_cast %140 : vector<8xf32> to vector<8x1xf32>
    %142 = vector.broadcast %141 : vector<8x1xf32> to vector<8x8xf32>
    %143 = arith.subf %139, %142 : vector<8x8xf32>
    %144 = math.exp %143 : vector<8x8xf32>
    %cst_59 = arith.constant dense<0.000000e+00> : vector<8xf32>
    %145 = vector.multi_reduction <add>, %144, %cst_59 [1] : vector<8x8xf32> to vector<8xf32>
    %146 = vector.shape_cast %145 : vector<8xf32> to vector<8x1xf32>
    %147 = tpu.reciprocal %146 {approx = true} : vector<8x1xf32> -> vector<8x1xf32>
    %148 = vector.broadcast %147 : vector<8x1xf32> to vector<8x8xf32>
    %149 = arith.mulf %144, %148 : vector<8x8xf32>
    %cst_60 = arith.constant dense<0.000000e+00> : vector<8x8xf32>
    %150 = tpu.matmul %149, %138, %cst_60 {dimension_numbers = #tpu.dot_dimension_numbers<[1], [0], [0], [1], [0, 0, 1, 1], [], []>} : vector<8x8xf32>, vector<8x8xf32>, vector<8x8xf32> -> vector<8x8xf32>
    %151 = vector.extract_strided_slice %26 {offsets = [48, 0], sizes = [8, 64], strides = [1, 1]} : vector<64x64xf32> to vector<8x64xf32>
    %cst_61 = arith.constant dense<0.000000e+00> : vector<8x64xf32>
    %152 = tpu.matmul %150, %151, %cst_61 {dimension_numbers = #tpu.dot_dimension_numbers<[1], [0], [0], [1], [0, 0, 1, 1], [], []>} : vector<8x8xf32>, vector<8x64xf32>, vector<8x64xf32> -> vector<8x64xf32>
    %153 = arith.addf %135, %152 : vector<8x64xf32>
    %154 = vector.extract_strided_slice %18 {offsets = [0, 56], sizes = [8, 8], strides = [1, 1]} : vector<8x64xf32> to vector<8x8xf32>
    %155 = vector.extract_strided_slice %24 {offsets = [0, 56], sizes = [8, 8], strides = [1, 1]} : vector<8x64xf32> to vector<8x8xf32>
    %156 = vector.extract_strided_slice %25 {offsets = [0, 56], sizes = [8, 8], strides = [1, 1]} : vector<8x64xf32> to vector<8x8xf32>
    %cst_62 = arith.constant dense<0.000000e+00> : vector<8x8xf32>
    %157 = tpu.matmul %154, %155, %cst_62 {dimension_numbers = #tpu.dot_dimension_numbers<[1], [1], [0], [0], [0, 0, 1, 0], [], []>} : vector<8x8xf32>, vector<8x8xf32>, vector<8x8xf32> -> vector<8x8xf32>
    %cst_63 = arith.constant dense<0xFF800000> : vector<8xf32>
    %158 = vector.multi_reduction <maximumf>, %157, %cst_63 [1] : vector<8x8xf32> to vector<8xf32>
    %159 = vector.shape_cast %158 : vector<8xf32> to vector<8x1xf32>
    %160 = vector.broadcast %159 : vector<8x1xf32> to vector<8x8xf32>
    %161 = arith.subf %157, %160 : vector<8x8xf32>
    %162 = math.exp %161 : vector<8x8xf32>
    %cst_64 = arith.constant dense<0.000000e+00> : vector<8xf32>
    %163 = vector.multi_reduction <add>, %162, %cst_64 [1] : vector<8x8xf32> to vector<8xf32>
    %164 = vector.shape_cast %163 : vector<8xf32> to vector<8x1xf32>
    %165 = tpu.reciprocal %164 {approx = true} : vector<8x1xf32> -> vector<8x1xf32>
    %166 = vector.broadcast %165 : vector<8x1xf32> to vector<8x8xf32>
    %167 = arith.mulf %162, %166 : vector<8x8xf32>
    %cst_65 = arith.constant dense<0.000000e+00> : vector<8x8xf32>
    %168 = tpu.matmul %167, %156, %cst_65 {dimension_numbers = #tpu.dot_dimension_numbers<[1], [0], [0], [1], [0, 0, 1, 1], [], []>} : vector<8x8xf32>, vector<8x8xf32>, vector<8x8xf32> -> vector<8x8xf32>
    %169 = vector.extract_strided_slice %26 {offsets = [56, 0], sizes = [8, 64], strides = [1, 1]} : vector<64x64xf32> to vector<8x64xf32>
    %cst_66 = arith.constant dense<0.000000e+00> : vector<8x64xf32>
    %170 = tpu.matmul %168, %169, %cst_66 {dimension_numbers = #tpu.dot_dimension_numbers<[1], [0], [0], [1], [0, 0, 1, 1], [], []>} : vector<8x8xf32>, vector<8x64xf32>, vector<8x64xf32> -> vector<8x64xf32>
    %171 = arith.addf %153, %170 : vector<8x64xf32>
    %c0_67 = arith.constant 0 : index
    %c0_68 = arith.constant 0 : index
    %172 = vector.load %arg10[%c0_67, %c0_68] : memref<1x64xf32, #tpu.memory_space<vmem>>, vector<1x64xf32>
    %173 = vector.broadcast %172 : vector<1x64xf32> to vector<8x64xf32>
    %174 = arith.addf %171, %173 : vector<8x64xf32>
    %175 = arith.addf %174, %2 : vector<8x64xf32>
    %c0_69 = arith.constant 0 : index
    %c0_70 = arith.constant 0 : index
    %176 = vector.load %arg11[%c0_69, %c0_70] : memref<64x10xf32, #tpu.memory_space<vmem>>, vector<64x10xf32>
    %cst_71 = arith.constant dense<0.000000e+00> : vector<8x10xf32>
    %177 = tpu.matmul %175, %176, %cst_71 {dimension_numbers = #tpu.dot_dimension_numbers<[1], [0], [0], [1], [0, 0, 1, 1], [], []>} : vector<8x64xf32>, vector<64x10xf32>, vector<8x10xf32> -> vector<8x10xf32>
    %c0_72 = arith.constant 0 : index
    %c0_73 = arith.constant 0 : index
    %178 = vector.load %arg12[%c0_72, %c0_73] : memref<1x10xf32, #tpu.memory_space<vmem>>, vector<1x10xf32>
    %179 = vector.broadcast %178 : vector<1x10xf32> to vector<8x10xf32>
    %180 = arith.addf %177, %179 : vector<8x10xf32>
    %c0_74 = arith.constant 0 : index
    %c0_75 = arith.constant 0 : index
    %181 = vector.load %arg13[%c0_74, %c0_75] : memref<8x10xf32, #tpu.memory_space<vmem>>, vector<8x10xf32>
    tpu.vector_store %arg13[%c0_74, %c0_75], %180 {strides = array<i32>} : memref<8x10xf32, #tpu.memory_space<vmem>>, vector<8x10xf32>,
    return
  }
}

</mosaic_0001>

<llo_original>
// kernel: model_forward.1
$region0: #{model_forward.1}
  #allocation0 [shape = 'u32[]', space=smem, size = 0x4, offset = 0x4, fixed_abs, tag = 'smem constant byte address 0x4 - core index']
  #allocation1 [shape = 'u32[144,128]{1,0:T(1,128)}', space=vmem, size = 0x12000, scoped, tag = 'internal scratch']
  %s0 = inlined_call_operand.vmem [shape: f32[8,768], index: 0, kind: input, shape index: {}]
  %s1 = inlined_call_operand.vmem [shape: f32[8,12,32], index: 1, kind: input, shape index: {}]
  %s2 = inlined_call_operand.vmem [shape: f32[768,64], index: 2, kind: input, shape index: {}]
  %s3 = inlined_call_operand.vmem [shape: f32[32,64], index: 3, kind: input, shape index: {}]
  %s4 = inlined_call_operand.vmem [shape: f32[1,64], index: 4, kind: input, shape index: {}]
  %s5 = inlined_call_operand.vmem [shape: f32[64,64], index: 5, kind: input, shape index: {}]
  %s6 = inlined_call_operand.vmem [shape: f32[1,64], index: 6, kind: input, shape index: {}]
  %s7 = inlined_call_operand.vmem [shape: f32[64,128], index: 7, kind: input, shape index: {}]
  %s8 = inlined_call_operand.vmem [shape: f32[1,128], index: 8, kind: input, shape index: {}]
  %s9 = inlined_call_operand.vmem [shape: f32[64,64], index: 9, kind: input, shape index: {}]
  %s10 = inlined_call_operand.vmem [shape: f32[1,64], index: 10, kind: input, shape index: {}]
  %s11 = inlined_call_operand.vmem [shape: f32[64,10], index: 11, kind: input, shape index: {}]
  %s12 = inlined_call_operand.vmem [shape: f32[1,10], index: 12, kind: input, shape index: {}]
  %s13 = inlined_call_operand.hbm [shape: f32[8,10], index: 13, kind: output, shape index: {}]
  %s14 = sld [smem:[#allocation0]]
  $region62: #{model_forward.1} parent=0
    _
  %s16 = ssub.s32 1, %s14
  %s17 = scalar_select 0, %s16, %s14
  $region1: #{model_forward.1} parent=0
    #allocation2 [shape = 'u8[4096]{0}', space=vmem, size = 0x1000, scoped, tag = 'output window, operand 0, single buffered']
    #allocation3 [shape = 's32[1]{0}', space=sflag, size = 0x4, scoped, tag = 'scoped memory for model_forward.1']
    %18 = vsyncpa [#allocation3], 0
    // Predicated region
    $region2: #{model_forward.1} parent=1 // pred_check
      _
    $region3: #{model_forward.1} parent=1 // pred_check_branch
      %20 = sbr.rel (0) target = $region5
    $region4: #{model_forward.1} parent=1 // pred_region
      _
    $region5: #{model_forward.1} parent=1 // pred_fallthru
      _
    // Predicated region
    $region6: #{model_forward.1} parent=1 // pred_check
      _
    $region7: #{model_forward.1} parent=1 // pred_check_branch
      %22 = sbr.rel (0) target = $region9
    $region8: #{model_forward.1} parent=1 // pred_region
      _
    $region9: #{model_forward.1} parent=1 // pred_fallthru
      _
    // Predicated region
    $region10: #{model_forward.1} parent=1 // pred_check
      _
    $region11: #{model_forward.1} parent=1 // pred_check_branch
      %24 = sbr.rel (0) target = $region13
    $region12: #{model_forward.1} parent=1 // pred_region
      _
    $region13: #{model_forward.1} parent=1 // pred_fallthru
      _
    // Predicated region
    $region14: #{model_forward.1} parent=1 // pred_check
      _
    $region15: #{model_forward.1} parent=1 // pred_check_branch
      %26 = sbr.rel (0) target = $region17
    $region16: #{model_forward.1} parent=1 // pred_region
      _
    $region17: #{model_forward.1} parent=1 // pred_fallthru
      _
    // Predicated region
    $region18: #{model_forward.1} parent=1 // pred_check
      _
    $region19: #{model_forward.1} parent=1 // pred_check_branch
      %28 = sbr.rel (0) target = $region21
    $region20: #{model_forward.1} parent=1 // pred_region
      _
    $region21: #{model_forward.1} parent=1 // pred_fallthru
      _
    // Predicated region
    $region22: #{model_forward.1} parent=1 // pred_check
      _
    $region23: #{model_forward.1} parent=1 // pred_check_branch
      %30 = sbr.rel (0) target = $region25
    $region24: #{model_forward.1} parent=1 // pred_region
      _
    $region25: #{model_forward.1} parent=1 // pred_fallthru
      _
    // Predicated region
    $region26: #{model_forward.1} parent=1 // pred_check
      _
    $region27: #{model_forward.1} parent=1 // pred_check_branch
      %32 = sbr.rel (0) target = $region29
    $region28: #{model_forward.1} parent=1 // pred_region
      _
    $region29: #{model_forward.1} parent=1 // pred_fallthru
      _
    // Predicated region
    $region30: #{model_forward.1} parent=1 // pred_check
      _
    $region31: #{model_forward.1} parent=1 // pred_check_branch
      %34 = sbr.rel (0) target = $region33
    $region32: #{model_forward.1} parent=1 // pred_region
      _
    $region33: #{model_forward.1} parent=1 // pred_fallthru
      _
    // Predicated region
    $region34: #{model_forward.1} parent=1 // pred_check
      _
    $region35: #{model_forward.1} parent=1 // pred_check_branch
      %36 = sbr.rel (0) target = $region37
    $region36: #{model_forward.1} parent=1 // pred_region
      _
    $region37: #{model_forward.1} parent=1 // pred_fallthru
      _
    // Predicated region
    $region38: #{model_forward.1} parent=1 // pred_check
      _
    $region39: #{model_forward.1} parent=1 // pred_check_branch
      %38 = sbr.rel (0) target = $region41
    $region40: #{model_forward.1} parent=1 // pred_region
      _
    $region41: #{model_forward.1} parent=1 // pred_fallthru
      _
    // Predicated region
    $region42: #{model_forward.1} parent=1 // pred_check
      _
    $region43: #{model_forward.1} parent=1 // pred_check_branch
      %40 = sbr.rel (0) target = $region45
    $region44: #{model_forward.1} parent=1 // pred_region
      _
    $region45: #{model_forward.1} parent=1 // pred_fallthru
      _
    // Predicated region
    $region46: #{model_forward.1} parent=1 // pred_check
      _
    $region47: #{model_forward.1} parent=1 // pred_check_branch
      %42 = sbr.rel (0) target = $region49
    $region48: #{model_forward.1} parent=1 // pred_region
      _
    $region49: #{model_forward.1} parent=1 // pred_fallthru
      _
    // Predicated region
    $region50: #{model_forward.1} parent=1 // pred_check
      _
    $region51: #{model_forward.1} parent=1 // pred_check_branch
      %44 = sbr.rel (0) target = $region53
    $region52: #{model_forward.1} parent=1 // pred_region
      _
    $region53: #{model_forward.1} parent=1 // pred_fallthru
      _
    %v45 = vld [vmem:[%s0] sm:$0xff]
    %v46 = vld [vmem:[%s0 + $0x8] sm:$0xff]
    %v47 = vld [vmem:[%s0 + $0x10] sm:$0xff]
    %v48 = vld [vmem:[%s0 + $0x18] sm:$0xff]
    %v49 = vld [vmem:[%s0 + $0x20] sm:$0xff]
    %v50 = vld [vmem:[%s0 + $0x28] sm:$0xff]
    %v51 = vld [vmem:[%s2] sm:$0xff]
    %v52 = vld [vmem:[%s2 + $0x8] sm:$0xff]
    %v53 = vld [vmem:[%s2 + $0x10] sm:$0xff]
    %v54 = vld [vmem:[%s2 + $0x18] sm:$0xff]
    %v55 = vld [vmem:[%s2 + $0x20] sm:$0xff]
    %v56 = vld [vmem:[%s2 + $0x28] sm:$0xff]
    %v57 = vld [vmem:[%s2 + $0x30] sm:$0xff]
    %v58 = vld [vmem:[%s2 + $0x38] sm:$0xff]
    %v59 = vld [vmem:[%s2 + $0x40] sm:$0xff]
    %v60 = vld [vmem:[%s2 + $0x48] sm:$0xff]
    %v61 = vld [vmem:[%s2 + $0x50] sm:$0xff]
    %v62 = vld [vmem:[%s2 + $0x58] sm:$0xff]
    %v63 = vld [vmem:[%s2 + $0x60] sm:$0xff]
    %v64 = vld [vmem:[%s2 + $0x68] sm:$0xff]
    %v65 = vld [vmem:[%s2 + $0x70] sm:$0xff]
    %v66 = vld [vmem:[%s2 + $0x78] sm:$0xff]
    %v67 = vld [vmem:[%s2 + $0x80] sm:$0xff]
    %v68 = vld [vmem:[%s2 + $0x88] sm:$0xff]
    %v69 = vld [vmem:[%s2 + $0x90] sm:$0xff]
    %v70 = vld [vmem:[%s2 + $0x98] sm:$0xff]
    %v71 = vld [vmem:[%s2 + $0xa0] sm:$0xff]
    %v72 = vld [vmem:[%s2 + $0xa8] sm:$0xff]
    %v73 = vld [vmem:[%s2 + $0xb0] sm:$0xff]
    %v74 = vld [vmem:[%s2 + $0xb8] sm:$0xff]
    %v75 = vld [vmem:[%s2 + $0xc0] sm:$0xff]
    %v76 = vld [vmem:[%s2 + $0xc8] sm:$0xff]
    %v77 = vld [vmem:[%s2 + $0xd0] sm:$0xff]
    %v78 = vld [vmem:[%s2 + $0xd8] sm:$0xff]
    %v79 = vld [vmem:[%s2 + $0xe0] sm:$0xff]
    %v80 = vld [vmem:[%s2 + $0xe8] sm:$0xff]
    %v81 = vld [vmem:[%s2 + $0xf0] sm:$0xff]
    %v82 = vld [vmem:[%s2 + $0xf8] sm:$0xff]
    %v83 = vld [vmem:[%s2 + $0x100] sm:$0xff]
    %v84 = vld [vmem:[%s2 + $0x108] sm:$0xff]
    %v85 = vld [vmem:[%s2 + $0x110] sm:$0xff]
    %v86 = vld [vmem:[%s2 + $0x118] sm:$0xff]
    %v87 = vld [vmem:[%s2 + $0x120] sm:$0xff]
    %v88 = vld [vmem:[%s2 + $0x128] sm:$0xff]
    %v89 = vld [vmem:[%s2 + $0x130] sm:$0xff]
    %v90 = vld [vmem:[%s2 + $0x138] sm:$0xff]
    %v91 = vld [vmem:[%s2 + $0x140] sm:$0xff]
    %v92 = vld [vmem:[%s2 + $0x148] sm:$0xff]
    %v93 = vld [vmem:[%s2 + $0x150] sm:$0xff]
    %v94 = vld [vmem:[%s2 + $0x158] sm:$0xff]
    %v95 = vld [vmem:[%s2 + $0x160] sm:$0xff]
    %v96 = vld [vmem:[%s2 + $0x168] sm:$0xff]
    %v97 = vld [vmem:[%s2 + $0x170] sm:$0xff]
    %v98 = vld [vmem:[%s2 + $0x178] sm:$0xff]
    %v99 = vld [vmem:[%s2 + $0x180] sm:$0xff]
    %v100 = vld [vmem:[%s2 + $0x188] sm:$0xff]
    %v101 = vld [vmem:[%s2 + $0x190] sm:$0xff]
    %v102 = vld [vmem:[%s2 + $0x198] sm:$0xff]
    %v103 = vld [vmem:[%s2 + $0x1a0] sm:$0xff]
    %v104 = vld [vmem:[%s2 + $0x1a8] sm:$0xff]
    %v105 = vld [vmem:[%s2 + $0x1b0] sm:$0xff]
    %v106 = vld [vmem:[%s2 + $0x1b8] sm:$0xff]
    %v107 = vld [vmem:[%s2 + $0x1c0] sm:$0xff]
    %v108 = vld [vmem:[%s2 + $0x1c8] sm:$0xff]
    %v109 = vld [vmem:[%s2 + $0x1d0] sm:$0xff]
    %v110 = vld [vmem:[%s2 + $0x1d8] sm:$0xff]
    %v111 = vld [vmem:[%s2 + $0x1e0] sm:$0xff]
    %v112 = vld [vmem:[%s2 + $0x1e8] sm:$0xff]
    %v113 = vld [vmem:[%s2 + $0x1f0] sm:$0xff]
    %v114 = vld [vmem:[%s2 + $0x1f8] sm:$0xff]
    %v115 = vld [vmem:[%s2 + $0x200] sm:$0xff]
    %v116 = vld [vmem:[%s2 + $0x208] sm:$0xff]
    %v117 = vld [vmem:[%s2 + $0x210] sm:$0xff]
    %v118 = vld [vmem:[%s2 + $0x218] sm:$0xff]
    %v119 = vld [vmem:[%s2 + $0x220] sm:$0xff]
    %v120 = vld [vmem:[%s2 + $0x228] sm:$0xff]
    %v121 = vld [vmem:[%s2 + $0x230] sm:$0xff]
    %v122 = vld [vmem:[%s2 + $0x238] sm:$0xff]
    %v123 = vld [vmem:[%s2 + $0x240] sm:$0xff]
    %v124 = vld [vmem:[%s2 + $0x248] sm:$0xff]
    %v125 = vld [vmem:[%s2 + $0x250] sm:$0xff]
    %v126 = vld [vmem:[%s2 + $0x258] sm:$0xff]
    %v127 = vld [vmem:[%s2 + $0x260] sm:$0xff]
    %v128 = vld [vmem:[%s2 + $0x268] sm:$0xff]
    %v129 = vld [vmem:[%s2 + $0x270] sm:$0xff]
    %v130 = vld [vmem:[%s2 + $0x278] sm:$0xff]
    %v131 = vld [vmem:[%s2 + $0x280] sm:$0xff]
    %v132 = vld [vmem:[%s2 + $0x288] sm:$0xff]
    %v133 = vld [vmem:[%s2 + $0x290] sm:$0xff]
    %v134 = vld [vmem:[%s2 + $0x298] sm:$0xff]
    %v135 = vld [vmem:[%s2 + $0x2a0] sm:$0xff]
    %v136 = vld [vmem:[%s2 + $0x2a8] sm:$0xff]
    %v137 = vld [vmem:[%s2 + $0x2b0] sm:$0xff]
    %v138 = vld [vmem:[%s2 + $0x2b8] sm:$0xff]
    %v139 = vld [vmem:[%s2 + $0x2c0] sm:$0xff]
    %v140 = vld [vmem:[%s2 + $0x2c8] sm:$0xff]
    %v141 = vld [vmem:[%s2 + $0x2d0] sm:$0xff]
    %v142 = vld [vmem:[%s2 + $0x2d8] sm:$0xff]
    %v143 = vld [vmem:[%s2 + $0x2e0] sm:$0xff]
    %v144 = vld [vmem:[%s2 + $0x2e8] sm:$0xff]
    %v145 = vld [vmem:[%s2 + $0x2f0] sm:$0xff]
    %v146 = vld [vmem:[%s2 + $0x2f8] sm:$0xff]
    %147 = vmatprep.subr.mxu0 0.0
    %148 = vmatpush1.msra.mxu0 %v51
    %149 = vmatprep.subr.mxu0 0.0
    %150 = vmatpush1.msra.mxu0 %v52
    %151 = vmatprep.subr.mxu0 0.0
    %152 = vmatpush1.msra.mxu0 %v53
    %153 = vmatprep.subr.mxu0 0.0
    %154 = vmatpush1.msra.mxu0 %v54
    %155 = vmatprep.subr.mxu0 0.0
    %156 = vmatpush1.msra.mxu0 %v55
    %157 = vmatprep.subr.mxu0 0.0
    %158 = vmatpush1.msra.mxu0 %v56
    %159 = vmatprep.subr.mxu0 0.0
    %160 = vmatpush1.msra.mxu0 %v57
    %161 = vmatprep.subr.mxu0 0.0
    %162 = vmatpush1.msra.mxu0 %v58
    %163 = vmatprep.subr.mxu0 0.0
    %164 = vmatpush1.msra.mxu0 %v59
    %165 = vmatprep.subr.mxu0 0.0
    %166 = vmatpush1.msra.mxu0 %v60
    %167 = vmatprep.subr.mxu0 0.0
    %168 = vmatpush1.msra.mxu0 %v61
    %169 = vmatprep.subr.mxu0 0.0
    %170 = vmatpush1.msra.mxu0 %v62
    %171 = vmatprep.subr.mxu0 0.0
    %172 = vmatpush1.msra.mxu0 %v63
    %173 = vmatprep.subr.mxu0 0.0
    %174 = vmatpush1.msra.mxu0 %v64
    %175 = vmatprep.subr.mxu0 0.0
    %176 = vmatpush1.msra.mxu0 %v65
    %177 = vmatprep.subr.mxu0 0.0
    %178 = vmatpush1.msra.mxu0 %v66
    %179 = vmatprep.subr.mxu0 0.0
    %180 = vmatpush1.msra.mxu0 %v67
    %181 = vmatprep.subr.mxu0 0.0
    %182 = vmatpush1.msra.mxu0 %v68
    %183 = vmatprep.subr.mxu0 0.0
    %184 = vmatpush1.msra.mxu0 %v69
    %185 = vmatprep.subr.mxu0 0.0
    %186 = vmatpush1.msra.mxu0 %v70
    %187 = vmatprep.subr.mxu0 0.0
    %188 = vmatpush1.msra.mxu0 %v71
    %189 = vmatprep.subr.mxu0 0.0
    %190 = vmatpush1.msra.mxu0 %v72
    %191 = vmatprep.subr.mxu0 0.0
    %192 = vmatpush1.msra.mxu0 %v73
    %193 = vmatprep.subr.mxu0 0.0
    %194 = vmatpush1.msra.mxu0 %v74
    %195 = vmatprep.subr.mxu0 0.0
    %196 = vmatpush1.msra.mxu0 %v75
    %197 = vmatprep.subr.mxu0 0.0
    %198 = vmatpush1.msra.mxu0 %v76
    %199 = vmatprep.subr.mxu0 0.0
    %200 = vmatpush1.msra.mxu0 %v77
    %201 = vmatprep.subr.mxu0 0.0
    %202 = vmatpush1.msra.mxu0 %v78
    %203 = vmatprep.subr.mxu0 0.0
    %204 = vmatpush1.msra.mxu0 %v79
    %205 = vmatprep.subr.mxu0 0.0
    %206 = vmatpush1.msra.mxu0 %v80
    %207 = vmatprep.subr.mxu0 0.0
    %208 = vmatpush1.msra.mxu0 %v81
    %209 = vmatprep.subr.mxu0 0.0
    %210 = vmatpush1.msra.mxu0 %v82
    %211 = vmatprep.mubr.f32.mxu0 %v46
    %212 = vmatmul.mubr.f32.gmra.mrb[0].mxu0 %v45
    %v213 = vpop.f32.mrb[0].mxu0
    %v214 = vadd.f32 0.0, %v213
    %v215 = vpop.f32.mrb[0].mxu0
    %216 = vdwg.mxu0
    %217 = vmatprep.subr.mxu0 0.0
    %218 = vmatpush1.msra.mxu0 %v83
    %219 = vmatprep.subr.mxu0 0.0
    %220 = vmatpush1.msra.mxu0 %v84
    %221 = vmatprep.subr.mxu0 0.0
    %222 = vmatpush1.msra.mxu0 %v85
    %223 = vmatprep.subr.mxu0 0.0
    %224 = vmatpush1.msra.mxu0 %v86
    %225 = vmatprep.subr.mxu0 0.0
    %226 = vmatpush1.msra.mxu0 %v87
    %227 = vmatprep.subr.mxu0 0.0
    %228 = vmatpush1.msra.mxu0 %v88
    %229 = vmatprep.subr.mxu0 0.0
    %230 = vmatpush1.msra.mxu0 %v89
    %231 = vmatprep.subr.mxu0 0.0
    %232 = vmatpush1.msra.mxu0 %v90
    %233 = vmatprep.subr.mxu0 0.0
    %234 = vmatpush1.msra.mxu0 %v91
    %235 = vmatprep.subr.mxu0 0.0
    %236 = vmatpush1.msra.mxu0 %v92
    %237 = vmatprep.subr.mxu0 0.0
    %238 = vmatpush1.msra.mxu0 %v93
    %239 = vmatprep.subr.mxu0 0.0
    %240 = vmatpush1.msra.mxu0 %v94
    %241 = vmatprep.subr.mxu0 0.0
    %242 = vmatpush1.msra.mxu0 %v95
    %243 = vmatprep.subr.mxu0 0.0
    %244 = vmatpush1.msra.mxu0 %v96
    %245 = vmatprep.subr.mxu0 0.0
    %246 = vmatpush1.msra.mxu0 %v97
    %247 = vmatprep.subr.mxu0 0.0
    %248 = vmatpush1.msra.mxu0 %v98
    %249 = vmatprep.subr.mxu0 0.0
    %250 = vmatpush1.msra.mxu0 %v99
    %251 = vmatprep.subr.mxu0 0.0
    %252 = vmatpush1.msra.mxu0 %v100
    %253 = vmatprep.subr.mxu0 0.0
    %254 = vmatpush1.msra.mxu0 %v101
    %255 = vmatprep.subr.mxu0 0.0
    %256 = vmatpush1.msra.mxu0 %v102
    %257 = vmatprep.subr.mxu0 0.0
    %258 = vmatpush1.msra.mxu0 %v103
    %259 = vmatprep.subr.mxu0 0.0
    %260 = vmatpush1.msra.mxu0 %v104
    %261 = vmatprep.subr.mxu0 0.0
    %262 = vmatpush1.msra.mxu0 %v105
    %263 = vmatprep.subr.mxu0 0.0
    %264 = vmatpush1.msra.mxu0 %v106
    %265 = vmatprep.subr.mxu0 0.0
    %266 = vmatpush1.msra.mxu0 %v107
    %267 = vmatprep.subr.mxu0 0.0
    %268 = vmatpush1.msra.mxu0 %v108
    %269 = vmatprep.subr.mxu0 0.0
    %270 = vmatpush1.msra.mxu0 %v109
    %271 = vmatprep.subr.mxu0 0.0
    %272 = vmatpush1.msra.mxu0 %v110
    %273 = vmatprep.subr.mxu0 0.0
    %274 = vmatpush1.msra.mxu0 %v111
    %275 = vmatprep.subr.mxu0 0.0
    %276 = vmatpush1.msra.mxu0 %v112
    %277 = vmatprep.subr.mxu0 0.0
    %278 = vmatpush1.msra.mxu0 %v113
    %279 = vmatprep.subr.mxu0 0.0
    %280 = vmatpush1.msra.mxu0 %v114
    %281 = vmatprep.mubr.f32.mxu0 %v48
    %282 = vmatmul.mubr.f32.gmra.mrb[0].mxu0 %v47
    %v283 = vpop.f32.mrb[0].mxu0
    %v284 = vadd.f32 %v214, %v283
    %v285 = vpop.f32.mrb[0].mxu0
    %286 = vdwg.mxu0
    %287 = vmatprep.subr.mxu0 0.0
    %288 = vmatpush1.msra.mxu0 %v115
    %289 = vmatprep.subr.mxu0 0.0
    %290 = vmatpush1.msra.mxu0 %v116
    %291 = vmatprep.subr.mxu0 0.0
    %292 = vmatpush1.msra.mxu0 %v117
    %293 = vmatprep.subr.mxu0 0.0
    %294 = vmatpush1.msra.mxu0 %v118
    %295 = vmatprep.subr.mxu0 0.0
    %296 = vmatpush1.msra.mxu0 %v119
    %297 = vmatprep.subr.mxu0 0.0
    %298 = vmatpush1.msra.mxu0 %v120
    %299 = vmatprep.subr.mxu0 0.0
    %300 = vmatpush1.msra.mxu0 %v121
    %301 = vmatprep.subr.mxu0 0.0
    %302 = vmatpush1.msra.mxu0 %v122
    %303 = vmatprep.subr.mxu0 0.0
    %304 = vmatpush1.msra.mxu0 %v123
    %305 = vmatprep.subr.mxu0 0.0
    %306 = vmatpush1.msra.mxu0 %v124
    %307 = vmatprep.subr.mxu0 0.0
    %308 = vmatpush1.msra.mxu0 %v125
    %309 = vmatprep.subr.mxu0 0.0
    %310 = vmatpush1.msra.mxu0 %v126
    %311 = vmatprep.subr.mxu0 0.0
    %312 = vmatpush1.msra.mxu0 %v127
    %313 = vmatprep.subr.mxu0 0.0
    %314 = vmatpush1.msra.mxu0 %v128
    %315 = vmatprep.subr.mxu0 0.0
    %316 = vmatpush1.msra.mxu0 %v129
    %317 = vmatprep.subr.mxu0 0.0
    %318 = vmatpush1.msra.mxu0 %v130
    %319 = vmatprep.subr.mxu0 0.0
    %320 = vmatpush1.msra.mxu0 %v131
    %321 = vmatprep.subr.mxu0 0.0
    %322 = vmatpush1.msra.mxu0 %v132
    %323 = vmatprep.subr.mxu0 0.0
    %324 = vmatpush1.msra.mxu0 %v133
    %325 = vmatprep.subr.mxu0 0.0
    %326 = vmatpush1.msra.mxu0 %v134
    %327 = vmatprep.subr.mxu0 0.0
    %328 = vmatpush1.msra.mxu0 %v135
    %329 = vmatprep.subr.mxu0 0.0
    %330 = vmatpush1.msra.mxu0 %v136
    %331 = vmatprep.subr.mxu0 0.0
    %332 = vmatpush1.msra.mxu0 %v137
    %333 = vmatprep.subr.mxu0 0.0
    %334 = vmatpush1.msra.mxu0 %v138
    %335 = vmatprep.subr.mxu0 0.0
    %336 = vmatpush1.msra.mxu0 %v139
    %337 = vmatprep.subr.mxu0 0.0
    %338 = vmatpush1.msra.mxu0 %v140
    %339 = vmatprep.subr.mxu0 0.0
    %340 = vmatpush1.msra.mxu0 %v141
    %341 = vmatprep.subr.mxu0 0.0
    %342 = vmatpush1.msra.mxu0 %v142
    %343 = vmatprep.subr.mxu0 0.0
    %344 = vmatpush1.msra.mxu0 %v143
    %345 = vmatprep.subr.mxu0 0.0
    %346 = vmatpush1.msra.mxu0 %v144
    %347 = vmatprep.subr.mxu0 0.0
    %348 = vmatpush1.msra.mxu0 %v145
    %349 = vmatprep.subr.mxu0 0.0
    %350 = vmatpush1.msra.mxu0 %v146
    %351 = vmatprep.mubr.f32.mxu0 %v50
    %352 = vmatmul.mubr.f32.gmra.mrb[0].mxu0 %v49
    %v353 = vpop.f32.mrb[0].mxu0
    %v354 = vadd.f32 %v284, %v353
    %v355 = vpop.f32.mrb[0].mxu0
    %356 = vdwg.mxu0
    %v357 = vld [vmem:[%s1] sm:$0xff]
    %v358 = vld [vmem:[%s1 + $0x8] sm:$0xf]
    %v359 = vld [vmem:[%s1 + $0x10] sm:$0xff]
    %v360 = vld [vmem:[%s1 + $0x18] sm:$0xf]
    %v361 = vld [vmem:[%s1 + $0x20] sm:$0xff]
    %v362 = vld [vmem:[%s1 + $0x28] sm:$0xf]
    %v363 = vld [vmem:[%s1 + $0x30] sm:$0xff]
    %v364 = vld [vmem:[%s1 + $0x38] sm:$0xf]
    %v365 = vld [vmem:[%s1 + $0x40] sm:$0xff]
    %v366 = vld [vmem:[%s1 + $0x48] sm:$0xf]
    %v367 = vld [vmem:[%s1 + $0x50] sm:$0xff]
    %v368 = vld [vmem:[%s1 + $0x58] sm:$0xf]
    %v369 = vld [vmem:[%s1 + $0x60] sm:$0xff]
    %v370 = vld [vmem:[%s1 + $0x68] sm:$0xf]
    %v371 = vld [vmem:[%s1 + $0x70] sm:$0xff]
    %v372 = vld [vmem:[%s1 + $0x78] sm:$0xf]
    %vm373 = vcmask 261120
    %v374 = vsel %vm373, %v357, 0.0
    %vm375 = vcmask 257024
    %v376 = vsel %vm375, %v358, 0.0
    %v377 = vadd.f32 %v374, %v376
    %v378 = vrot.slane %v377, 4
    %v379 = vadd.f32 %v377, %v378
    %v380 = vrot.slane %v379, 2
    %v381 = vadd.f32 %v379, %v380
    %v382 = vrot.slane %v381, 1
    %v383 = vadd.f32 %v381, %v382
    %v384 = vsel %vm373, %v359, 0.0
    %v385 = vsel %vm375, %v360, 0.0
    %v386 = vadd.f32 %v384, %v385
    %v387 = vrot.slane %v386, 4
    %v388 = vadd.f32 %v386, %v387
    %v389 = vrot.slane %v388, 2
    %v390 = vadd.f32 %v388, %v389
    %v391 = vrot.slane %v390, 1
    %v392 = vadd.f32 %v390, %v391
    %v393 = vsel %vm373, %v361, 0.0
    %v394 = vsel %vm375, %v362, 0.0
    %v395 = vadd.f32 %v393, %v394
    %v396 = vrot.slane %v395, 4
    %v397 = vadd.f32 %v395, %v396
    %v398 = vrot.slane %v397, 2
    %v399 = vadd.f32 %v397, %v398
    %v400 = vrot.slane %v399, 1
    %v401 = vadd.f32 %v399, %v400
    %v402 = vsel %vm373, %v363, 0.0
    %v403 = vsel %vm375, %v364, 0.0
    %v404 = vadd.f32 %v402, %v403
    %v405 = vrot.slane %v404, 4
    %v406 = vadd.f32 %v404, %v405
    %v407 = vrot.slane %v406, 2
    %v408 = vadd.f32 %v406, %v407
    %v409 = vrot.slane %v408, 1
    %v410 = vadd.f32 %v408, %v409
    %v411 = vsel %vm373, %v365, 0.0
    %v412 = vsel %vm375, %v366, 0.0
    %v413 = vadd.f32 %v411, %v412
    %v414 = vrot.slane %v413, 4
    %v415 = vadd.f32 %v413, %v414
    %v416 = vrot.slane %v415, 2
    %v417 = vadd.f32 %v415, %v416
    %v418 = vrot.slane %v417, 1
    %v419 = vadd.f32 %v417, %v418
    %v420 = vsel %vm373, %v367, 0.0
    %v421 = vsel %vm375, %v368, 0.0
    %v422 = vadd.f32 %v420, %v421
    %v423 = vrot.slane %v422, 4
    %v424 = vadd.f32 %v422, %v423
    %v425 = vrot.slane %v424, 2
    %v426 = vadd.f32 %v424, %v425
    %v427 = vrot.slane %v426, 1
    %v428 = vadd.f32 %v426, %v427
    %v429 = vsel %vm373, %v369, 0.0
    %v430 = vsel %vm375, %v370, 0.0
    %v431 = vadd.f32 %v429, %v430
    %v432 = vrot.slane %v431, 4
    %v433 = vadd.f32 %v431, %v432
    %v434 = vrot.slane %v433, 2
    %v435 = vadd.f32 %v433, %v434
    %v436 = vrot.slane %v435, 1
    %v437 = vadd.f32 %v435, %v436
    %v438 = vsel %vm373, %v371, 0.0
    %v439 = vsel %vm375, %v372, 0.0
    %v440 = vadd.f32 %v438, %v439
    %v441 = vrot.slane %v440, 4
    %v442 = vadd.f32 %v440, %v441
    %v443 = vrot.slane %v442, 2
    %v444 = vadd.f32 %v442, %v443
    %v445 = vrot.slane %v444, 1
    %v446 = vadd.f32 %v444, %v445
    %v447 = vmul.f32 %v383, 0.083333336
    %v448 = vmul.f32 %v392, 0.083333336
    %v449 = vmul.f32 %v401, 0.083333336
    %v450 = vmul.f32 %v410, 0.083333336
    %v451 = vmul.f32 %v419, 0.083333336
    %v452 = vmul.f32 %v428, 0.083333336
    %v453 = vmul.f32 %v437, 0.083333336
    %v454 = vmul.f32 %v446, 0.083333336
    %v455 = vld [vmem:[%s3] sm:$0xff]
    %v456 = vld [vmem:[%s3 + $0x8] sm:$0xff]
    %v457 = vld [vmem:[%s3 + $0x10] sm:$0xff]
    %v458 = vld [vmem:[%s3 + $0x18] sm:$0xff]
    %v459 = vld [vmem:[%s4] sm:$0x1]
    %v461 = vlaneseq
    %v462 = vshrl.u32 %v461, 7
    %v463 = vsub.s32 0, %v462
    %v464 = vrot.slane %v459, %v463
    %vm474 = vcmask 1041409
    %v475 = vsel %vm474, %v448, %v447
    %vm476 = vcmask 1042434
    %v477 = vsel %vm476, %v449, %v475
    %vm478 = vcmask 1043459
    %v479 = vsel %vm478, %v450, %v477
    %vm480 = vcmask 1044484
    %v481 = vsel %vm480, %v451, %v479
    %vm482 = vcmask 1045509
    %v483 = vsel %vm482, %v452, %v481
    %vm484 = vcmask 1046534
    %v485 = vsel %vm484, %v453, %v483
    %vm486 = vcmask 1047559
    %v487 = vsel %vm486, %v454, %v485
    %v488 = vsel %vm373, %v487, 0
    %490 = vmatprep.subr.mxu0 0.0
    %491 = vmatpush1.msra.mxu0 %v455
    %492 = vmatprep.subr.mxu0 0.0
    %493 = vmatpush1.msra.mxu0 %v456
    %494 = vmatprep.subr.mxu0 0.0
    %495 = vmatpush1.msra.mxu0 %v457
    %496 = vmatprep.subr.mxu0 0.0
    %497 = vmatpush1.msra.mxu0 %v458
    %498 = vmatprep.subr.mxu0 0.0
    %499 = vmatpush1.msra.mxu0 0.0
    %500 = vmatprep.subr.mxu0 0.0
    %501 = vmatpush1.msra.mxu0 0.0
    %502 = vmatprep.subr.mxu0 0.0
    %503 = vmatpush1.msra.mxu0 0.0
    %504 = vmatprep.subr.mxu0 0.0
    %505 = vmatpush1.msra.mxu0 0.0
    %506 = vmatprep.subr.mxu0 0.0
    %507 = vmatpush1.msra.mxu0 0.0
    %508 = vmatprep.subr.mxu0 0.0
    %509 = vmatpush1.msra.mxu0 0.0
    %510 = vmatprep.subr.mxu0 0.0
    %511 = vmatpush1.msra.mxu0 0.0
    %512 = vmatprep.subr.mxu0 0.0
    %513 = vmatpush1.msra.mxu0 0.0
    %514 = vmatprep.subr.mxu0 0.0
    %515 = vmatpush1.msra.mxu0 0.0
    %516 = vmatprep.subr.mxu0 0.0
    %517 = vmatpush1.msra.mxu0 0.0
    %518 = vmatprep.subr.mxu0 0.0
    %519 = vmatpush1.msra.mxu0 0.0
    %520 = vmatprep.subr.mxu0 0.0
    %521 = vmatpush1.msra.mxu0 0.0
    %522 = vmatprep.subr.mxu0 0.0
    %523 = vmatpush1.msra.mxu0 0.0
    %524 = vmatprep.subr.mxu0 0.0
    %525 = vmatpush1.msra.mxu0 0.0
    %526 = vmatprep.subr.mxu0 0.0
    %527 = vmatpush1.msra.mxu0 0.0
    %528 = vmatprep.subr.mxu0 0.0
    %529 = vmatpush1.msra.mxu0 0.0
    %530 = vmatprep.subr.mxu0 0.0
    %531 = vmatpush1.msra.mxu0 0.0
    %532 = vmatprep.subr.mxu0 0.0
    %533 = vmatpush1.msra.mxu0 0.0
    %534 = vmatprep.subr.mxu0 0.0
    %535 = vmatpush1.msra.mxu0 0.0
    %536 = vmatprep.subr.mxu0 0.0
    %537 = vmatpush1.msra.mxu0 0.0
    %538 = vmatprep.subr.mxu0 0.0
    %539 = vmatpush1.msra.mxu0 0.0
    %540 = vmatprep.subr.mxu0 0.0
    %541 = vmatpush1.msra.mxu0 0.0
    %542 = vmatprep.subr.mxu0 0.0
    %543 = vmatpush1.msra.mxu0 0.0
    %544 = vmatprep.subr.mxu0 0.0
    %545 = vmatpush1.msra.mxu0 0.0
    %546 = vmatprep.subr.mxu0 0.0
    %547 = vmatpush1.msra.mxu0 0.0
    %548 = vmatprep.subr.mxu0 0.0
    %549 = vmatpush1.msra.mxu0 0.0
    %550 = vmatprep.subr.mxu0 0.0
    %551 = vmatpush1.msra.mxu0 0.0
    %552 = vmatprep.subr.mxu0 0.0
    %553 = vmatpush1.msra.mxu0 0.0
    %554 = vmatprep.mubr.f32.mxu0 0.0
    %555 = vmatmul.mubr.f32.gmra.mrb[0].mxu0 %v488
    %v556 = vpop.f32.mrb[0].mxu0
    %v557 = vadd.f32 %v464, %v556
    %v558 = vpop.f32.mrb[0].mxu0
    %559 = vdwg.mxu0
    %v560 = vld [vmem:[%s5] sm:$0xff]
    %v561 = vld [vmem:[%s5 + $0x8] sm:$0xff]
    %v562 = vld [vmem:[%s5 + $0x10] sm:$0xff]
    %v563 = vld [vmem:[%s5 + $0x18] sm:$0xff]
    %v564 = vld [vmem:[%s5 + $0x20] sm:$0xff]
    %v565 = vld [vmem:[%s5 + $0x28] sm:$0xff]
    %v566 = vld [vmem:[%s5 + $0x30] sm:$0xff]
    %v567 = vld [vmem:[%s5 + $0x38] sm:$0xff]
    %v568 = vld [vmem:[%s6] sm:$0x1]
    %v570 = vlaneseq
    %v571 = vshrl.u32 %v570, 7
    %v572 = vsub.s32 0, %v571
    %v573 = vrot.slane %v568, %v572
    %vm575 = vcmask 523264
    %v577 = vsel %vm575, %v557, 0
    %579 = vmatprep.subr.mxu0 0.0
    %580 = vmatpush1.msra.mxu0 %v560
    %581 = vmatprep.subr.mxu0 0.0
    %582 = vmatpush1.msra.mxu0 %v561
    %583 = vmatprep.subr.mxu0 0.0
    %584 = vmatpush1.msra.mxu0 %v562
    %585 = vmatprep.subr.mxu0 0.0
    %586 = vmatpush1.msra.mxu0 %v563
    %587 = vmatprep.subr.mxu0 0.0
    %588 = vmatpush1.msra.mxu0 %v564
    %589 = vmatprep.subr.mxu0 0.0
    %590 = vmatpush1.msra.mxu0 %v565
    %591 = vmatprep.subr.mxu0 0.0
    %592 = vmatpush1.msra.mxu0 %v566
    %593 = vmatprep.subr.mxu0 0.0
    %594 = vmatpush1.msra.mxu0 %v567
    %595 = vmatprep.subr.mxu0 0.0
    %596 = vmatpush1.msra.mxu0 0.0
    %597 = vmatprep.subr.mxu0 0.0
    %598 = vmatpush1.msra.mxu0 0.0
    %599 = vmatprep.subr.mxu0 0.0
    %600 = vmatpush1.msra.mxu0 0.0
    %601 = vmatprep.subr.mxu0 0.0
    %602 = vmatpush1.msra.mxu0 0.0
    %603 = vmatprep.subr.mxu0 0.0
    %604 = vmatpush1.msra.mxu0 0.0
    %605 = vmatprep.subr.mxu0 0.0
    %606 = vmatpush1.msra.mxu0 0.0
    %607 = vmatprep.subr.mxu0 0.0
    %608 = vmatpush1.msra.mxu0 0.0
    %609 = vmatprep.subr.mxu0 0.0
    %610 = vmatpush1.msra.mxu0 0.0
    %611 = vmatprep.subr.mxu0 0.0
    %612 = vmatpush1.msra.mxu0 0.0
    %613 = vmatprep.subr.mxu0 0.0
    %614 = vmatpush1.msra.mxu0 0.0
    %615 = vmatprep.subr.mxu0 0.0
    %616 = vmatpush1.msra.mxu0 0.0
    %617 = vmatprep.subr.mxu0 0.0
    %618 = vmatpush1.msra.mxu0 0.0
    %619 = vmatprep.subr.mxu0 0.0
    %620 = vmatpush1.msra.mxu0 0.0
    %621 = vmatprep.subr.mxu0 0.0
    %622 = vmatpush1.msra.mxu0 0.0
    %623 = vmatprep.subr.mxu0 0.0
    %624 = vmatpush1.msra.mxu0 0.0
    %625 = vmatprep.subr.mxu0 0.0
    %626 = vmatpush1.msra.mxu0 0.0
    %627 = vmatprep.subr.mxu0 0.0
    %628 = vmatpush1.msra.mxu0 0.0
    %629 = vmatprep.subr.mxu0 0.0
    %630 = vmatpush1.msra.mxu0 0.0
    %631 = vmatprep.subr.mxu0 0.0
    %632 = vmatpush1.msra.mxu0 0.0
    %633 = vmatprep.subr.mxu0 0.0
    %634 = vmatpush1.msra.mxu0 0.0
    %635 = vmatprep.subr.mxu0 0.0
    %636 = vmatpush1.msra.mxu0 0.0
    %637 = vmatprep.subr.mxu0 0.0
    %638 = vmatpush1.msra.mxu0 0.0
    %639 = vmatprep.subr.mxu0 0.0
    %640 = vmatpush1.msra.mxu0 0.0
    %641 = vmatprep.subr.mxu0 0.0
    %642 = vmatpush1.msra.mxu0 0.0
    %643 = vmatprep.mubr.f32.mxu0 0.0
    %644 = vmatmul.mubr.f32.gmra.mrb[0].mxu0 %v577
    %v645 = vpop.f32.mrb[0].mxu0
    %v646 = vadd.f32 %v573, %v645
    %v647 = vpop.f32.mrb[0].mxu0
    %648 = vdwg.mxu0
    %v649 = vmul.f32 %v646, 0.35355338
    %v650 = vld [vmem:[%s7] sm:$0xff]
    %v651 = vld [vmem:[%s7 + $0x8] sm:$0xff]
    %v652 = vld [vmem:[%s7 + $0x10] sm:$0xff]
    %v653 = vld [vmem:[%s7 + $0x18] sm:$0xff]
    %v654 = vld [vmem:[%s7 + $0x20] sm:$0xff]
    %v655 = vld [vmem:[%s7 + $0x28] sm:$0xff]
    %v656 = vld [vmem:[%s7 + $0x30] sm:$0xff]
    %v657 = vld [vmem:[%s7 + $0x38] sm:$0xff]
    %v658 = vld [vmem:[%s8] sm:$0x1]
    %v660 = vlaneseq
    %v661 = vshrl.u32 %v660, 7
    %v662 = vsub.s32 0, %v661
    %v663 = vrot.slane %v658, %v662
    %v666 = vsel %vm575, %v354, 0
    %668 = vmatprep.subr.mxu0 0.0
    %669 = vmatpush1.msra.mxu0 %v650
    %670 = vmatprep.subr.mxu0 0.0
    %671 = vmatpush1.msra.mxu0 %v651
    %672 = vmatprep.subr.mxu0 0.0
    %673 = vmatpush1.msra.mxu0 %v652
    %674 = vmatprep.subr.mxu0 0.0
    %675 = vmatpush1.msra.mxu0 %v653
    %676 = vmatprep.subr.mxu0 0.0
    %677 = vmatpush1.msra.mxu0 %v654
    %678 = vmatprep.subr.mxu0 0.0
    %679 = vmatpush1.msra.mxu0 %v655
    %680 = vmatprep.subr.mxu0 0.0
    %681 = vmatpush1.msra.mxu0 %v656
    %682 = vmatprep.subr.mxu0 0.0
    %683 = vmatpush1.msra.mxu0 %v657
    %684 = vmatprep.subr.mxu0 0.0
    %685 = vmatpush1.msra.mxu0 0.0
    %686 = vmatprep.subr.mxu0 0.0
    %687 = vmatpush1.msra.mxu0 0.0
    %688 = vmatprep.subr.mxu0 0.0
    %689 = vmatpush1.msra.mxu0 0.0
    %690 = vmatprep.subr.mxu0 0.0
    %691 = vmatpush1.msra.mxu0 0.0
    %692 = vmatprep.subr.mxu0 0.0
    %693 = vmatpush1.msra.mxu0 0.0
    %694 = vmatprep.subr.mxu0 0.0
    %695 = vmatpush1.msra.mxu0 0.0
    %696 = vmatprep.subr.mxu0 0.0
    %697 = vmatpush1.msra.mxu0 0.0
    %698 = vmatprep.subr.mxu0 0.0
    %699 = vmatpush1.msra.mxu0 0.0
    %700 = vmatprep.subr.mxu0 0.0
    %701 = vmatpush1.msra.mxu0 0.0
    %702 = vmatprep.subr.mxu0 0.0
    %703 = vmatpush1.msra.mxu0 0.0
    %704 = vmatprep.subr.mxu0 0.0
    %705 = vmatpush1.msra.mxu0 0.0
    %706 = vmatprep.subr.mxu0 0.0
    %707 = vmatpush1.msra.mxu0 0.0
    %708 = vmatprep.subr.mxu0 0.0
    %709 = vmatpush1.msra.mxu0 0.0
    %710 = vmatprep.subr.mxu0 0.0
    %711 = vmatpush1.msra.mxu0 0.0
    %712 = vmatprep.subr.mxu0 0.0
    %713 = vmatpush1.msra.mxu0 0.0
    %714 = vmatprep.subr.mxu0 0.0
    %715 = vmatpush1.msra.mxu0 0.0
    %716 = vmatprep.subr.mxu0 0.0
    %717 = vmatpush1.msra.mxu0 0.0
    %718 = vmatprep.subr.mxu0 0.0
    %719 = vmatpush1.msra.mxu0 0.0
    %720 = vmatprep.subr.mxu0 0.0
    %721 = vmatpush1.msra.mxu0 0.0
    %722 = vmatprep.subr.mxu0 0.0
    %723 = vmatpush1.msra.mxu0 0.0
    %724 = vmatprep.subr.mxu0 0.0
    %725 = vmatpush1.msra.mxu0 0.0
    %726 = vmatprep.subr.mxu0 0.0
    %727 = vmatpush1.msra.mxu0 0.0
    %728 = vmatprep.subr.mxu0 0.0
    %729 = vmatpush1.msra.mxu0 0.0
    %730 = vmatprep.subr.mxu0 0.0
    %731 = vmatpush1.msra.mxu0 0.0
    %732 = vmatprep.mubr.f32.mxu0 0.0
    %733 = vmatmul.mubr.f32.gmra.mrb[0].mxu0 %v666
    %v734 = vpop.f32.mrb[0].mxu0
    %v735 = vadd.f32 %v663, %v734
    %v736 = vpop.f32.mrb[0].mxu0
    %737 = vdwg.mxu0
    %v738 = vld [vmem:[%s9] sm:$0xff]
    %v739 = vld [vmem:[%s9 + $0x8] sm:$0xff]
    %v740 = vld [vmem:[%s9 + $0x10] sm:$0xff]
    %v741 = vld [vmem:[%s9 + $0x18] sm:$0xff]
    %v742 = vld [vmem:[%s9 + $0x20] sm:$0xff]
    %v743 = vld [vmem:[%s9 + $0x28] sm:$0xff]
    %v744 = vld [vmem:[%s9 + $0x30] sm:$0xff]
    %v745 = vld [vmem:[%s9 + $0x38] sm:$0xff]
    %vm746 = vcmask 64512
    %v748 = vsel %vm746, %v649, 0
    %v751 = vsel %vm746, %v735, 0
    %753 = vmatprep.subr.mxu0 0.0
    %754 = vmatpush1.xpose.msra.mxu0 %v751
    %755 = vmatprep.subr.mxu0 0.0
    %756 = vmatpush1.xpose.msra.mxu0 0.0
    %757 = vmatprep.subr.mxu0 0.0
    %758 = vmatpush1.xpose.msra.mxu0 0.0
    %759 = vmatprep.subr.mxu0 0.0
    %760 = vmatpush1.xpose.msra.mxu0 0.0
    %761 = vmatprep.subr.mxu0 0.0
    %762 = vmatpush1.xpose.msra.mxu0 0.0
    %763 = vmatprep.subr.mxu0 0.0
    %764 = vmatpush1.xpose.msra.mxu0 0.0
    %765 = vmatprep.subr.mxu0 0.0
    %766 = vmatpush1.xpose.msra.mxu0 0.0
    %767 = vmatprep.subr.mxu0 0.0
    %768 = vmatpush1.xpose.msra.mxu0 0.0
    %769 = vmatprep.subr.mxu0 0.0
    %770 = vmatpush1.xpose.msra.mxu0 0.0
    %771 = vmatprep.subr.mxu0 0.0
    %772 = vmatpush1.xpose.msra.mxu0 0.0
    %773 = vmatprep.subr.mxu0 0.0
    %774 = vmatpush1.xpose.msra.mxu0 0.0
    %775 = vmatprep.subr.mxu0 0.0
    %776 = vmatpush1.xpose.msra.mxu0 0.0
    %777 = vmatprep.subr.mxu0 0.0
    %778 = vmatpush1.xpose.msra.mxu0 0.0
    %779 = vmatprep.subr.mxu0 0.0
    %780 = vmatpush1.xpose.msra.mxu0 0.0
    %781 = vmatprep.subr.mxu0 0.0
    %782 = vmatpush1.xpose.msra.mxu0 0.0
    %783 = vmatprep.subr.mxu0 0.0
    %784 = vmatpush1.xpose.msra.mxu0 0.0
    %785 = vmatprep.subr.mxu0 0.0
    %786 = vmatpush1.xpose.msra.mxu0 0.0
    %787 = vmatprep.subr.mxu0 0.0
    %788 = vmatpush1.xpose.msra.mxu0 0.0
    %789 = vmatprep.subr.mxu0 0.0
    %790 = vmatpush1.xpose.msra.mxu0 0.0
    %791 = vmatprep.subr.mxu0 0.0
    %792 = vmatpush1.xpose.msra.mxu0 0.0
    %793 = vmatprep.subr.mxu0 0.0
    %794 = vmatpush1.xpose.msra.mxu0 0.0
    %795 = vmatprep.subr.mxu0 0.0
    %796 = vmatpush1.xpose.msra.mxu0 0.0
    %797 = vmatprep.subr.mxu0 0.0
    %798 = vmatpush1.xpose.msra.mxu0 0.0
    %799 = vmatprep.subr.mxu0 0.0
    %800 = vmatpush1.xpose.msra.mxu0 0.0
    %801 = vmatprep.subr.mxu0 0.0
    %802 = vmatpush1.xpose.msra.mxu0 0.0
    %803 = vmatprep.subr.mxu0 0.0
    %804 = vmatpush1.xpose.msra.mxu0 0.0
    %805 = vmatprep.subr.mxu0 0.0
    %806 = vmatpush1.xpose.msra.mxu0 0.0
    %807 = vmatprep.subr.mxu0 0.0
    %808 = vmatpush1.xpose.msra.mxu0 0.0
    %809 = vmatprep.subr.mxu0 0.0
    %810 = vmatpush1.xpose.msra.mxu0 0.0
    %811 = vmatprep.subr.mxu0 0.0
    %812 = vmatpush1.xpose.msra.mxu0 0.0
    %813 = vmatprep.subr.mxu0 0.0
    %814 = vmatpush1.xpose.msra.mxu0 0.0
    %815 = vmatprep.subr.mxu0 0.0
    %816 = vmatpush1.xpose.msra.mxu0 0.0
    %817 = vmatprep.mubr.f32.mxu0 0.0
    %818 = vmatmul.mubr.f32.gmra.mrb[0].mxu0 %v748
    %v819 = vpop.f32.mrb[0].mxu0
    %v820 = vadd.f32 0.0, %v819
    %v821 = vpop.f32.mrb[0].mxu0
    %822 = vdwg.mxu0
    %v823 = vsel %vm746, %v820, -inf
    %824 = vmax.xlane.f32.xlu0 %v823
    %v825 = vpop.xlane.xlu0 %824
    %v826 = vsub.f32 %v820, %v825
    %v827 = vmul.f32 %v826, 1.442695
    %v828 = vpow.pop %v827
    %v829 = vsel %vm746, %v828, 0.0
    %830 = vadd.xlane.f32.xlu0 %v829
    %v831 = vpop.xlane.xlu0 %830
    %v832 = vrcp.pop %v831
    %v833 = vmul.f32 %v828, %v832
    %834 = vrot.lane.b32.xlu0 %v735, 64
    %v835 = vpop.permute.xlu0 %834
    %v838 = vsel %vm746, %v833, 0
    %840 = vmatprep.subr.mxu0 0.0
    %841 = vmatpush1.msra.mxu0 %v835
    %842 = vmatprep.subr.mxu0 0.0
    %843 = vmatpush1.msra.mxu0 0.0
    %844 = vmatprep.subr.mxu0 0.0
    %845 = vmatpush1.msra.mxu0 0.0
    %846 = vmatprep.subr.mxu0 0.0
    %847 = vmatpush1.msra.mxu0 0.0
    %848 = vmatprep.subr.mxu0 0.0
    %849 = vmatpush1.msra.mxu0 0.0
    %850 = vmatprep.subr.mxu0 0.0
    %851 = vmatpush1.msra.mxu0 0.0
    %852 = vmatprep.subr.mxu0 0.0
    %853 = vmatpush1.msra.mxu0 0.0
    %854 = vmatprep.subr.mxu0 0.0
    %855 = vmatpush1.msra.mxu0 0.0
    %856 = vmatprep.subr.mxu0 0.0
    %857 = vmatpush1.msra.mxu0 0.0
    %858 = vmatprep.subr.mxu0 0.0
    %859 = vmatpush1.msra.mxu0 0.0
    %860 = vmatprep.subr.mxu0 0.0
    %861 = vmatpush1.msra.mxu0 0.0
    %862 = vmatprep.subr.mxu0 0.0
    %863 = vmatpush1.msra.mxu0 0.0
    %864 = vmatprep.subr.mxu0 0.0
    %865 = vmatpush1.msra.mxu0 0.0
    %866 = vmatprep.subr.mxu0 0.0
    %867 = vmatpush1.msra.mxu0 0.0
    %868 = vmatprep.subr.mxu0 0.0
    %869 = vmatpush1.msra.mxu0 0.0
    %870 = vmatprep.subr.mxu0 0.0
    %871 = vmatpush1.msra.mxu0 0.0
    %872 = vmatprep.subr.mxu0 0.0
    %873 = vmatpush1.msra.mxu0 0.0
    %874 = vmatprep.subr.mxu0 0.0
    %875 = vmatpush1.msra.mxu0 0.0
    %876 = vmatprep.subr.mxu0 0.0
    %877 = vmatpush1.msra.mxu0 0.0
    %878 = vmatprep.subr.mxu0 0.0
    %879 = vmatpush1.msra.mxu0 0.0
    %880 = vmatprep.subr.mxu0 0.0
    %881 = vmatpush1.msra.mxu0 0.0
    %882 = vmatprep.subr.mxu0 0.0
    %883 = vmatpush1.msra.mxu0 0.0
    %884 = vmatprep.subr.mxu0 0.0
    %885 = vmatpush1.msra.mxu0 0.0
    %886 = vmatprep.subr.mxu0 0.0
    %887 = vmatpush1.msra.mxu0 0.0
    %888 = vmatprep.subr.mxu0 0.0
    %889 = vmatpush1.msra.mxu0 0.0
    %890 = vmatprep.subr.mxu0 0.0
    %891 = vmatpush1.msra.mxu0 0.0
    %892 = vmatprep.subr.mxu0 0.0
    %893 = vmatpush1.msra.mxu0 0.0
    %894 = vmatprep.subr.mxu0 0.0
    %895 = vmatpush1.msra.mxu0 0.0
    %896 = vmatprep.subr.mxu0 0.0
    %897 = vmatpush1.msra.mxu0 0.0
    %898 = vmatprep.subr.mxu0 0.0
    %899 = vmatpush1.msra.mxu0 0.0
    %900 = vmatprep.subr.mxu0 0.0
    %901 = vmatpush1.msra.mxu0 0.0
    %902 = vmatprep.subr.mxu0 0.0
    %903 = vmatpush1.msra.mxu0 0.0
    %904 = vmatprep.mubr.f32.mxu0 0.0
    %905 = vmatmul.mubr.f32.gmra.mrb[0].mxu0 %v838
    %v906 = vpop.f32.mrb[0].mxu0
    %v907 = vadd.f32 0.0, %v906
    %v908 = vpop.f32.mrb[0].mxu0
    %909 = vdwg.mxu0
    %910 = vrot.lane.b32.xlu0 %v649, 120
    %v911 = vpop.permute.xlu0 %910
    %912 = vrot.lane.b32.xlu0 %v735, 120
    %v913 = vpop.permute.xlu0 %912
    %v914 = vsel %vm746, %v911, 0
    %v916 = vsel %vm746, %v913, 0
    %918 = vmatprep.subr.mxu0 0.0
    %919 = vmatpush1.xpose.msra.mxu0 %v916
    %920 = vmatprep.subr.mxu0 0.0
    %921 = vmatpush1.xpose.msra.mxu0 0.0
    %922 = vmatprep.subr.mxu0 0.0
    %923 = vmatpush1.xpose.msra.mxu0 0.0
    %924 = vmatprep.subr.mxu0 0.0
    %925 = vmatpush1.xpose.msra.mxu0 0.0
    %926 = vmatprep.subr.mxu0 0.0
    %927 = vmatpush1.xpose.msra.mxu0 0.0
    %928 = vmatprep.subr.mxu0 0.0
    %929 = vmatpush1.xpose.msra.mxu0 0.0
    %930 = vmatprep.subr.mxu0 0.0
    %931 = vmatpush1.xpose.msra.mxu0 0.0
    %932 = vmatprep.subr.mxu0 0.0
    %933 = vmatpush1.xpose.msra.mxu0 0.0
    %934 = vmatprep.subr.mxu0 0.0
    %935 = vmatpush1.xpose.msra.mxu0 0.0
    %936 = vmatprep.subr.mxu0 0.0
    %937 = vmatpush1.xpose.msra.mxu0 0.0
    %938 = vmatprep.subr.mxu0 0.0
    %939 = vmatpush1.xpose.msra.mxu0 0.0
    %940 = vmatprep.subr.mxu0 0.0
    %941 = vmatpush1.xpose.msra.mxu0 0.0
    %942 = vmatprep.subr.mxu0 0.0
    %943 = vmatpush1.xpose.msra.mxu0 0.0
    %944 = vmatprep.subr.mxu0 0.0
    %945 = vmatpush1.xpose.msra.mxu0 0.0
    %946 = vmatprep.subr.mxu0 0.0
    %947 = vmatpush1.xpose.msra.mxu0 0.0
    %948 = vmatprep.subr.mxu0 0.0
    %949 = vmatpush1.xpose.msra.mxu0 0.0
    %950 = vmatprep.subr.mxu0 0.0
    %951 = vmatpush1.xpose.msra.mxu0 0.0
    %952 = vmatprep.subr.mxu0 0.0
    %953 = vmatpush1.xpose.msra.mxu0 0.0
    %954 = vmatprep.subr.mxu0 0.0
    %955 = vmatpush1.xpose.msra.mxu0 0.0
    %956 = vmatprep.subr.mxu0 0.0
    %957 = vmatpush1.xpose.msra.mxu0 0.0
    %958 = vmatprep.subr.mxu0 0.0
    %959 = vmatpush1.xpose.msra.mxu0 0.0
    %960 = vmatprep.subr.mxu0 0.0
    %961 = vmatpush1.xpose.msra.mxu0 0.0
    %962 = vmatprep.subr.mxu0 0.0
    %963 = vmatpush1.xpose.msra.mxu0 0.0
    %964 = vmatprep.subr.mxu0 0.0
    %965 = vmatpush1.xpose.msra.mxu0 0.0
    %966 = vmatprep.subr.mxu0 0.0
    %967 = vmatpush1.xpose.msra.mxu0 0.0
    %968 = vmatprep.subr.mxu0 0.0
    %969 = vmatpush1.xpose.msra.mxu0 0.0
    %970 = vmatprep.subr.mxu0 0.0
    %971 = vmatpush1.xpose.msra.mxu0 0.0
    %972 = vmatprep.subr.mxu0 0.0
    %973 = vmatpush1.xpose.msra.mxu0 0.0
    %974 = vmatprep.subr.mxu0 0.0
    %975 = vmatpush1.xpose.msra.mxu0 0.0
    %976 = vmatprep.subr.mxu0 0.0
    %977 = vmatpush1.xpose.msra.mxu0 0.0
    %978 = vmatprep.subr.mxu0 0.0
    %979 = vmatpush1.xpose.msra.mxu0 0.0
    %980 = vmatprep.subr.mxu0 0.0
    %981 = vmatpush1.xpose.msra.mxu0 0.0
    %982 = vmatprep.mubr.f32.mxu0 0.0
    %983 = vmatmul.mubr.f32.gmra.mrb[0].mxu0 %v914
    %v984 = vpop.f32.mrb[0].mxu0
    %v985 = vadd.f32 0.0, %v984
    %v986 = vpop.f32.mrb[0].mxu0
    %987 = vdwg.mxu0
    %v988 = vsel %vm746, %v985, -inf
    %989 = vmax.xlane.f32.xlu0 %v988
    %v990 = vpop.xlane.xlu0 %989
    %v991 = vsub.f32 %v985, %v990
    %v992 = vmul.f32 %v991, 1.442695
    %v993 = vpow.pop %v992
    %v994 = vsel %vm746, %v993, 0.0
    %995 = vadd.xlane.f32.xlu0 %v994
    %v996 = vpop.xlane.xlu0 %995
    %v997 = vrcp.pop %v996
    %v998 = vmul.f32 %v993, %v997
    %999 = vrot.lane.b32.xlu0 %v735, 56
    %v1000 = vpop.permute.xlu0 %999
    %v1003 = vsel %vm746, %v998, 0
    %1005 = vmatprep.subr.mxu0 0.0
    %1006 = vmatpush1.msra.mxu0 %v1000
    %1007 = vmatprep.subr.mxu0 0.0
    %1008 = vmatpush1.msra.mxu0 0.0
    %1009 = vmatprep.subr.mxu0 0.0
    %1010 = vmatpush1.msra.mxu0 0.0
    %1011 = vmatprep.subr.mxu0 0.0
    %1012 = vmatpush1.msra.mxu0 0.0
    %1013 = vmatprep.subr.mxu0 0.0
    %1014 = vmatpush1.msra.mxu0 0.0
    %1015 = vmatprep.subr.mxu0 0.0
    %1016 = vmatpush1.msra.mxu0 0.0
    %1017 = vmatprep.subr.mxu0 0.0
    %1018 = vmatpush1.msra.mxu0 0.0
    %1019 = vmatprep.subr.mxu0 0.0
    %1020 = vmatpush1.msra.mxu0 0.0
    %1021 = vmatprep.subr.mxu0 0.0
    %1022 = vmatpush1.msra.mxu0 0.0
    %1023 = vmatprep.subr.mxu0 0.0
    %1024 = vmatpush1.msra.mxu0 0.0
    %1025 = vmatprep.subr.mxu0 0.0
    %1026 = vmatpush1.msra.mxu0 0.0
    %1027 = vmatprep.subr.mxu0 0.0
    %1028 = vmatpush1.msra.mxu0 0.0
    %1029 = vmatprep.subr.mxu0 0.0
    %1030 = vmatpush1.msra.mxu0 0.0
    %1031 = vmatprep.subr.mxu0 0.0
    %1032 = vmatpush1.msra.mxu0 0.0
    %1033 = vmatprep.subr.mxu0 0.0
    %1034 = vmatpush1.msra.mxu0 0.0
    %1035 = vmatprep.subr.mxu0 0.0
    %1036 = vmatpush1.msra.mxu0 0.0
    %1037 = vmatprep.subr.mxu0 0.0
    %1038 = vmatpush1.msra.mxu0 0.0
    %1039 = vmatprep.subr.mxu0 0.0
    %1040 = vmatpush1.msra.mxu0 0.0
    %1041 = vmatprep.subr.mxu0 0.0
    %1042 = vmatpush1.msra.mxu0 0.0
    %1043 = vmatprep.subr.mxu0 0.0
    %1044 = vmatpush1.msra.mxu0 0.0
    %1045 = vmatprep.subr.mxu0 0.0
    %1046 = vmatpush1.msra.mxu0 0.0
    %1047 = vmatprep.subr.mxu0 0.0
    %1048 = vmatpush1.msra.mxu0 0.0
    %1049 = vmatprep.subr.mxu0 0.0
    %1050 = vmatpush1.msra.mxu0 0.0
    %1051 = vmatprep.subr.mxu0 0.0
    %1052 = vmatpush1.msra.mxu0 0.0
    %1053 = vmatprep.subr.mxu0 0.0
    %1054 = vmatpush1.msra.mxu0 0.0
    %1055 = vmatprep.subr.mxu0 0.0
    %1056 = vmatpush1.msra.mxu0 0.0
    %1057 = vmatprep.subr.mxu0 0.0
    %1058 = vmatpush1.msra.mxu0 0.0
    %1059 = vmatprep.subr.mxu0 0.0
    %1060 = vmatpush1.msra.mxu0 0.0
    %1061 = vmatprep.subr.mxu0 0.0
    %1062 = vmatpush1.msra.mxu0 0.0
    %1063 = vmatprep.subr.mxu0 0.0
    %1064 = vmatpush1.msra.mxu0 0.0
    %1065 = vmatprep.subr.mxu0 0.0
    %1066 = vmatpush1.msra.mxu0 0.0
    %1067 = vmatprep.subr.mxu0 0.0
    %1068 = vmatpush1.msra.mxu0 0.0
    %1069 = vmatprep.mubr.f32.mxu0 0.0
    %1070 = vmatmul.mubr.f32.gmra.mrb[0].mxu0 %v1003
    %v1071 = vpop.f32.mrb[0].mxu0
    %v1072 = vadd.f32 0.0, %v1071
    %v1073 = vpop.f32.mrb[0].mxu0
    %1074 = vdwg.mxu0
    %v1076 = vsel %vm746, %v1072, 0
    %1078 = vmatprep.subr.mxu0 0.0
    %1079 = vmatpush1.msra.mxu0 %v739
    %1080 = vmatprep.subr.mxu0 0.0
    %1081 = vmatpush1.msra.mxu0 0.0
    %1082 = vmatprep.subr.mxu0 0.0
    %1083 = vmatpush1.msra.mxu0 0.0
    %1084 = vmatprep.subr.mxu0 0.0
    %1085 = vmatpush1.msra.mxu0 0.0
    %1086 = vmatprep.subr.mxu0 0.0
    %1087 = vmatpush1.msra.mxu0 0.0
    %1088 = vmatprep.subr.mxu0 0.0
    %1089 = vmatpush1.msra.mxu0 0.0
    %1090 = vmatprep.subr.mxu0 0.0
    %1091 = vmatpush1.msra.mxu0 0.0
    %1092 = vmatprep.subr.mxu0 0.0
    %1093 = vmatpush1.msra.mxu0 0.0
    %1094 = vmatprep.subr.mxu0 0.0
    %1095 = vmatpush1.msra.mxu0 0.0
    %1096 = vmatprep.subr.mxu0 0.0
    %1097 = vmatpush1.msra.mxu0 0.0
    %1098 = vmatprep.subr.mxu0 0.0
    %1099 = vmatpush1.msra.mxu0 0.0
    %1100 = vmatprep.subr.mxu0 0.0
    %1101 = vmatpush1.msra.mxu0 0.0
    %1102 = vmatprep.subr.mxu0 0.0
    %1103 = vmatpush1.msra.mxu0 0.0
    %1104 = vmatprep.subr.mxu0 0.0
    %1105 = vmatpush1.msra.mxu0 0.0
    %1106 = vmatprep.subr.mxu0 0.0
    %1107 = vmatpush1.msra.mxu0 0.0
    %1108 = vmatprep.subr.mxu0 0.0
    %1109 = vmatpush1.msra.mxu0 0.0
    %1110 = vmatprep.subr.mxu0 0.0
    %1111 = vmatpush1.msra.mxu0 0.0
    %1112 = vmatprep.subr.mxu0 0.0
    %1113 = vmatpush1.msra.mxu0 0.0
    %1114 = vmatprep.subr.mxu0 0.0
    %1115 = vmatpush1.msra.mxu0 0.0
    %1116 = vmatprep.subr.mxu0 0.0
    %1117 = vmatpush1.msra.mxu0 0.0
    %1118 = vmatprep.subr.mxu0 0.0
    %1119 = vmatpush1.msra.mxu0 0.0
    %1120 = vmatprep.subr.mxu0 0.0
    %1121 = vmatpush1.msra.mxu0 0.0
    %1122 = vmatprep.subr.mxu0 0.0
    %1123 = vmatpush1.msra.mxu0 0.0
    %1124 = vmatprep.subr.mxu0 0.0
    %1125 = vmatpush1.msra.mxu0 0.0
    %1126 = vmatprep.subr.mxu0 0.0
    %1127 = vmatpush1.msra.mxu0 0.0
    %1128 = vmatprep.subr.mxu0 0.0
    %1129 = vmatpush1.msra.mxu0 0.0
    %1130 = vmatprep.subr.mxu0 0.0
    %1131 = vmatpush1.msra.mxu0 0.0
    %1132 = vmatprep.subr.mxu0 0.0
    %1133 = vmatpush1.msra.mxu0 0.0
    %1134 = vmatprep.subr.mxu0 0.0
    %1135 = vmatpush1.msra.mxu0 0.0
    %1136 = vmatprep.subr.mxu0 0.0
    %1137 = vmatpush1.msra.mxu0 0.0
    %1138 = vmatprep.subr.mxu0 0.0
    %1139 = vmatpush1.msra.mxu0 0.0
    %1140 = vmatprep.subr.mxu0 0.0
    %1141 = vmatpush1.msra.mxu0 0.0
    %1142 = vmatprep.mubr.f32.mxu0 0.0
    %1143 = vmatmul.mubr.f32.gmra.mrb[0].mxu0 %v1076
    %v1144 = vpop.f32.mrb[0].mxu0
    %v1145 = vadd.f32 0.0, %v1144
    %v1146 = vpop.f32.mrb[0].mxu0
    %1147 = vdwg.mxu0
    %v1149 = vsel %vm746, %v907, 0
    %1151 = vmatprep.subr.mxu0 0.0
    %1152 = vmatpush1.msra.mxu0 %v738
    %1153 = vmatprep.subr.mxu0 0.0
    %1154 = vmatpush1.msra.mxu0 0.0
    %1155 = vmatprep.subr.mxu0 0.0
    %1156 = vmatpush1.msra.mxu0 0.0
    %1157 = vmatprep.subr.mxu0 0.0
    %1158 = vmatpush1.msra.mxu0 0.0
    %1159 = vmatprep.subr.mxu0 0.0
    %1160 = vmatpush1.msra.mxu0 0.0
    %1161 = vmatprep.subr.mxu0 0.0
    %1162 = vmatpush1.msra.mxu0 0.0
    %1163 = vmatprep.subr.mxu0 0.0
    %1164 = vmatpush1.msra.mxu0 0.0
    %1165 = vmatprep.subr.mxu0 0.0
    %1166 = vmatpush1.msra.mxu0 0.0
    %1167 = vmatprep.subr.mxu0 0.0
    %1168 = vmatpush1.msra.mxu0 0.0
    %1169 = vmatprep.subr.mxu0 0.0
    %1170 = vmatpush1.msra.mxu0 0.0
    %1171 = vmatprep.subr.mxu0 0.0
    %1172 = vmatpush1.msra.mxu0 0.0
    %1173 = vmatprep.subr.mxu0 0.0
    %1174 = vmatpush1.msra.mxu0 0.0
    %1175 = vmatprep.subr.mxu0 0.0
    %1176 = vmatpush1.msra.mxu0 0.0
    %1177 = vmatprep.subr.mxu0 0.0
    %1178 = vmatpush1.msra.mxu0 0.0
    %1179 = vmatprep.subr.mxu0 0.0
    %1180 = vmatpush1.msra.mxu0 0.0
    %1181 = vmatprep.subr.mxu0 0.0
    %1182 = vmatpush1.msra.mxu0 0.0
    %1183 = vmatprep.subr.mxu0 0.0
    %1184 = vmatpush1.msra.mxu0 0.0
    %1185 = vmatprep.subr.mxu0 0.0
    %1186 = vmatpush1.msra.mxu0 0.0
    %1187 = vmatprep.subr.mxu0 0.0
    %1188 = vmatpush1.msra.mxu0 0.0
    %1189 = vmatprep.subr.mxu0 0.0
    %1190 = vmatpush1.msra.mxu0 0.0
    %1191 = vmatprep.subr.mxu0 0.0
    %1192 = vmatpush1.msra.mxu0 0.0
    %1193 = vmatprep.subr.mxu0 0.0
    %1194 = vmatpush1.msra.mxu0 0.0
    %1195 = vmatprep.subr.mxu0 0.0
    %1196 = vmatpush1.msra.mxu0 0.0
    %1197 = vmatprep.subr.mxu0 0.0
    %1198 = vmatpush1.msra.mxu0 0.0
    %1199 = vmatprep.subr.mxu0 0.0
    %1200 = vmatpush1.msra.mxu0 0.0
    %1201 = vmatprep.subr.mxu0 0.0
    %1202 = vmatpush1.msra.mxu0 0.0
    %1203 = vmatprep.subr.mxu0 0.0
    %1204 = vmatpush1.msra.mxu0 0.0
    %1205 = vmatprep.subr.mxu0 0.0
    %1206 = vmatpush1.msra.mxu0 0.0
    %1207 = vmatprep.subr.mxu0 0.0
    %1208 = vmatpush1.msra.mxu0 0.0
    %1209 = vmatprep.subr.mxu0 0.0
    %1210 = vmatpush1.msra.mxu0 0.0
    %1211 = vmatprep.subr.mxu0 0.0
    %1212 = vmatpush1.msra.mxu0 0.0
    %1213 = vmatprep.subr.mxu0 0.0
    %1214 = vmatpush1.msra.mxu0 0.0
    %1215 = vmatprep.mubr.f32.mxu0 0.0
    %1216 = vmatmul.mubr.f32.gmra.mrb[0].mxu0 %v1149
    %v1217 = vpop.f32.mrb[0].mxu0
    %v1218 = vadd.f32 %v1145, %v1217
    %v1219 = vpop.f32.mrb[0].mxu0
    %1220 = vdwg.mxu0
    %1221 = vrot.lane.b32.xlu0 %v649, 112
    %v1222 = vpop.permute.xlu0 %1221
    %1223 = vrot.lane.b32.xlu0 %v735, 112
    %v1224 = vpop.permute.xlu0 %1223
    %v1225 = vsel %vm746, %v1222, 0
    %v1227 = vsel %vm746, %v1224, 0
    %1229 = vmatprep.subr.mxu0 0.0
    %1230 = vmatpush1.xpose.msra.mxu0 %v1227
    %1231 = vmatprep.subr.mxu0 0.0
    %1232 = vmatpush1.xpose.msra.mxu0 0.0
    %1233 = vmatprep.subr.mxu0 0.0
    %1234 = vmatpush1.xpose.msra.mxu0 0.0
    %1235 = vmatprep.subr.mxu0 0.0
    %1236 = vmatpush1.xpose.msra.mxu0 0.0
    %1237 = vmatprep.subr.mxu0 0.0
    %1238 = vmatpush1.xpose.msra.mxu0 0.0
    %1239 = vmatprep.subr.mxu0 0.0
    %1240 = vmatpush1.xpose.msra.mxu0 0.0
    %1241 = vmatprep.subr.mxu0 0.0
    %1242 = vmatpush1.xpose.msra.mxu0 0.0
    %1243 = vmatprep.subr.mxu0 0.0
    %1244 = vmatpush1.xpose.msra.mxu0 0.0
    %1245 = vmatprep.subr.mxu0 0.0
    %1246 = vmatpush1.xpose.msra.mxu0 0.0
    %1247 = vmatprep.subr.mxu0 0.0
    %1248 = vmatpush1.xpose.msra.mxu0 0.0
    %1249 = vmatprep.subr.mxu0 0.0
    %1250 = vmatpush1.xpose.msra.mxu0 0.0
    %1251 = vmatprep.subr.mxu0 0.0
    %1252 = vmatpush1.xpose.msra.mxu0 0.0
    %1253 = vmatprep.subr.mxu0 0.0
    %1254 = vmatpush1.xpose.msra.mxu0 0.0
    %1255 = vmatprep.subr.mxu0 0.0
    %1256 = vmatpush1.xpose.msra.mxu0 0.0
    %1257 = vmatprep.subr.mxu0 0.0
    %1258 = vmatpush1.xpose.msra.mxu0 0.0
    %1259 = vmatprep.subr.mxu0 0.0
    %1260 = vmatpush1.xpose.msra.mxu0 0.0
    %1261 = vmatprep.subr.mxu0 0.0
    %1262 = vmatpush1.xpose.msra.mxu0 0.0
    %1263 = vmatprep.subr.mxu0 0.0
    %1264 = vmatpush1.xpose.msra.mxu0 0.0
    %1265 = vmatprep.subr.mxu0 0.0
    %1266 = vmatpush1.xpose.msra.mxu0 0.0
    %1267 = vmatprep.subr.mxu0 0.0
    %1268 = vmatpush1.xpose.msra.mxu0 0.0
    %1269 = vmatprep.subr.mxu0 0.0
    %1270 = vmatpush1.xpose.msra.mxu0 0.0
    %1271 = vmatprep.subr.mxu0 0.0
    %1272 = vmatpush1.xpose.msra.mxu0 0.0
    %1273 = vmatprep.subr.mxu0 0.0
    %1274 = vmatpush1.xpose.msra.mxu0 0.0
    %1275 = vmatprep.subr.mxu0 0.0
    %1276 = vmatpush1.xpose.msra.mxu0 0.0
    %1277 = vmatprep.subr.mxu0 0.0
    %1278 = vmatpush1.xpose.msra.mxu0 0.0
    %1279 = vmatprep.subr.mxu0 0.0
    %1280 = vmatpush1.xpose.msra.mxu0 0.0
    %1281 = vmatprep.subr.mxu0 0.0
    %1282 = vmatpush1.xpose.msra.mxu0 0.0
    %1283 = vmatprep.subr.mxu0 0.0
    %1284 = vmatpush1.xpose.msra.mxu0 0.0
    %1285 = vmatprep.subr.mxu0 0.0
    %1286 = vmatpush1.xpose.msra.mxu0 0.0
    %1287 = vmatprep.subr.mxu0 0.0
    %1288 = vmatpush1.xpose.msra.mxu0 0.0
    %1289 = vmatprep.subr.mxu0 0.0
    %1290 = vmatpush1.xpose.msra.mxu0 0.0
    %1291 = vmatprep.subr.mxu0 0.0
    %1292 = vmatpush1.xpose.msra.mxu0 0.0
    %1293 = vmatprep.mubr.f32.mxu0 0.0
    %1294 = vmatmul.mubr.f32.gmra.mrb[0].mxu0 %v1225
    %v1295 = vpop.f32.mrb[0].mxu0
    %v1296 = vadd.f32 0.0, %v1295
    %v1297 = vpop.f32.mrb[0].mxu0
    %1298 = vdwg.mxu0
    %v1299 = vsel %vm746, %v1296, -inf
    %1300 = vmax.xlane.f32.xlu0 %v1299
    %v1301 = vpop.xlane.xlu0 %1300
    %v1302 = vsub.f32 %v1296, %v1301
    %v1303 = vmul.f32 %v1302, 1.442695
    %v1304 = vpow.pop %v1303
    %v1305 = vsel %vm746, %v1304, 0.0
    %1306 = vadd.xlane.f32.xlu0 %v1305
    %v1307 = vpop.xlane.xlu0 %1306
    %v1308 = vrcp.pop %v1307
    %v1309 = vmul.f32 %v1304, %v1308
    %1310 = vrot.lane.b32.xlu0 %v735, 48
    %v1311 = vpop.permute.xlu0 %1310
    %v1314 = vsel %vm746, %v1309, 0
    %1316 = vmatprep.subr.mxu0 0.0
    %1317 = vmatpush1.msra.mxu0 %v1311
    %1318 = vmatprep.subr.mxu0 0.0
    %1319 = vmatpush1.msra.mxu0 0.0
    %1320 = vmatprep.subr.mxu0 0.0
    %1321 = vmatpush1.msra.mxu0 0.0
    %1322 = vmatprep.subr.mxu0 0.0
    %1323 = vmatpush1.msra.mxu0 0.0
    %1324 = vmatprep.subr.mxu0 0.0
    %1325 = vmatpush1.msra.mxu0 0.0
    %1326 = vmatprep.subr.mxu0 0.0
    %1327 = vmatpush1.msra.mxu0 0.0
    %1328 = vmatprep.subr.mxu0 0.0
    %1329 = vmatpush1.msra.mxu0 0.0
    %1330 = vmatprep.subr.mxu0 0.0
    %1331 = vmatpush1.msra.mxu0 0.0
    %1332 = vmatprep.subr.mxu0 0.0
    %1333 = vmatpush1.msra.mxu0 0.0
    %1334 = vmatprep.subr.mxu0 0.0
    %1335 = vmatpush1.msra.mxu0 0.0
    %1336 = vmatprep.subr.mxu0 0.0
    %1337 = vmatpush1.msra.mxu0 0.0
    %1338 = vmatprep.subr.mxu0 0.0
    %1339 = vmatpush1.msra.mxu0 0.0
    %1340 = vmatprep.subr.mxu0 0.0
    %1341 = vmatpush1.msra.mxu0 0.0
    %1342 = vmatprep.subr.mxu0 0.0
    %1343 = vmatpush1.msra.mxu0 0.0
    %1344 = vmatprep.subr.mxu0 0.0
    %1345 = vmatpush1.msra.mxu0 0.0
    %1346 = vmatprep.subr.mxu0 0.0
    %1347 = vmatpush1.msra.mxu0 0.0
    %1348 = vmatprep.subr.mxu0 0.0
    %1349 = vmatpush1.msra.mxu0 0.0
    %1350 = vmatprep.subr.mxu0 0.0
    %1351 = vmatpush1.msra.mxu0 0.0
    %1352 = vmatprep.subr.mxu0 0.0
    %1353 = vmatpush1.msra.mxu0 0.0
    %1354 = vmatprep.subr.mxu0 0.0
    %1355 = vmatpush1.msra.mxu0 0.0
    %1356 = vmatprep.subr.mxu0 0.0
    %1357 = vmatpush1.msra.mxu0 0.0
    %1358 = vmatprep.subr.mxu0 0.0
    %1359 = vmatpush1.msra.mxu0 0.0
    %1360 = vmatprep.subr.mxu0 0.0
    %1361 = vmatpush1.msra.mxu0 0.0
    %1362 = vmatprep.subr.mxu0 0.0
    %1363 = vmatpush1.msra.mxu0 0.0
    %1364 = vmatprep.subr.mxu0 0.0
    %1365 = vmatpush1.msra.mxu0 0.0
    %1366 = vmatprep.subr.mxu0 0.0
    %1367 = vmatpush1.msra.mxu0 0.0
    %1368 = vmatprep.subr.mxu0 0.0
    %1369 = vmatpush1.msra.mxu0 0.0
    %1370 = vmatprep.subr.mxu0 0.0
    %1371 = vmatpush1.msra.mxu0 0.0
    %1372 = vmatprep.subr.mxu0 0.0
    %1373 = vmatpush1.msra.mxu0 0.0
    %1374 = vmatprep.subr.mxu0 0.0
    %1375 = vmatpush1.msra.mxu0 0.0
    %1376 = vmatprep.subr.mxu0 0.0
    %1377 = vmatpush1.msra.mxu0 0.0
    %1378 = vmatprep.subr.mxu0 0.0
    %1379 = vmatpush1.msra.mxu0 0.0
    %1380 = vmatprep.mubr.f32.mxu0 0.0
    %1381 = vmatmul.mubr.f32.gmra.mrb[0].mxu0 %v1314
    %v1382 = vpop.f32.mrb[0].mxu0
    %v1383 = vadd.f32 0.0, %v1382
    %v1384 = vpop.f32.mrb[0].mxu0
    %1385 = vdwg.mxu0
    %v1387 = vsel %vm746, %v1383, 0
    %1389 = vmatprep.subr.mxu0 0.0
    %1390 = vmatpush1.msra.mxu0 %v740
    %1391 = vmatprep.subr.mxu0 0.0
    %1392 = vmatpush1.msra.mxu0 0.0
    %1393 = vmatprep.subr.mxu0 0.0
    %1394 = vmatpush1.msra.mxu0 0.0
    %1395 = vmatprep.subr.mxu0 0.0
    %1396 = vmatpush1.msra.mxu0 0.0
    %1397 = vmatprep.subr.mxu0 0.0
    %1398 = vmatpush1.msra.mxu0 0.0
    %1399 = vmatprep.subr.mxu0 0.0
    %1400 = vmatpush1.msra.mxu0 0.0
    %1401 = vmatprep.subr.mxu0 0.0
    %1402 = vmatpush1.msra.mxu0 0.0
    %1403 = vmatprep.subr.mxu0 0.0
    %1404 = vmatpush1.msra.mxu0 0.0
    %1405 = vmatprep.subr.mxu0 0.0
    %1406 = vmatpush1.msra.mxu0 0.0
    %1407 = vmatprep.subr.mxu0 0.0
    %1408 = vmatpush1.msra.mxu0 0.0
    %1409 = vmatprep.subr.mxu0 0.0
    %1410 = vmatpush1.msra.mxu0 0.0
    %1411 = vmatprep.subr.mxu0 0.0
    %1412 = vmatpush1.msra.mxu0 0.0
    %1413 = vmatprep.subr.mxu0 0.0
    %1414 = vmatpush1.msra.mxu0 0.0
    %1415 = vmatprep.subr.mxu0 0.0
    %1416 = vmatpush1.msra.mxu0 0.0
    %1417 = vmatprep.subr.mxu0 0.0
    %1418 = vmatpush1.msra.mxu0 0.0
    %1419 = vmatprep.subr.mxu0 0.0
    %1420 = vmatpush1.msra.mxu0 0.0
    %1421 = vmatprep.subr.mxu0 0.0
    %1422 = vmatpush1.msra.mxu0 0.0
    %1423 = vmatprep.subr.mxu0 0.0
    %1424 = vmatpush1.msra.mxu0 0.0
    %1425 = vmatprep.subr.mxu0 0.0
    %1426 = vmatpush1.msra.mxu0 0.0
    %1427 = vmatprep.subr.mxu0 0.0
    %1428 = vmatpush1.msra.mxu0 0.0
    %1429 = vmatprep.subr.mxu0 0.0
    %1430 = vmatpush1.msra.mxu0 0.0
    %1431 = vmatprep.subr.mxu0 0.0
    %1432 = vmatpush1.msra.mxu0 0.0
    %1433 = vmatprep.subr.mxu0 0.0
    %1434 = vmatpush1.msra.mxu0 0.0
    %1435 = vmatprep.subr.mxu0 0.0
    %1436 = vmatpush1.msra.mxu0 0.0
    %1437 = vmatprep.subr.mxu0 0.0
    %1438 = vmatpush1.msra.mxu0 0.0
    %1439 = vmatprep.subr.mxu0 0.0
    %1440 = vmatpush1.msra.mxu0 0.0
    %1441 = vmatprep.subr.mxu0 0.0
    %1442 = vmatpush1.msra.mxu0 0.0
    %1443 = vmatprep.subr.mxu0 0.0
    %1444 = vmatpush1.msra.mxu0 0.0
    %1445 = vmatprep.subr.mxu0 0.0
    %1446 = vmatpush1.msra.mxu0 0.0
    %1447 = vmatprep.subr.mxu0 0.0
    %1448 = vmatpush1.msra.mxu0 0.0
    %1449 = vmatprep.subr.mxu0 0.0
    %1450 = vmatpush1.msra.mxu0 0.0
    %1451 = vmatprep.subr.mxu0 0.0
    %1452 = vmatpush1.msra.mxu0 0.0
    %1453 = vmatprep.mubr.f32.mxu0 0.0
    %1454 = vmatmul.mubr.f32.gmra.mrb[0].mxu0 %v1387
    %v1455 = vpop.f32.mrb[0].mxu0
    %v1456 = vadd.f32 0.0, %v1455
    %v1457 = vpop.f32.mrb[0].mxu0
    %1458 = vdwg.mxu0
    %v1459 = vadd.f32 %v1218, %v1456
    %1460 = vrot.lane.b32.xlu0 %v649, 104
    %v1461 = vpop.permute.xlu0 %1460
    %1462 = vrot.lane.b32.xlu0 %v735, 104
    %v1463 = vpop.permute.xlu0 %1462
    %v1464 = vsel %vm746, %v1461, 0
    %v1466 = vsel %vm746, %v1463, 0
    %1468 = vmatprep.subr.mxu0 0.0
    %1469 = vmatpush1.xpose.msra.mxu0 %v1466
    %1470 = vmatprep.subr.mxu0 0.0
    %1471 = vmatpush1.xpose.msra.mxu0 0.0
    %1472 = vmatprep.subr.mxu0 0.0
    %1473 = vmatpush1.xpose.msra.mxu0 0.0
    %1474 = vmatprep.subr.mxu0 0.0
    %1475 = vmatpush1.xpose.msra.mxu0 0.0
    %1476 = vmatprep.subr.mxu0 0.0
    %1477 = vmatpush1.xpose.msra.mxu0 0.0
    %1478 = vmatprep.subr.mxu0 0.0
    %1479 = vmatpush1.xpose.msra.mxu0 0.0
    %1480 = vmatprep.subr.mxu0 0.0
    %1481 = vmatpush1.xpose.msra.mxu0 0.0
    %1482 = vmatprep.subr.mxu0 0.0
    %1483 = vmatpush1.xpose.msra.mxu0 0.0
    %1484 = vmatprep.subr.mxu0 0.0
    %1485 = vmatpush1.xpose.msra.mxu0 0.0
    %1486 = vmatprep.subr.mxu0 0.0
    %1487 = vmatpush1.xpose.msra.mxu0 0.0
    %1488 = vmatprep.subr.mxu0 0.0
    %1489 = vmatpush1.xpose.msra.mxu0 0.0
    %1490 = vmatprep.subr.mxu0 0.0
    %1491 = vmatpush1.xpose.msra.mxu0 0.0
    %1492 = vmatprep.subr.mxu0 0.0
    %1493 = vmatpush1.xpose.msra.mxu0 0.0
    %1494 = vmatprep.subr.mxu0 0.0
    %1495 = vmatpush1.xpose.msra.mxu0 0.0
    %1496 = vmatprep.subr.mxu0 0.0
    %1497 = vmatpush1.xpose.msra.mxu0 0.0
    %1498 = vmatprep.subr.mxu0 0.0
    %1499 = vmatpush1.xpose.msra.mxu0 0.0
    %1500 = vmatprep.subr.mxu0 0.0
    %1501 = vmatpush1.xpose.msra.mxu0 0.0
    %1502 = vmatprep.subr.mxu0 0.0
    %1503 = vmatpush1.xpose.msra.mxu0 0.0
    %1504 = vmatprep.subr.mxu0 0.0
    %1505 = vmatpush1.xpose.msra.mxu0 0.0
    %1506 = vmatprep.subr.mxu0 0.0
    %1507 = vmatpush1.xpose.msra.mxu0 0.0
    %1508 = vmatprep.subr.mxu0 0.0
    %1509 = vmatpush1.xpose.msra.mxu0 0.0
    %1510 = vmatprep.subr.mxu0 0.0
    %1511 = vmatpush1.xpose.msra.mxu0 0.0
    %1512 = vmatprep.subr.mxu0 0.0
    %1513 = vmatpush1.xpose.msra.mxu0 0.0
    %1514 = vmatprep.subr.mxu0 0.0
    %1515 = vmatpush1.xpose.msra.mxu0 0.0
    %1516 = vmatprep.subr.mxu0 0.0
    %1517 = vmatpush1.xpose.msra.mxu0 0.0
    %1518 = vmatprep.subr.mxu0 0.0
    %1519 = vmatpush1.xpose.msra.mxu0 0.0
    %1520 = vmatprep.subr.mxu0 0.0
    %1521 = vmatpush1.xpose.msra.mxu0 0.0
    %1522 = vmatprep.subr.mxu0 0.0
    %1523 = vmatpush1.xpose.msra.mxu0 0.0
    %1524 = vmatprep.subr.mxu0 0.0
    %1525 = vmatpush1.xpose.msra.mxu0 0.0
    %1526 = vmatprep.subr.mxu0 0.0
    %1527 = vmatpush1.xpose.msra.mxu0 0.0
    %1528 = vmatprep.subr.mxu0 0.0
    %1529 = vmatpush1.xpose.msra.mxu0 0.0
    %1530 = vmatprep.subr.mxu0 0.0
    %1531 = vmatpush1.xpose.msra.mxu0 0.0
    %1532 = vmatprep.mubr.f32.mxu0 0.0
    %1533 = vmatmul.mubr.f32.gmra.mrb[0].mxu0 %v1464
    %v1534 = vpop.f32.mrb[0].mxu0
    %v1535 = vadd.f32 0.0, %v1534
    %v1536 = vpop.f32.mrb[0].mxu0
    %1537 = vdwg.mxu0
    %v1538 = vsel %vm746, %v1535, -inf
    %1539 = vmax.xlane.f32.xlu0 %v1538
    %v1540 = vpop.xlane.xlu0 %1539
    %v1541 = vsub.f32 %v1535, %v1540
    %v1542 = vmul.f32 %v1541, 1.442695
    %v1543 = vpow.pop %v1542
    %v1544 = vsel %vm746, %v1543, 0.0
    %1545 = vadd.xlane.f32.xlu0 %v1544
    %v1546 = vpop.xlane.xlu0 %1545
    %v1547 = vrcp.pop %v1546
    %v1548 = vmul.f32 %v1543, %v1547
    %1549 = vrot.lane.b32.xlu0 %v735, 40
    %v1550 = vpop.permute.xlu0 %1549
    %v1553 = vsel %vm746, %v1548, 0
    %1555 = vmatprep.subr.mxu0 0.0
    %1556 = vmatpush1.msra.mxu0 %v1550
    %1557 = vmatprep.subr.mxu0 0.0
    %1558 = vmatpush1.msra.mxu0 0.0
    %1559 = vmatprep.subr.mxu0 0.0
    %1560 = vmatpush1.msra.mxu0 0.0
    %1561 = vmatprep.subr.mxu0 0.0
    %1562 = vmatpush1.msra.mxu0 0.0
    %1563 = vmatprep.subr.mxu0 0.0
    %1564 = vmatpush1.msra.mxu0 0.0
    %1565 = vmatprep.subr.mxu0 0.0
    %1566 = vmatpush1.msra.mxu0 0.0
    %1567 = vmatprep.subr.mxu0 0.0
    %1568 = vmatpush1.msra.mxu0 0.0
    %1569 = vmatprep.subr.mxu0 0.0
    %1570 = vmatpush1.msra.mxu0 0.0
    %1571 = vmatprep.subr.mxu0 0.0
    %1572 = vmatpush1.msra.mxu0 0.0
    %1573 = vmatprep.subr.mxu0 0.0
    %1574 = vmatpush1.msra.mxu0 0.0
    %1575 = vmatprep.subr.mxu0 0.0
    %1576 = vmatpush1.msra.mxu0 0.0
    %1577 = vmatprep.subr.mxu0 0.0
    %1578 = vmatpush1.msra.mxu0 0.0
    %1579 = vmatprep.subr.mxu0 0.0
    %1580 = vmatpush1.msra.mxu0 0.0
    %1581 = vmatprep.subr.mxu0 0.0
    %1582 = vmatpush1.msra.mxu0 0.0
    %1583 = vmatprep.subr.mxu0 0.0
    %1584 = vmatpush1.msra.mxu0 0.0
    %1585 = vmatprep.subr.mxu0 0.0
    %1586 = vmatpush1.msra.mxu0 0.0
    %1587 = vmatprep.subr.mxu0 0.0
    %1588 = vmatpush1.msra.mxu0 0.0
    %1589 = vmatprep.subr.mxu0 0.0
    %1590 = vmatpush1.msra.mxu0 0.0
    %1591 = vmatprep.subr.mxu0 0.0
    %1592 = vmatpush1.msra.mxu0 0.0
    %1593 = vmatprep.subr.mxu0 0.0
    %1594 = vmatpush1.msra.mxu0 0.0
    %1595 = vmatprep.subr.mxu0 0.0
    %1596 = vmatpush1.msra.mxu0 0.0
    %1597 = vmatprep.subr.mxu0 0.0
    %1598 = vmatpush1.msra.mxu0 0.0
    %1599 = vmatprep.subr.mxu0 0.0
    %1600 = vmatpush1.msra.mxu0 0.0
    %1601 = vmatprep.subr.mxu0 0.0
    %1602 = vmatpush1.msra.mxu0 0.0
    %1603 = vmatprep.subr.mxu0 0.0
    %1604 = vmatpush1.msra.mxu0 0.0
    %1605 = vmatprep.subr.mxu0 0.0
    %1606 = vmatpush1.msra.mxu0 0.0
    %1607 = vmatprep.subr.mxu0 0.0
    %1608 = vmatpush1.msra.mxu0 0.0
    %1609 = vmatprep.subr.mxu0 0.0
    %1610 = vmatpush1.msra.mxu0 0.0
    %1611 = vmatprep.subr.mxu0 0.0
    %1612 = vmatpush1.msra.mxu0 0.0
    %1613 = vmatprep.subr.mxu0 0.0
    %1614 = vmatpush1.msra.mxu0 0.0
    %1615 = vmatprep.subr.mxu0 0.0
    %1616 = vmatpush1.msra.mxu0 0.0
    %1617 = vmatprep.subr.mxu0 0.0
    %1618 = vmatpush1.msra.mxu0 0.0
    %1619 = vmatprep.mubr.f32.mxu0 0.0
    %1620 = vmatmul.mubr.f32.gmra.mrb[0].mxu0 %v1553
    %v1621 = vpop.f32.mrb[0].mxu0
    %v1622 = vadd.f32 0.0, %v1621
    %v1623 = vpop.f32.mrb[0].mxu0
    %1624 = vdwg.mxu0
    %v1626 = vsel %vm746, %v1622, 0
    %1628 = vmatprep.subr.mxu0 0.0
    %1629 = vmatpush1.msra.mxu0 %v741
    %1630 = vmatprep.subr.mxu0 0.0
    %1631 = vmatpush1.msra.mxu0 0.0
    %1632 = vmatprep.subr.mxu0 0.0
    %1633 = vmatpush1.msra.mxu0 0.0
    %1634 = vmatprep.subr.mxu0 0.0
    %1635 = vmatpush1.msra.mxu0 0.0
    %1636 = vmatprep.subr.mxu0 0.0
    %1637 = vmatpush1.msra.mxu0 0.0
    %1638 = vmatprep.subr.mxu0 0.0
    %1639 = vmatpush1.msra.mxu0 0.0
    %1640 = vmatprep.subr.mxu0 0.0
    %1641 = vmatpush1.msra.mxu0 0.0
    %1642 = vmatprep.subr.mxu0 0.0
    %1643 = vmatpush1.msra.mxu0 0.0
    %1644 = vmatprep.subr.mxu0 0.0
    %1645 = vmatpush1.msra.mxu0 0.0
    %1646 = vmatprep.subr.mxu0 0.0
    %1647 = vmatpush1.msra.mxu0 0.0
    %1648 = vmatprep.subr.mxu0 0.0
    %1649 = vmatpush1.msra.mxu0 0.0
    %1650 = vmatprep.subr.mxu0 0.0
    %1651 = vmatpush1.msra.mxu0 0.0
    %1652 = vmatprep.subr.mxu0 0.0
    %1653 = vmatpush1.msra.mxu0 0.0
    %1654 = vmatprep.subr.mxu0 0.0
    %1655 = vmatpush1.msra.mxu0 0.0
    %1656 = vmatprep.subr.mxu0 0.0
    %1657 = vmatpush1.msra.mxu0 0.0
    %1658 = vmatprep.subr.mxu0 0.0
    %1659 = vmatpush1.msra.mxu0 0.0
    %1660 = vmatprep.subr.mxu0 0.0
    %1661 = vmatpush1.msra.mxu0 0.0
    %1662 = vmatprep.subr.mxu0 0.0
    %1663 = vmatpush1.msra.mxu0 0.0
    %1664 = vmatprep.subr.mxu0 0.0
    %1665 = vmatpush1.msra.mxu0 0.0
    %1666 = vmatprep.subr.mxu0 0.0
    %1667 = vmatpush1.msra.mxu0 0.0
    %1668 = vmatprep.subr.mxu0 0.0
    %1669 = vmatpush1.msra.mxu0 0.0
    %1670 = vmatprep.subr.mxu0 0.0
    %1671 = vmatpush1.msra.mxu0 0.0
    %1672 = vmatprep.subr.mxu0 0.0
    %1673 = vmatpush1.msra.mxu0 0.0
    %1674 = vmatprep.subr.mxu0 0.0
    %1675 = vmatpush1.msra.mxu0 0.0
    %1676 = vmatprep.subr.mxu0 0.0
    %1677 = vmatpush1.msra.mxu0 0.0
    %1678 = vmatprep.subr.mxu0 0.0
    %1679 = vmatpush1.msra.mxu0 0.0
    %1680 = vmatprep.subr.mxu0 0.0
    %1681 = vmatpush1.msra.mxu0 0.0
    %1682 = vmatprep.subr.mxu0 0.0
    %1683 = vmatpush1.msra.mxu0 0.0
    %1684 = vmatprep.subr.mxu0 0.0
    %1685 = vmatpush1.msra.mxu0 0.0
    %1686 = vmatprep.subr.mxu0 0.0
    %1687 = vmatpush1.msra.mxu0 0.0
    %1688 = vmatprep.subr.mxu0 0.0
    %1689 = vmatpush1.msra.mxu0 0.0
    %1690 = vmatprep.subr.mxu0 0.0
    %1691 = vmatpush1.msra.mxu0 0.0
    %1692 = vmatprep.mubr.f32.mxu0 0.0
    %1693 = vmatmul.mubr.f32.gmra.mrb[0].mxu0 %v1626
    %v1694 = vpop.f32.mrb[0].mxu0
    %v1695 = vadd.f32 0.0, %v1694
    %v1696 = vpop.f32.mrb[0].mxu0
    %1697 = vdwg.mxu0
    %v1698 = vadd.f32 %v1459, %v1695
    %1699 = vrot.lane.b32.xlu0 %v649, 96
    %v1700 = vpop.permute.xlu0 %1699
    %1701 = vrot.lane.b32.xlu0 %v735, 96
    %v1702 = vpop.permute.xlu0 %1701
    %v1703 = vsel %vm746, %v1700, 0
    %v1705 = vsel %vm746, %v1702, 0
    %1707 = vmatprep.subr.mxu0 0.0
    %1708 = vmatpush1.xpose.msra.mxu0 %v1705
    %1709 = vmatprep.subr.mxu0 0.0
    %1710 = vmatpush1.xpose.msra.mxu0 0.0
    %1711 = vmatprep.subr.mxu0 0.0
    %1712 = vmatpush1.xpose.msra.mxu0 0.0
    %1713 = vmatprep.subr.mxu0 0.0
    %1714 = vmatpush1.xpose.msra.mxu0 0.0
    %1715 = vmatprep.subr.mxu0 0.0
    %1716 = vmatpush1.xpose.msra.mxu0 0.0
    %1717 = vmatprep.subr.mxu0 0.0
    %1718 = vmatpush1.xpose.msra.mxu0 0.0
    %1719 = vmatprep.subr.mxu0 0.0
    %1720 = vmatpush1.xpose.msra.mxu0 0.0
    %1721 = vmatprep.subr.mxu0 0.0
    %1722 = vmatpush1.xpose.msra.mxu0 0.0
    %1723 = vmatprep.subr.mxu0 0.0
    %1724 = vmatpush1.xpose.msra.mxu0 0.0
    %1725 = vmatprep.subr.mxu0 0.0
    %1726 = vmatpush1.xpose.msra.mxu0 0.0
    %1727 = vmatprep.subr.mxu0 0.0
    %1728 = vmatpush1.xpose.msra.mxu0 0.0
    %1729 = vmatprep.subr.mxu0 0.0
    %1730 = vmatpush1.xpose.msra.mxu0 0.0
    %1731 = vmatprep.subr.mxu0 0.0
    %1732 = vmatpush1.xpose.msra.mxu0 0.0
    %1733 = vmatprep.subr.mxu0 0.0
    %1734 = vmatpush1.xpose.msra.mxu0 0.0
    %1735 = vmatprep.subr.mxu0 0.0
    %1736 = vmatpush1.xpose.msra.mxu0 0.0
    %1737 = vmatprep.subr.mxu0 0.0
    %1738 = vmatpush1.xpose.msra.mxu0 0.0
    %1739 = vmatprep.subr.mxu0 0.0
    %1740 = vmatpush1.xpose.msra.mxu0 0.0
    %1741 = vmatprep.subr.mxu0 0.0
    %1742 = vmatpush1.xpose.msra.mxu0 0.0
    %1743 = vmatprep.subr.mxu0 0.0
    %1744 = vmatpush1.xpose.msra.mxu0 0.0
    %1745 = vmatprep.subr.mxu0 0.0
    %1746 = vmatpush1.xpose.msra.mxu0 0.0
    %1747 = vmatprep.subr.mxu0 0.0
    %1748 = vmatpush1.xpose.msra.mxu0 0.0
    %1749 = vmatprep.subr.mxu0 0.0
    %1750 = vmatpush1.xpose.msra.mxu0 0.0
    %1751 = vmatprep.subr.mxu0 0.0
    %1752 = vmatpush1.xpose.msra.mxu0 0.0
    %1753 = vmatprep.subr.mxu0 0.0
    %1754 = vmatpush1.xpose.msra.mxu0 0.0
    %1755 = vmatprep.subr.mxu0 0.0
    %1756 = vmatpush1.xpose.msra.mxu0 0.0
    %1757 = vmatprep.subr.mxu0 0.0
    %1758 = vmatpush1.xpose.msra.mxu0 0.0
    %1759 = vmatprep.subr.mxu0 0.0
    %1760 = vmatpush1.xpose.msra.mxu0 0.0
    %1761 = vmatprep.subr.mxu0 0.0
    %1762 = vmatpush1.xpose.msra.mxu0 0.0
    %1763 = vmatprep.subr.mxu0 0.0
    %1764 = vmatpush1.xpose.msra.mxu0 0.0
    %1765 = vmatprep.subr.mxu0 0.0
    %1766 = vmatpush1.xpose.msra.mxu0 0.0
    %1767 = vmatprep.subr.mxu0 0.0
    %1768 = vmatpush1.xpose.msra.mxu0 0.0
    %1769 = vmatprep.subr.mxu0 0.0
    %1770 = vmatpush1.xpose.msra.mxu0 0.0
    %1771 = vmatprep.mubr.f32.mxu0 0.0
    %1772 = vmatmul.mubr.f32.gmra.mrb[0].mxu0 %v1703
    %v1773 = vpop.f32.mrb[0].mxu0
    %v1774 = vadd.f32 0.0, %v1773
    %v1775 = vpop.f32.mrb[0].mxu0
    %1776 = vdwg.mxu0
    %v1777 = vsel %vm746, %v1774, -inf
    %1778 = vmax.xlane.f32.xlu0 %v1777
    %v1779 = vpop.xlane.xlu0 %1778
    %v1780 = vsub.f32 %v1774, %v1779
    %v1781 = vmul.f32 %v1780, 1.442695
    %v1782 = vpow.pop %v1781
    %v1783 = vsel %vm746, %v1782, 0.0
    %1784 = vadd.xlane.f32.xlu0 %v1783
    %v1785 = vpop.xlane.xlu0 %1784
    %v1786 = vrcp.pop %v1785
    %v1787 = vmul.f32 %v1782, %v1786
    %1788 = vrot.lane.b32.xlu0 %v735, 32
    %v1789 = vpop.permute.xlu0 %1788
    %v1792 = vsel %vm746, %v1787, 0
    %1794 = vmatprep.subr.mxu0 0.0
    %1795 = vmatpush1.msra.mxu0 %v1789
    %1796 = vmatprep.subr.mxu0 0.0
    %1797 = vmatpush1.msra.mxu0 0.0
    %1798 = vmatprep.subr.mxu0 0.0
    %1799 = vmatpush1.msra.mxu0 0.0
    %1800 = vmatprep.subr.mxu0 0.0
    %1801 = vmatpush1.msra.mxu0 0.0
    %1802 = vmatprep.subr.mxu0 0.0
    %1803 = vmatpush1.msra.mxu0 0.0
    %1804 = vmatprep.subr.mxu0 0.0
    %1805 = vmatpush1.msra.mxu0 0.0
    %1806 = vmatprep.subr.mxu0 0.0
    %1807 = vmatpush1.msra.mxu0 0.0
    %1808 = vmatprep.subr.mxu0 0.0
    %1809 = vmatpush1.msra.mxu0 0.0
    %1810 = vmatprep.subr.mxu0 0.0
    %1811 = vmatpush1.msra.mxu0 0.0
    %1812 = vmatprep.subr.mxu0 0.0
    %1813 = vmatpush1.msra.mxu0 0.0
    %1814 = vmatprep.subr.mxu0 0.0
    %1815 = vmatpush1.msra.mxu0 0.0
    %1816 = vmatprep.subr.mxu0 0.0
    %1817 = vmatpush1.msra.mxu0 0.0
    %1818 = vmatprep.subr.mxu0 0.0
    %1819 = vmatpush1.msra.mxu0 0.0
    %1820 = vmatprep.subr.mxu0 0.0
    %1821 = vmatpush1.msra.mxu0 0.0
    %1822 = vmatprep.subr.mxu0 0.0
    %1823 = vmatpush1.msra.mxu0 0.0
    %1824 = vmatprep.subr.mxu0 0.0
    %1825 = vmatpush1.msra.mxu0 0.0
    %1826 = vmatprep.subr.mxu0 0.0
    %1827 = vmatpush1.msra.mxu0 0.0
    %1828 = vmatprep.subr.mxu0 0.0
    %1829 = vmatpush1.msra.mxu0 0.0
    %1830 = vmatprep.subr.mxu0 0.0
    %1831 = vmatpush1.msra.mxu0 0.0
    %1832 = vmatprep.subr.mxu0 0.0
    %1833 = vmatpush1.msra.mxu0 0.0
    %1834 = vmatprep.subr.mxu0 0.0
    %1835 = vmatpush1.msra.mxu0 0.0
    %1836 = vmatprep.subr.mxu0 0.0
    %1837 = vmatpush1.msra.mxu0 0.0
    %1838 = vmatprep.subr.mxu0 0.0
    %1839 = vmatpush1.msra.mxu0 0.0
    %1840 = vmatprep.subr.mxu0 0.0
    %1841 = vmatpush1.msra.mxu0 0.0
    %1842 = vmatprep.subr.mxu0 0.0
    %1843 = vmatpush1.msra.mxu0 0.0
    %1844 = vmatprep.subr.mxu0 0.0
    %1845 = vmatpush1.msra.mxu0 0.0
    %1846 = vmatprep.subr.mxu0 0.0
    %1847 = vmatpush1.msra.mxu0 0.0
    %1848 = vmatprep.subr.mxu0 0.0
    %1849 = vmatpush1.msra.mxu0 0.0
    %1850 = vmatprep.subr.mxu0 0.0
    %1851 = vmatpush1.msra.mxu0 0.0
    %1852 = vmatprep.subr.mxu0 0.0
    %1853 = vmatpush1.msra.mxu0 0.0
    %1854 = vmatprep.subr.mxu0 0.0
    %1855 = vmatpush1.msra.mxu0 0.0
    %1856 = vmatprep.subr.mxu0 0.0
    %1857 = vmatpush1.msra.mxu0 0.0
    %1858 = vmatprep.mubr.f32.mxu0 0.0
    %1859 = vmatmul.mubr.f32.gmra.mrb[0].mxu0 %v1792
    %v1860 = vpop.f32.mrb[0].mxu0
    %v1861 = vadd.f32 0.0, %v1860
    %v1862 = vpop.f32.mrb[0].mxu0
    %1863 = vdwg.mxu0
    %v1865 = vsel %vm746, %v1861, 0
    %1867 = vmatprep.subr.mxu0 0.0
    %1868 = vmatpush1.msra.mxu0 %v742
    %1869 = vmatprep.subr.mxu0 0.0
    %1870 = vmatpush1.msra.mxu0 0.0
    %1871 = vmatprep.subr.mxu0 0.0
    %1872 = vmatpush1.msra.mxu0 0.0
    %1873 = vmatprep.subr.mxu0 0.0
    %1874 = vmatpush1.msra.mxu0 0.0
    %1875 = vmatprep.subr.mxu0 0.0
    %1876 = vmatpush1.msra.mxu0 0.0
    %1877 = vmatprep.subr.mxu0 0.0
    %1878 = vmatpush1.msra.mxu0 0.0
    %1879 = vmatprep.subr.mxu0 0.0
    %1880 = vmatpush1.msra.mxu0 0.0
    %1881 = vmatprep.subr.mxu0 0.0
    %1882 = vmatpush1.msra.mxu0 0.0
    %1883 = vmatprep.subr.mxu0 0.0
    %1884 = vmatpush1.msra.mxu0 0.0
    %1885 = vmatprep.subr.mxu0 0.0
    %1886 = vmatpush1.msra.mxu0 0.0
    %1887 = vmatprep.subr.mxu0 0.0
    %1888 = vmatpush1.msra.mxu0 0.0
    %1889 = vmatprep.subr.mxu0 0.0
    %1890 = vmatpush1.msra.mxu0 0.0
    %1891 = vmatprep.subr.mxu0 0.0
    %1892 = vmatpush1.msra.mxu0 0.0
    %1893 = vmatprep.subr.mxu0 0.0
    %1894 = vmatpush1.msra.mxu0 0.0
    %1895 = vmatprep.subr.mxu0 0.0
    %1896 = vmatpush1.msra.mxu0 0.0
    %1897 = vmatprep.subr.mxu0 0.0
    %1898 = vmatpush1.msra.mxu0 0.0
    %1899 = vmatprep.subr.mxu0 0.0
    %1900 = vmatpush1.msra.mxu0 0.0
    %1901 = vmatprep.subr.mxu0 0.0
    %1902 = vmatpush1.msra.mxu0 0.0
    %1903 = vmatprep.subr.mxu0 0.0
    %1904 = vmatpush1.msra.mxu0 0.0
    %1905 = vmatprep.subr.mxu0 0.0
    %1906 = vmatpush1.msra.mxu0 0.0
    %1907 = vmatprep.subr.mxu0 0.0
    %1908 = vmatpush1.msra.mxu0 0.0
    %1909 = vmatprep.subr.mxu0 0.0
    %1910 = vmatpush1.msra.mxu0 0.0
    %1911 = vmatprep.subr.mxu0 0.0
    %1912 = vmatpush1.msra.mxu0 0.0
    %1913 = vmatprep.subr.mxu0 0.0
    %1914 = vmatpush1.msra.mxu0 0.0
    %1915 = vmatprep.subr.mxu0 0.0
    %1916 = vmatpush1.msra.mxu0 0.0
    %1917 = vmatprep.subr.mxu0 0.0
    %1918 = vmatpush1.msra.mxu0 0.0
    %1919 = vmatprep.subr.mxu0 0.0
    %1920 = vmatpush1.msra.mxu0 0.0
    %1921 = vmatprep.subr.mxu0 0.0
    %1922 = vmatpush1.msra.mxu0 0.0
    %1923 = vmatprep.subr.mxu0 0.0
    %1924 = vmatpush1.msra.mxu0 0.0
    %1925 = vmatprep.subr.mxu0 0.0
    %1926 = vmatpush1.msra.mxu0 0.0
    %1927 = vmatprep.subr.mxu0 0.0
    %1928 = vmatpush1.msra.mxu0 0.0
    %1929 = vmatprep.subr.mxu0 0.0
    %1930 = vmatpush1.msra.mxu0 0.0
    %1931 = vmatprep.mubr.f32.mxu0 0.0
    %1932 = vmatmul.mubr.f32.gmra.mrb[0].mxu0 %v1865
    %v1933 = vpop.f32.mrb[0].mxu0
    %v1934 = vadd.f32 0.0, %v1933
    %v1935 = vpop.f32.mrb[0].mxu0
    %1936 = vdwg.mxu0
    %v1937 = vadd.f32 %v1698, %v1934
    %1938 = vrot.lane.b32.xlu0 %v649, 88
    %v1939 = vpop.permute.xlu0 %1938
    %1940 = vrot.lane.b32.xlu0 %v735, 88
    %v1941 = vpop.permute.xlu0 %1940
    %v1942 = vsel %vm746, %v1939, 0
    %v1944 = vsel %vm746, %v1941, 0
    %1946 = vmatprep.subr.mxu0 0.0
    %1947 = vmatpush1.xpose.msra.mxu0 %v1944
    %1948 = vmatprep.subr.mxu0 0.0
    %1949 = vmatpush1.xpose.msra.mxu0 0.0
    %1950 = vmatprep.subr.mxu0 0.0
    %1951 = vmatpush1.xpose.msra.mxu0 0.0
    %1952 = vmatprep.subr.mxu0 0.0
    %1953 = vmatpush1.xpose.msra.mxu0 0.0
    %1954 = vmatprep.subr.mxu0 0.0
    %1955 = vmatpush1.xpose.msra.mxu0 0.0
    %1956 = vmatprep.subr.mxu0 0.0
    %1957 = vmatpush1.xpose.msra.mxu0 0.0
    %1958 = vmatprep.subr.mxu0 0.0
    %1959 = vmatpush1.xpose.msra.mxu0 0.0
    %1960 = vmatprep.subr.mxu0 0.0
    %1961 = vmatpush1.xpose.msra.mxu0 0.0
    %1962 = vmatprep.subr.mxu0 0.0
    %1963 = vmatpush1.xpose.msra.mxu0 0.0
    %1964 = vmatprep.subr.mxu0 0.0
    %1965 = vmatpush1.xpose.msra.mxu0 0.0
    %1966 = vmatprep.subr.mxu0 0.0
    %1967 = vmatpush1.xpose.msra.mxu0 0.0
    %1968 = vmatprep.subr.mxu0 0.0
    %1969 = vmatpush1.xpose.msra.mxu0 0.0
    %1970 = vmatprep.subr.mxu0 0.0
    %1971 = vmatpush1.xpose.msra.mxu0 0.0
    %1972 = vmatprep.subr.mxu0 0.0
    %1973 = vmatpush1.xpose.msra.mxu0 0.0
    %1974 = vmatprep.subr.mxu0 0.0
    %1975 = vmatpush1.xpose.msra.mxu0 0.0
    %1976 = vmatprep.subr.mxu0 0.0
    %1977 = vmatpush1.xpose.msra.mxu0 0.0
    %1978 = vmatprep.subr.mxu0 0.0
    %1979 = vmatpush1.xpose.msra.mxu0 0.0
    %1980 = vmatprep.subr.mxu0 0.0
    %1981 = vmatpush1.xpose.msra.mxu0 0.0
    %1982 = vmatprep.subr.mxu0 0.0
    %1983 = vmatpush1.xpose.msra.mxu0 0.0
    %1984 = vmatprep.subr.mxu0 0.0
    %1985 = vmatpush1.xpose.msra.mxu0 0.0
    %1986 = vmatprep.subr.mxu0 0.0
    %1987 = vmatpush1.xpose.msra.mxu0 0.0
    %1988 = vmatprep.subr.mxu0 0.0
    %1989 = vmatpush1.xpose.msra.mxu0 0.0
    %1990 = vmatprep.subr.mxu0 0.0
    %1991 = vmatpush1.xpose.msra.mxu0 0.0
    %1992 = vmatprep.subr.mxu0 0.0
    %1993 = vmatpush1.xpose.msra.mxu0 0.0
    %1994 = vmatprep.subr.mxu0 0.0
    %1995 = vmatpush1.xpose.msra.mxu0 0.0
    %1996 = vmatprep.subr.mxu0 0.0
    %1997 = vmatpush1.xpose.msra.mxu0 0.0
    %1998 = vmatprep.subr.mxu0 0.0
    %1999 = vmatpush1.xpose.msra.mxu0 0.0
    %2000 = vmatprep.subr.mxu0 0.0
    %2001 = vmatpush1.xpose.msra.mxu0 0.0
    %2002 = vmatprep.subr.mxu0 0.0
    %2003 = vmatpush1.xpose.msra.mxu0 0.0
    %2004 = vmatprep.subr.mxu0 0.0
    %2005 = vmatpush1.xpose.msra.mxu0 0.0
    %2006 = vmatprep.subr.mxu0 0.0
    %2007 = vmatpush1.xpose.msra.mxu0 0.0
    %2008 = vmatprep.subr.mxu0 0.0
    %2009 = vmatpush1.xpose.msra.mxu0 0.0
    %2010 = vmatprep.mubr.f32.mxu0 0.0
    %2011 = vmatmul.mubr.f32.gmra.mrb[0].mxu0 %v1942
    %v2012 = vpop.f32.mrb[0].mxu0
    %v2013 = vadd.f32 0.0, %v2012
    %v2014 = vpop.f32.mrb[0].mxu0
    %2015 = vdwg.mxu0
    %v2016 = vsel %vm746, %v2013, -inf
    %2017 = vmax.xlane.f32.xlu0 %v2016
    %v2018 = vpop.xlane.xlu0 %2017
    %v2019 = vsub.f32 %v2013, %v2018
    %v2020 = vmul.f32 %v2019, 1.442695
    %v2021 = vpow.pop %v2020
    %v2022 = vsel %vm746, %v2021, 0.0
    %2023 = vadd.xlane.f32.xlu0 %v2022
    %v2024 = vpop.xlane.xlu0 %2023
    %v2025 = vrcp.pop %v2024
    %v2026 = vmul.f32 %v2021, %v2025
    %2027 = vrot.lane.b32.xlu0 %v735, 24
    %v2028 = vpop.permute.xlu0 %2027
    %v2031 = vsel %vm746, %v2026, 0
    %2033 = vmatprep.subr.mxu0 0.0
    %2034 = vmatpush1.msra.mxu0 %v2028
    %2035 = vmatprep.subr.mxu0 0.0
    %2036 = vmatpush1.msra.mxu0 0.0
    %2037 = vmatprep.subr.mxu0 0.0
    %2038 = vmatpush1.msra.mxu0 0.0
    %2039 = vmatprep.subr.mxu0 0.0
    %2040 = vmatpush1.msra.mxu0 0.0
    %2041 = vmatprep.subr.mxu0 0.0
    %2042 = vmatpush1.msra.mxu0 0.0
    %2043 = vmatprep.subr.mxu0 0.0
    %2044 = vmatpush1.msra.mxu0 0.0
    %2045 = vmatprep.subr.mxu0 0.0
    %2046 = vmatpush1.msra.mxu0 0.0
    %2047 = vmatprep.subr.mxu0 0.0
    %2048 = vmatpush1.msra.mxu0 0.0
    %2049 = vmatprep.subr.mxu0 0.0
    %2050 = vmatpush1.msra.mxu0 0.0
    %2051 = vmatprep.subr.mxu0 0.0
    %2052 = vmatpush1.msra.mxu0 0.0
    %2053 = vmatprep.subr.mxu0 0.0
    %2054 = vmatpush1.msra.mxu0 0.0
    %2055 = vmatprep.subr.mxu0 0.0
    %2056 = vmatpush1.msra.mxu0 0.0
    %2057 = vmatprep.subr.mxu0 0.0
    %2058 = vmatpush1.msra.mxu0 0.0
    %2059 = vmatprep.subr.mxu0 0.0
    %2060 = vmatpush1.msra.mxu0 0.0
    %2061 = vmatprep.subr.mxu0 0.0
    %2062 = vmatpush1.msra.mxu0 0.0
    %2063 = vmatprep.subr.mxu0 0.0
    %2064 = vmatpush1.msra.mxu0 0.0
    %2065 = vmatprep.subr.mxu0 0.0
    %2066 = vmatpush1.msra.mxu0 0.0
    %2067 = vmatprep.subr.mxu0 0.0
    %2068 = vmatpush1.msra.mxu0 0.0
    %2069 = vmatprep.subr.mxu0 0.0
    %2070 = vmatpush1.msra.mxu0 0.0
    %2071 = vmatprep.subr.mxu0 0.0
    %2072 = vmatpush1.msra.mxu0 0.0
    %2073 = vmatprep.subr.mxu0 0.0
    %2074 = vmatpush1.msra.mxu0 0.0
    %2075 = vmatprep.subr.mxu0 0.0
    %2076 = vmatpush1.msra.mxu0 0.0
    %2077 = vmatprep.subr.mxu0 0.0
    %2078 = vmatpush1.msra.mxu0 0.0
    %2079 = vmatprep.subr.mxu0 0.0
    %2080 = vmatpush1.msra.mxu0 0.0
    %2081 = vmatprep.subr.mxu0 0.0
    %2082 = vmatpush1.msra.mxu0 0.0
    %2083 = vmatprep.subr.mxu0 0.0
    %2084 = vmatpush1.msra.mxu0 0.0
    %2085 = vmatprep.subr.mxu0 0.0
    %2086 = vmatpush1.msra.mxu0 0.0
    %2087 = vmatprep.subr.mxu0 0.0
    %2088 = vmatpush1.msra.mxu0 0.0
    %2089 = vmatprep.subr.mxu0 0.0
    %2090 = vmatpush1.msra.mxu0 0.0
    %2091 = vmatprep.subr.mxu0 0.0
    %2092 = vmatpush1.msra.mxu0 0.0
    %2093 = vmatprep.subr.mxu0 0.0
    %2094 = vmatpush1.msra.mxu0 0.0
    %2095 = vmatprep.subr.mxu0 0.0
    %2096 = vmatpush1.msra.mxu0 0.0
    %2097 = vmatprep.mubr.f32.mxu0 0.0
    %2098 = vmatmul.mubr.f32.gmra.mrb[0].mxu0 %v2031
    %v2099 = vpop.f32.mrb[0].mxu0
    %v2100 = vadd.f32 0.0, %v2099
    %v2101 = vpop.f32.mrb[0].mxu0
    %2102 = vdwg.mxu0
    %v2104 = vsel %vm746, %v2100, 0
    %2106 = vmatprep.subr.mxu0 0.0
    %2107 = vmatpush1.msra.mxu0 %v743
    %2108 = vmatprep.subr.mxu0 0.0
    %2109 = vmatpush1.msra.mxu0 0.0
    %2110 = vmatprep.subr.mxu0 0.0
    %2111 = vmatpush1.msra.mxu0 0.0
    %2112 = vmatprep.subr.mxu0 0.0
    %2113 = vmatpush1.msra.mxu0 0.0
    %2114 = vmatprep.subr.mxu0 0.0
    %2115 = vmatpush1.msra.mxu0 0.0
    %2116 = vmatprep.subr.mxu0 0.0
    %2117 = vmatpush1.msra.mxu0 0.0
    %2118 = vmatprep.subr.mxu0 0.0
    %2119 = vmatpush1.msra.mxu0 0.0
    %2120 = vmatprep.subr.mxu0 0.0
    %2121 = vmatpush1.msra.mxu0 0.0
    %2122 = vmatprep.subr.mxu0 0.0
    %2123 = vmatpush1.msra.mxu0 0.0
    %2124 = vmatprep.subr.mxu0 0.0
    %2125 = vmatpush1.msra.mxu0 0.0
    %2126 = vmatprep.subr.mxu0 0.0
    %2127 = vmatpush1.msra.mxu0 0.0
    %2128 = vmatprep.subr.mxu0 0.0
    %2129 = vmatpush1.msra.mxu0 0.0
    %2130 = vmatprep.subr.mxu0 0.0
    %2131 = vmatpush1.msra.mxu0 0.0
    %2132 = vmatprep.subr.mxu0 0.0
    %2133 = vmatpush1.msra.mxu0 0.0
    %2134 = vmatprep.subr.mxu0 0.0
    %2135 = vmatpush1.msra.mxu0 0.0
    %2136 = vmatprep.subr.mxu0 0.0
    %2137 = vmatpush1.msra.mxu0 0.0
    %2138 = vmatprep.subr.mxu0 0.0
    %2139 = vmatpush1.msra.mxu0 0.0
    %2140 = vmatprep.subr.mxu0 0.0
    %2141 = vmatpush1.msra.mxu0 0.0
    %2142 = vmatprep.subr.mxu0 0.0
    %2143 = vmatpush1.msra.mxu0 0.0
    %2144 = vmatprep.subr.mxu0 0.0
    %2145 = vmatpush1.msra.mxu0 0.0
    %2146 = vmatprep.subr.mxu0 0.0
    %2147 = vmatpush1.msra.mxu0 0.0
    %2148 = vmatprep.subr.mxu0 0.0
    %2149 = vmatpush1.msra.mxu0 0.0
    %2150 = vmatprep.subr.mxu0 0.0
    %2151 = vmatpush1.msra.mxu0 0.0
    %2152 = vmatprep.subr.mxu0 0.0
    %2153 = vmatpush1.msra.mxu0 0.0
    %2154 = vmatprep.subr.mxu0 0.0
    %2155 = vmatpush1.msra.mxu0 0.0
    %2156 = vmatprep.subr.mxu0 0.0
    %2157 = vmatpush1.msra.mxu0 0.0
    %2158 = vmatprep.subr.mxu0 0.0
    %2159 = vmatpush1.msra.mxu0 0.0
    %2160 = vmatprep.subr.mxu0 0.0
    %2161 = vmatpush1.msra.mxu0 0.0
    %2162 = vmatprep.subr.mxu0 0.0
    %2163 = vmatpush1.msra.mxu0 0.0
    %2164 = vmatprep.subr.mxu0 0.0
    %2165 = vmatpush1.msra.mxu0 0.0
    %2166 = vmatprep.subr.mxu0 0.0
    %2167 = vmatpush1.msra.mxu0 0.0
    %2168 = vmatprep.subr.mxu0 0.0
    %2169 = vmatpush1.msra.mxu0 0.0
    %2170 = vmatprep.mubr.f32.mxu0 0.0
    %2171 = vmatmul.mubr.f32.gmra.mrb[0].mxu0 %v2104
    %v2172 = vpop.f32.mrb[0].mxu0
    %v2173 = vadd.f32 0.0, %v2172
    %v2174 = vpop.f32.mrb[0].mxu0
    %2175 = vdwg.mxu0
    %v2176 = vadd.f32 %v1937, %v2173
    %2177 = vrot.lane.b32.xlu0 %v649, 80
    %v2178 = vpop.permute.xlu0 %2177
    %2179 = vrot.lane.b32.xlu0 %v735, 80
    %v2180 = vpop.permute.xlu0 %2179
    %v2181 = vsel %vm746, %v2178, 0
    %v2183 = vsel %vm746, %v2180, 0
    %2185 = vmatprep.subr.mxu0 0.0
    %2186 = vmatpush1.xpose.msra.mxu0 %v2183
    %2187 = vmatprep.subr.mxu0 0.0
    %2188 = vmatpush1.xpose.msra.mxu0 0.0
    %2189 = vmatprep.subr.mxu0 0.0
    %2190 = vmatpush1.xpose.msra.mxu0 0.0
    %2191 = vmatprep.subr.mxu0 0.0
    %2192 = vmatpush1.xpose.msra.mxu0 0.0
    %2193 = vmatprep.subr.mxu0 0.0
    %2194 = vmatpush1.xpose.msra.mxu0 0.0
    %2195 = vmatprep.subr.mxu0 0.0
    %2196 = vmatpush1.xpose.msra.mxu0 0.0
    %2197 = vmatprep.subr.mxu0 0.0
    %2198 = vmatpush1.xpose.msra.mxu0 0.0
    %2199 = vmatprep.subr.mxu0 0.0
    %2200 = vmatpush1.xpose.msra.mxu0 0.0
    %2201 = vmatprep.subr.mxu0 0.0
    %2202 = vmatpush1.xpose.msra.mxu0 0.0
    %2203 = vmatprep.subr.mxu0 0.0
    %2204 = vmatpush1.xpose.msra.mxu0 0.0
    %2205 = vmatprep.subr.mxu0 0.0
    %2206 = vmatpush1.xpose.msra.mxu0 0.0
    %2207 = vmatprep.subr.mxu0 0.0
    %2208 = vmatpush1.xpose.msra.mxu0 0.0
    %2209 = vmatprep.subr.mxu0 0.0
    %2210 = vmatpush1.xpose.msra.mxu0 0.0
    %2211 = vmatprep.subr.mxu0 0.0
    %2212 = vmatpush1.xpose.msra.mxu0 0.0
    %2213 = vmatprep.subr.mxu0 0.0
    %2214 = vmatpush1.xpose.msra.mxu0 0.0
    %2215 = vmatprep.subr.mxu0 0.0
    %2216 = vmatpush1.xpose.msra.mxu0 0.0
    %2217 = vmatprep.subr.mxu0 0.0
    %2218 = vmatpush1.xpose.msra.mxu0 0.0
    %2219 = vmatprep.subr.mxu0 0.0
    %2220 = vmatpush1.xpose.msra.mxu0 0.0
    %2221 = vmatprep.subr.mxu0 0.0
    %2222 = vmatpush1.xpose.msra.mxu0 0.0
    %2223 = vmatprep.subr.mxu0 0.0
    %2224 = vmatpush1.xpose.msra.mxu0 0.0
    %2225 = vmatprep.subr.mxu0 0.0
    %2226 = vmatpush1.xpose.msra.mxu0 0.0
    %2227 = vmatprep.subr.mxu0 0.0
    %2228 = vmatpush1.xpose.msra.mxu0 0.0
    %2229 = vmatprep.subr.mxu0 0.0
    %2230 = vmatpush1.xpose.msra.mxu0 0.0
    %2231 = vmatprep.subr.mxu0 0.0
    %2232 = vmatpush1.xpose.msra.mxu0 0.0
    %2233 = vmatprep.subr.mxu0 0.0
    %2234 = vmatpush1.xpose.msra.mxu0 0.0
    %2235 = vmatprep.subr.mxu0 0.0
    %2236 = vmatpush1.xpose.msra.mxu0 0.0
    %2237 = vmatprep.subr.mxu0 0.0
    %2238 = vmatpush1.xpose.msra.mxu0 0.0
    %2239 = vmatprep.subr.mxu0 0.0
    %2240 = vmatpush1.xpose.msra.mxu0 0.0
    %2241 = vmatprep.subr.mxu0 0.0
    %2242 = vmatpush1.xpose.msra.mxu0 0.0
    %2243 = vmatprep.subr.mxu0 0.0
    %2244 = vmatpush1.xpose.msra.mxu0 0.0
    %2245 = vmatprep.subr.mxu0 0.0
    %2246 = vmatpush1.xpose.msra.mxu0 0.0
    %2247 = vmatprep.subr.mxu0 0.0
    %2248 = vmatpush1.xpose.msra.mxu0 0.0
    %2249 = vmatprep.mubr.f32.mxu0 0.0
    %2250 = vmatmul.mubr.f32.gmra.mrb[0].mxu0 %v2181
    %v2251 = vpop.f32.mrb[0].mxu0
    %v2252 = vadd.f32 0.0, %v2251
    %v2253 = vpop.f32.mrb[0].mxu0
    %2254 = vdwg.mxu0
    %v2255 = vsel %vm746, %v2252, -inf
    %2256 = vmax.xlane.f32.xlu0 %v2255
    %v2257 = vpop.xlane.xlu0 %2256
    %v2258 = vsub.f32 %v2252, %v2257
    %v2259 = vmul.f32 %v2258, 1.442695
    %v2260 = vpow.pop %v2259
    %v2261 = vsel %vm746, %v2260, 0.0
    %2262 = vadd.xlane.f32.xlu0 %v2261
    %v2263 = vpop.xlane.xlu0 %2262
    %v2264 = vrcp.pop %v2263
    %v2265 = vmul.f32 %v2260, %v2264
    %2266 = vrot.lane.b32.xlu0 %v735, 16
    %v2267 = vpop.permute.xlu0 %2266
    %v2270 = vsel %vm746, %v2265, 0
    %2272 = vmatprep.subr.mxu0 0.0
    %2273 = vmatpush1.msra.mxu0 %v2267
    %2274 = vmatprep.subr.mxu0 0.0
    %2275 = vmatpush1.msra.mxu0 0.0
    %2276 = vmatprep.subr.mxu0 0.0
    %2277 = vmatpush1.msra.mxu0 0.0
    %2278 = vmatprep.subr.mxu0 0.0
    %2279 = vmatpush1.msra.mxu0 0.0
    %2280 = vmatprep.subr.mxu0 0.0
    %2281 = vmatpush1.msra.mxu0 0.0
    %2282 = vmatprep.subr.mxu0 0.0
    %2283 = vmatpush1.msra.mxu0 0.0
    %2284 = vmatprep.subr.mxu0 0.0
    %2285 = vmatpush1.msra.mxu0 0.0
    %2286 = vmatprep.subr.mxu0 0.0
    %2287 = vmatpush1.msra.mxu0 0.0
    %2288 = vmatprep.subr.mxu0 0.0
    %2289 = vmatpush1.msra.mxu0 0.0
    %2290 = vmatprep.subr.mxu0 0.0
    %2291 = vmatpush1.msra.mxu0 0.0
    %2292 = vmatprep.subr.mxu0 0.0
    %2293 = vmatpush1.msra.mxu0 0.0
    %2294 = vmatprep.subr.mxu0 0.0
    %2295 = vmatpush1.msra.mxu0 0.0
    %2296 = vmatprep.subr.mxu0 0.0
    %2297 = vmatpush1.msra.mxu0 0.0
    %2298 = vmatprep.subr.mxu0 0.0
    %2299 = vmatpush1.msra.mxu0 0.0
    %2300 = vmatprep.subr.mxu0 0.0
    %2301 = vmatpush1.msra.mxu0 0.0
    %2302 = vmatprep.subr.mxu0 0.0
    %2303 = vmatpush1.msra.mxu0 0.0
    %2304 = vmatprep.subr.mxu0 0.0
    %2305 = vmatpush1.msra.mxu0 0.0
    %2306 = vmatprep.subr.mxu0 0.0
    %2307 = vmatpush1.msra.mxu0 0.0
    %2308 = vmatprep.subr.mxu0 0.0
    %2309 = vmatpush1.msra.mxu0 0.0
    %2310 = vmatprep.subr.mxu0 0.0
    %2311 = vmatpush1.msra.mxu0 0.0
    %2312 = vmatprep.subr.mxu0 0.0
    %2313 = vmatpush1.msra.mxu0 0.0
    %2314 = vmatprep.subr.mxu0 0.0
    %2315 = vmatpush1.msra.mxu0 0.0
    %2316 = vmatprep.subr.mxu0 0.0
    %2317 = vmatpush1.msra.mxu0 0.0
    %2318 = vmatprep.subr.mxu0 0.0
    %2319 = vmatpush1.msra.mxu0 0.0
    %2320 = vmatprep.subr.mxu0 0.0
    %2321 = vmatpush1.msra.mxu0 0.0
    %2322 = vmatprep.subr.mxu0 0.0
    %2323 = vmatpush1.msra.mxu0 0.0
    %2324 = vmatprep.subr.mxu0 0.0
    %2325 = vmatpush1.msra.mxu0 0.0
    %2326 = vmatprep.subr.mxu0 0.0
    %2327 = vmatpush1.msra.mxu0 0.0
    %2328 = vmatprep.subr.mxu0 0.0
    %2329 = vmatpush1.msra.mxu0 0.0
    %2330 = vmatprep.subr.mxu0 0.0
    %2331 = vmatpush1.msra.mxu0 0.0
    %2332 = vmatprep.subr.mxu0 0.0
    %2333 = vmatpush1.msra.mxu0 0.0
    %2334 = vmatprep.subr.mxu0 0.0
    %2335 = vmatpush1.msra.mxu0 0.0
    %2336 = vmatprep.mubr.f32.mxu0 0.0
    %2337 = vmatmul.mubr.f32.gmra.mrb[0].mxu0 %v2270
    %v2338 = vpop.f32.mrb[0].mxu0
    %v2339 = vadd.f32 0.0, %v2338
    %v2340 = vpop.f32.mrb[0].mxu0
    %2341 = vdwg.mxu0
    %v2343 = vsel %vm746, %v2339, 0
    %2345 = vmatprep.subr.mxu0 0.0
    %2346 = vmatpush1.msra.mxu0 %v744
    %2347 = vmatprep.subr.mxu0 0.0
    %2348 = vmatpush1.msra.mxu0 0.0
    %2349 = vmatprep.subr.mxu0 0.0
    %2350 = vmatpush1.msra.mxu0 0.0
    %2351 = vmatprep.subr.mxu0 0.0
    %2352 = vmatpush1.msra.mxu0 0.0
    %2353 = vmatprep.subr.mxu0 0.0
    %2354 = vmatpush1.msra.mxu0 0.0
    %2355 = vmatprep.subr.mxu0 0.0
    %2356 = vmatpush1.msra.mxu0 0.0
    %2357 = vmatprep.subr.mxu0 0.0
    %2358 = vmatpush1.msra.mxu0 0.0
    %2359 = vmatprep.subr.mxu0 0.0
    %2360 = vmatpush1.msra.mxu0 0.0
    %2361 = vmatprep.subr.mxu0 0.0
    %2362 = vmatpush1.msra.mxu0 0.0
    %2363 = vmatprep.subr.mxu0 0.0
    %2364 = vmatpush1.msra.mxu0 0.0
    %2365 = vmatprep.subr.mxu0 0.0
    %2366 = vmatpush1.msra.mxu0 0.0
    %2367 = vmatprep.subr.mxu0 0.0
    %2368 = vmatpush1.msra.mxu0 0.0
    %2369 = vmatprep.subr.mxu0 0.0
    %2370 = vmatpush1.msra.mxu0 0.0
    %2371 = vmatprep.subr.mxu0 0.0
    %2372 = vmatpush1.msra.mxu0 0.0
    %2373 = vmatprep.subr.mxu0 0.0
    %2374 = vmatpush1.msra.mxu0 0.0
    %2375 = vmatprep.subr.mxu0 0.0
    %2376 = vmatpush1.msra.mxu0 0.0
    %2377 = vmatprep.subr.mxu0 0.0
    %2378 = vmatpush1.msra.mxu0 0.0
    %2379 = vmatprep.subr.mxu0 0.0
    %2380 = vmatpush1.msra.mxu0 0.0
    %2381 = vmatprep.subr.mxu0 0.0
    %2382 = vmatpush1.msra.mxu0 0.0
    %2383 = vmatprep.subr.mxu0 0.0
    %2384 = vmatpush1.msra.mxu0 0.0
    %2385 = vmatprep.subr.mxu0 0.0
    %2386 = vmatpush1.msra.mxu0 0.0
    %2387 = vmatprep.subr.mxu0 0.0
    %2388 = vmatpush1.msra.mxu0 0.0
    %2389 = vmatprep.subr.mxu0 0.0
    %2390 = vmatpush1.msra.mxu0 0.0
    %2391 = vmatprep.subr.mxu0 0.0
    %2392 = vmatpush1.msra.mxu0 0.0
    %2393 = vmatprep.subr.mxu0 0.0
    %2394 = vmatpush1.msra.mxu0 0.0
    %2395 = vmatprep.subr.mxu0 0.0
    %2396 = vmatpush1.msra.mxu0 0.0
    %2397 = vmatprep.subr.mxu0 0.0
    %2398 = vmatpush1.msra.mxu0 0.0
    %2399 = vmatprep.subr.mxu0 0.0
    %2400 = vmatpush1.msra.mxu0 0.0
    %2401 = vmatprep.subr.mxu0 0.0
    %2402 = vmatpush1.msra.mxu0 0.0
    %2403 = vmatprep.subr.mxu0 0.0
    %2404 = vmatpush1.msra.mxu0 0.0
    %2405 = vmatprep.subr.mxu0 0.0
    %2406 = vmatpush1.msra.mxu0 0.0
    %2407 = vmatprep.subr.mxu0 0.0
    %2408 = vmatpush1.msra.mxu0 0.0
    %2409 = vmatprep.mubr.f32.mxu0 0.0
    %2410 = vmatmul.mubr.f32.gmra.mrb[0].mxu0 %v2343
    %v2411 = vpop.f32.mrb[0].mxu0
    %v2412 = vadd.f32 0.0, %v2411
    %v2413 = vpop.f32.mrb[0].mxu0
    %2414 = vdwg.mxu0
    %v2415 = vadd.f32 %v2176, %v2412
    %2416 = vrot.lane.b32.xlu0 %v649, 72
    %v2417 = vpop.permute.xlu0 %2416
    %2418 = vrot.lane.b32.xlu0 %v735, 72
    %v2419 = vpop.permute.xlu0 %2418
    %v2420 = vsel %vm746, %v2417, 0
    %v2422 = vsel %vm746, %v2419, 0
    %2424 = vmatprep.subr.mxu0 0.0
    %2425 = vmatpush1.xpose.msra.mxu0 %v2422
    %2426 = vmatprep.subr.mxu0 0.0
    %2427 = vmatpush1.xpose.msra.mxu0 0.0
    %2428 = vmatprep.subr.mxu0 0.0
    %2429 = vmatpush1.xpose.msra.mxu0 0.0
    %2430 = vmatprep.subr.mxu0 0.0
    %2431 = vmatpush1.xpose.msra.mxu0 0.0
    %2432 = vmatprep.subr.mxu0 0.0
    %2433 = vmatpush1.xpose.msra.mxu0 0.0
    %2434 = vmatprep.subr.mxu0 0.0
    %2435 = vmatpush1.xpose.msra.mxu0 0.0
    %2436 = vmatprep.subr.mxu0 0.0
    %2437 = vmatpush1.xpose.msra.mxu0 0.0
    %2438 = vmatprep.subr.mxu0 0.0
    %2439 = vmatpush1.xpose.msra.mxu0 0.0
    %2440 = vmatprep.subr.mxu0 0.0
    %2441 = vmatpush1.xpose.msra.mxu0 0.0
    %2442 = vmatprep.subr.mxu0 0.0
    %2443 = vmatpush1.xpose.msra.mxu0 0.0
    %2444 = vmatprep.subr.mxu0 0.0
    %2445 = vmatpush1.xpose.msra.mxu0 0.0
    %2446 = vmatprep.subr.mxu0 0.0
    %2447 = vmatpush1.xpose.msra.mxu0 0.0
    %2448 = vmatprep.subr.mxu0 0.0
    %2449 = vmatpush1.xpose.msra.mxu0 0.0
    %2450 = vmatprep.subr.mxu0 0.0
    %2451 = vmatpush1.xpose.msra.mxu0 0.0
    %2452 = vmatprep.subr.mxu0 0.0
    %2453 = vmatpush1.xpose.msra.mxu0 0.0
    %2454 = vmatprep.subr.mxu0 0.0
    %2455 = vmatpush1.xpose.msra.mxu0 0.0
    %2456 = vmatprep.subr.mxu0 0.0
    %2457 = vmatpush1.xpose.msra.mxu0 0.0
    %2458 = vmatprep.subr.mxu0 0.0
    %2459 = vmatpush1.xpose.msra.mxu0 0.0
    %2460 = vmatprep.subr.mxu0 0.0
    %2461 = vmatpush1.xpose.msra.mxu0 0.0
    %2462 = vmatprep.subr.mxu0 0.0
    %2463 = vmatpush1.xpose.msra.mxu0 0.0
    %2464 = vmatprep.subr.mxu0 0.0
    %2465 = vmatpush1.xpose.msra.mxu0 0.0
    %2466 = vmatprep.subr.mxu0 0.0
    %2467 = vmatpush1.xpose.msra.mxu0 0.0
    %2468 = vmatprep.subr.mxu0 0.0
    %2469 = vmatpush1.xpose.msra.mxu0 0.0
    %2470 = vmatprep.subr.mxu0 0.0
    %2471 = vmatpush1.xpose.msra.mxu0 0.0
    %2472 = vmatprep.subr.mxu0 0.0
    %2473 = vmatpush1.xpose.msra.mxu0 0.0
    %2474 = vmatprep.subr.mxu0 0.0
    %2475 = vmatpush1.xpose.msra.mxu0 0.0
    %2476 = vmatprep.subr.mxu0 0.0
    %2477 = vmatpush1.xpose.msra.mxu0 0.0
    %2478 = vmatprep.subr.mxu0 0.0
    %2479 = vmatpush1.xpose.msra.mxu0 0.0
    %2480 = vmatprep.subr.mxu0 0.0
    %2481 = vmatpush1.xpose.msra.mxu0 0.0
    %2482 = vmatprep.subr.mxu0 0.0
    %2483 = vmatpush1.xpose.msra.mxu0 0.0
    %2484 = vmatprep.subr.mxu0 0.0
    %2485 = vmatpush1.xpose.msra.mxu0 0.0
    %2486 = vmatprep.subr.mxu0 0.0
    %2487 = vmatpush1.xpose.msra.mxu0 0.0
    %2488 = vmatprep.mubr.f32.mxu0 0.0
    %2489 = vmatmul.mubr.f32.gmra.mrb[0].mxu0 %v2420
    %v2490 = vpop.f32.mrb[0].mxu0
    %v2491 = vadd.f32 0.0, %v2490
    %v2492 = vpop.f32.mrb[0].mxu0
    %2493 = vdwg.mxu0
    %v2494 = vsel %vm746, %v2491, -inf
    %2495 = vmax.xlane.f32.xlu0 %v2494
    %v2496 = vpop.xlane.xlu0 %2495
    %v2497 = vsub.f32 %v2491, %v2496
    %v2498 = vmul.f32 %v2497, 1.442695
    %v2499 = vpow.pop %v2498
    %v2500 = vsel %vm746, %v2499, 0.0
    %2501 = vadd.xlane.f32.xlu0 %v2500
    %v2502 = vpop.xlane.xlu0 %2501
    %v2503 = vrcp.pop %v2502
    %v2504 = vmul.f32 %v2499, %v2503
    %2505 = vrot.lane.b32.xlu0 %v735, 8
    %v2506 = vpop.permute.xlu0 %2505
    %v2509 = vsel %vm746, %v2504, 0
    %2511 = vmatprep.subr.mxu0 0.0
    %2512 = vmatpush1.msra.mxu0 %v2506
    %2513 = vmatprep.subr.mxu0 0.0
    %2514 = vmatpush1.msra.mxu0 0.0
    %2515 = vmatprep.subr.mxu0 0.0
    %2516 = vmatpush1.msra.mxu0 0.0
    %2517 = vmatprep.subr.mxu0 0.0
    %2518 = vmatpush1.msra.mxu0 0.0
    %2519 = vmatprep.subr.mxu0 0.0
    %2520 = vmatpush1.msra.mxu0 0.0
    %2521 = vmatprep.subr.mxu0 0.0
    %2522 = vmatpush1.msra.mxu0 0.0
    %2523 = vmatprep.subr.mxu0 0.0
    %2524 = vmatpush1.msra.mxu0 0.0
    %2525 = vmatprep.subr.mxu0 0.0
    %2526 = vmatpush1.msra.mxu0 0.0
    %2527 = vmatprep.subr.mxu0 0.0
    %2528 = vmatpush1.msra.mxu0 0.0
    %2529 = vmatprep.subr.mxu0 0.0
    %2530 = vmatpush1.msra.mxu0 0.0
    %2531 = vmatprep.subr.mxu0 0.0
    %2532 = vmatpush1.msra.mxu0 0.0
    %2533 = vmatprep.subr.mxu0 0.0
    %2534 = vmatpush1.msra.mxu0 0.0
    %2535 = vmatprep.subr.mxu0 0.0
    %2536 = vmatpush1.msra.mxu0 0.0
    %2537 = vmatprep.subr.mxu0 0.0
    %2538 = vmatpush1.msra.mxu0 0.0
    %2539 = vmatprep.subr.mxu0 0.0
    %2540 = vmatpush1.msra.mxu0 0.0
    %2541 = vmatprep.subr.mxu0 0.0
    %2542 = vmatpush1.msra.mxu0 0.0
    %2543 = vmatprep.subr.mxu0 0.0
    %2544 = vmatpush1.msra.mxu0 0.0
    %2545 = vmatprep.subr.mxu0 0.0
    %2546 = vmatpush1.msra.mxu0 0.0
    %2547 = vmatprep.subr.mxu0 0.0
    %2548 = vmatpush1.msra.mxu0 0.0
    %2549 = vmatprep.subr.mxu0 0.0
    %2550 = vmatpush1.msra.mxu0 0.0
    %2551 = vmatprep.subr.mxu0 0.0
    %2552 = vmatpush1.msra.mxu0 0.0
    %2553 = vmatprep.subr.mxu0 0.0
    %2554 = vmatpush1.msra.mxu0 0.0
    %2555 = vmatprep.subr.mxu0 0.0
    %2556 = vmatpush1.msra.mxu0 0.0
    %2557 = vmatprep.subr.mxu0 0.0
    %2558 = vmatpush1.msra.mxu0 0.0
    %2559 = vmatprep.subr.mxu0 0.0
    %2560 = vmatpush1.msra.mxu0 0.0
    %2561 = vmatprep.subr.mxu0 0.0
    %2562 = vmatpush1.msra.mxu0 0.0
    %2563 = vmatprep.subr.mxu0 0.0
    %2564 = vmatpush1.msra.mxu0 0.0
    %2565 = vmatprep.subr.mxu0 0.0
    %2566 = vmatpush1.msra.mxu0 0.0
    %2567 = vmatprep.subr.mxu0 0.0
    %2568 = vmatpush1.msra.mxu0 0.0
    %2569 = vmatprep.subr.mxu0 0.0
    %2570 = vmatpush1.msra.mxu0 0.0
    %2571 = vmatprep.subr.mxu0 0.0
    %2572 = vmatpush1.msra.mxu0 0.0
    %2573 = vmatprep.subr.mxu0 0.0
    %2574 = vmatpush1.msra.mxu0 0.0
    %2575 = vmatprep.mubr.f32.mxu0 0.0
    %2576 = vmatmul.mubr.f32.gmra.mrb[0].mxu0 %v2509
    %v2577 = vpop.f32.mrb[0].mxu0
    %v2578 = vadd.f32 0.0, %v2577
    %v2579 = vpop.f32.mrb[0].mxu0
    %2580 = vdwg.mxu0
    %v2582 = vsel %vm746, %v2578, 0
    %2584 = vmatprep.subr.mxu0 0.0
    %2585 = vmatpush1.msra.mxu0 %v745
    %2586 = vmatprep.subr.mxu0 0.0
    %2587 = vmatpush1.msra.mxu0 0.0
    %2588 = vmatprep.subr.mxu0 0.0
    %2589 = vmatpush1.msra.mxu0 0.0
    %2590 = vmatprep.subr.mxu0 0.0
    %2591 = vmatpush1.msra.mxu0 0.0
    %2592 = vmatprep.subr.mxu0 0.0
    %2593 = vmatpush1.msra.mxu0 0.0
    %2594 = vmatprep.subr.mxu0 0.0
    %2595 = vmatpush1.msra.mxu0 0.0
    %2596 = vmatprep.subr.mxu0 0.0
    %2597 = vmatpush1.msra.mxu0 0.0
    %2598 = vmatprep.subr.mxu0 0.0
    %2599 = vmatpush1.msra.mxu0 0.0
    %2600 = vmatprep.subr.mxu0 0.0
    %2601 = vmatpush1.msra.mxu0 0.0
    %2602 = vmatprep.subr.mxu0 0.0
    %2603 = vmatpush1.msra.mxu0 0.0
    %2604 = vmatprep.subr.mxu0 0.0
    %2605 = vmatpush1.msra.mxu0 0.0
    %2606 = vmatprep.subr.mxu0 0.0
    %2607 = vmatpush1.msra.mxu0 0.0
    %2608 = vmatprep.subr.mxu0 0.0
    %2609 = vmatpush1.msra.mxu0 0.0
    %2610 = vmatprep.subr.mxu0 0.0
    %2611 = vmatpush1.msra.mxu0 0.0
    %2612 = vmatprep.subr.mxu0 0.0
    %2613 = vmatpush1.msra.mxu0 0.0
    %2614 = vmatprep.subr.mxu0 0.0
    %2615 = vmatpush1.msra.mxu0 0.0
    %2616 = vmatprep.subr.mxu0 0.0
    %2617 = vmatpush1.msra.mxu0 0.0
    %2618 = vmatprep.subr.mxu0 0.0
    %2619 = vmatpush1.msra.mxu0 0.0
    %2620 = vmatprep.subr.mxu0 0.0
    %2621 = vmatpush1.msra.mxu0 0.0
    %2622 = vmatprep.subr.mxu0 0.0
    %2623 = vmatpush1.msra.mxu0 0.0
    %2624 = vmatprep.subr.mxu0 0.0
    %2625 = vmatpush1.msra.mxu0 0.0
    %2626 = vmatprep.subr.mxu0 0.0
    %2627 = vmatpush1.msra.mxu0 0.0
    %2628 = vmatprep.subr.mxu0 0.0
    %2629 = vmatpush1.msra.mxu0 0.0
    %2630 = vmatprep.subr.mxu0 0.0
    %2631 = vmatpush1.msra.mxu0 0.0
    %2632 = vmatprep.subr.mxu0 0.0
    %2633 = vmatpush1.msra.mxu0 0.0
    %2634 = vmatprep.subr.mxu0 0.0
    %2635 = vmatpush1.msra.mxu0 0.0
    %2636 = vmatprep.subr.mxu0 0.0
    %2637 = vmatpush1.msra.mxu0 0.0
    %2638 = vmatprep.subr.mxu0 0.0
    %2639 = vmatpush1.msra.mxu0 0.0
    %2640 = vmatprep.subr.mxu0 0.0
    %2641 = vmatpush1.msra.mxu0 0.0
    %2642 = vmatprep.subr.mxu0 0.0
    %2643 = vmatpush1.msra.mxu0 0.0
    %2644 = vmatprep.subr.mxu0 0.0
    %2645 = vmatpush1.msra.mxu0 0.0
    %2646 = vmatprep.subr.mxu0 0.0
    %2647 = vmatpush1.msra.mxu0 0.0
    %2648 = vmatprep.mubr.f32.mxu0 0.0
    %2649 = vmatmul.mubr.f32.gmra.mrb[0].mxu0 %v2582
    %v2650 = vpop.f32.mrb[0].mxu0
    %v2651 = vadd.f32 0.0, %v2650
    %v2652 = vpop.f32.mrb[0].mxu0
    %2653 = vdwg.mxu0
    %v2654 = vadd.f32 %v2415, %v2651
    %v2655 = vld [vmem:[%s10] sm:$0x1]
    %v2657 = vlaneseq
    %v2658 = vshrl.u32 %v2657, 7
    %v2659 = vsub.s32 0, %v2658
    %v2660 = vrot.slane %v2655, %v2659
    %v2662 = vadd.f32 %v2654, %v2660
    %v2663 = vadd.f32 %v2662, %v354
    %v2664 = vld [vmem:[%s11] sm:$0xff]
    %v2665 = vld [vmem:[%s11 + $0x8] sm:$0xff]
    %v2666 = vld [vmem:[%s11 + $0x10] sm:$0xff]
    %v2667 = vld [vmem:[%s11 + $0x18] sm:$0xff]
    %v2668 = vld [vmem:[%s11 + $0x20] sm:$0xff]
    %v2669 = vld [vmem:[%s11 + $0x28] sm:$0xff]
    %v2670 = vld [vmem:[%s11 + $0x30] sm:$0xff]
    %v2671 = vld [vmem:[%s11 + $0x38] sm:$0xff]
    %v2672 = vld [vmem:[%s12] sm:$0x1]
    %v2674 = vlaneseq
    %v2675 = vshrl.u32 %v2674, 7
    %v2676 = vsub.s32 0, %v2675
    %v2677 = vrot.slane %v2672, %v2676
    %v2680 = vsel %vm575, %v2663, 0
    %2682 = vmatprep.subr.mxu0 0.0
    %2683 = vmatpush1.msra.mxu0 %v2664
    %2684 = vmatprep.subr.mxu0 0.0
    %2685 = vmatpush1.msra.mxu0 %v2665
    %2686 = vmatprep.subr.mxu0 0.0
    %2687 = vmatpush1.msra.mxu0 %v2666
    %2688 = vmatprep.subr.mxu0 0.0
    %2689 = vmatpush1.msra.mxu0 %v2667
    %2690 = vmatprep.subr.mxu0 0.0
    %2691 = vmatpush1.msra.mxu0 %v2668
    %2692 = vmatprep.subr.mxu0 0.0
    %2693 = vmatpush1.msra.mxu0 %v2669
    %2694 = vmatprep.subr.mxu0 0.0
    %2695 = vmatpush1.msra.mxu0 %v2670
    %2696 = vmatprep.subr.mxu0 0.0
    %2697 = vmatpush1.msra.mxu0 %v2671
    %2698 = vmatprep.subr.mxu0 0.0
    %2699 = vmatpush1.msra.mxu0 0.0
    %2700 = vmatprep.subr.mxu0 0.0
    %2701 = vmatpush1.msra.mxu0 0.0
    %2702 = vmatprep.subr.mxu0 0.0
    %2703 = vmatpush1.msra.mxu0 0.0
    %2704 = vmatprep.subr.mxu0 0.0
    %2705 = vmatpush1.msra.mxu0 0.0
    %2706 = vmatprep.subr.mxu0 0.0
    %2707 = vmatpush1.msra.mxu0 0.0
    %2708 = vmatprep.subr.mxu0 0.0
    %2709 = vmatpush1.msra.mxu0 0.0
    %2710 = vmatprep.subr.mxu0 0.0
    %2711 = vmatpush1.msra.mxu0 0.0
    %2712 = vmatprep.subr.mxu0 0.0
    %2713 = vmatpush1.msra.mxu0 0.0
    %2714 = vmatprep.subr.mxu0 0.0
    %2715 = vmatpush1.msra.mxu0 0.0
    %2716 = vmatprep.subr.mxu0 0.0
    %2717 = vmatpush1.msra.mxu0 0.0
    %2718 = vmatprep.subr.mxu0 0.0
    %2719 = vmatpush1.msra.mxu0 0.0
    %2720 = vmatprep.subr.mxu0 0.0
    %2721 = vmatpush1.msra.mxu0 0.0
    %2722 = vmatprep.subr.mxu0 0.0
    %2723 = vmatpush1.msra.mxu0 0.0
    %2724 = vmatprep.subr.mxu0 0.0
    %2725 = vmatpush1.msra.mxu0 0.0
    %2726 = vmatprep.subr.mxu0 0.0
    %2727 = vmatpush1.msra.mxu0 0.0
    %2728 = vmatprep.subr.mxu0 0.0
    %2729 = vmatpush1.msra.mxu0 0.0
    %2730 = vmatprep.subr.mxu0 0.0
    %2731 = vmatpush1.msra.mxu0 0.0
    %2732 = vmatprep.subr.mxu0 0.0
    %2733 = vmatpush1.msra.mxu0 0.0
    %2734 = vmatprep.subr.mxu0 0.0
    %2735 = vmatpush1.msra.mxu0 0.0
    %2736 = vmatprep.subr.mxu0 0.0
    %2737 = vmatpush1.msra.mxu0 0.0
    %2738 = vmatprep.subr.mxu0 0.0
    %2739 = vmatpush1.msra.mxu0 0.0
    %2740 = vmatprep.subr.mxu0 0.0
    %2741 = vmatpush1.msra.mxu0 0.0
    %2742 = vmatprep.subr.mxu0 0.0
    %2743 = vmatpush1.msra.mxu0 0.0
    %2744 = vmatprep.subr.mxu0 0.0
    %2745 = vmatpush1.msra.mxu0 0.0
    %2746 = vmatprep.mubr.f32.mxu0 0.0
    %2747 = vmatmul.mubr.f32.gmra.mrb[0].mxu0 %v2680
    %v2748 = vpop.f32.mrb[0].mxu0
    %v2749 = vadd.f32 %v2677, %v2748
    %v2750 = vpop.f32.mrb[0].mxu0
    %2751 = vdwg.mxu0
    %vm2752 = vcmask 80896
    %2753 = vst.msk [vmem:[#allocation2] sm:$0xff] %vm2752, %v2749
    // Predicated region
    $region54: #{model_forward.1} parent=1 // pred_check
      _
    $region55: #{model_forward.1} parent=1 // pred_check_branch
      %2755 = sbr.rel (0) target = $region57
    $region56: #{model_forward.1} parent=1 // pred_region
      %s2757 = ssub.s32 128, 128
      %2758 = vsyncadd [#allocation3], %s2757
      %s2760 = sshll.u32 [#allocation2], 4
      %s2761 = int_to_ptr.vmem [resolvable:$true] %s2760
      %2763 = dma.vmem_to_hbm [thread:$0]  %s2761, 128, %s13, [#allocation3]
    $region57: #{model_forward.1} parent=1 // pred_fallthru
      _
    // Predicated region
    $region58: #{model_forward.1} parent=1 // pred_check
      _
    $region59: #{model_forward.1} parent=1 // pred_check_branch
      %2765 = sbr.rel (0) target = $region61
    $region60: #{model_forward.1} parent=1 // pred_region
      %2766 = dma.done [#allocation3], 128
    $region61: #{model_forward.1} parent=1 // pred_fallthru
      _
    %2767 = vsyncpa [#allocation3], 1

</llo_original>
